<compile_context>
chip_gen: v7x
topology: tpu7x:2x2x1
jax: 0.10.0
libtpu: 0.0.40
codegen_flags: <defaults>
</compile_context>

<pallas_src>
import functools

import jax
import jax.numpy as jnp
import numpy as np
from jax.experimental import pallas as pl
from jax.experimental.pallas import tpu as pltpu


def _round_up(v, m):
    return (v + m - 1) // m * m


def aux_head_kernel(x_ref, w1_ref, b1_ref, w2_ref, b2_ref, wl_ref, bl_ref,
                    out_ref, *, h, w, stride):
    """Fused AuxiliaryHead forward for one batch tile.

    x_ref : (TN, C, H*W)   activations, NCHW with spatial flattened (f32/bf16)
    w1_ref: (C, 128)       1x1 conv weight; BN1 scale and 1/25 pool scale folded; bf16
    w2_ref: (512, 768)     2x2 conv weight flattened to one K=512 matmul; BN2
                           scale folded; block order (0,0),(0,1),(1,0),(1,1); bf16
    wl_ref: (768, NCpad)   linear weight (transposed, lane-padded), bf16
    b*_ref: (1, ...)       folded biases, f32
    out_ref: (TN, NCpad)   logits (f32, lane-dense)
    """
    tn = x_ref.shape[0]
    x = jnp.maximum(x_ref[...].astype(jnp.float32), 0.0)        # ReLU (f32 VPU math)

    # AvgPool2d(5, stride, pad=0) -> 2x2 map.  Horizontal 5-wide window sums per
    # spatial row (contiguous lane slices of the flat H*W axis), shared between
    # the two vertical windows.
    rcs = [[x[:, :, r * w + j * stride: r * w + j * stride + 5].sum(axis=-1)
            for r in range(h)] for j in range(2)]                # each (TN, C)

    pooled = []                                                  # (i, j) row-major
    for i in range(2):
        for j in range(2):
            acc = rcs[j][i * stride]
            for r in range(i * stride + 1, i * stride + 5):
                acc = acc + rcs[j][r]
            pooled.append(acc)                                   # window *sum* (TN, C)

    # Fused 1x1 conv for all four windows: ONE (4*TN, C) @ (C, 128) MXU matmul.
    # (1/25 pool scale + BN1 scale already folded into w1.)
    p_all = jnp.concatenate(pooled, axis=0).astype(jnp.bfloat16)  # (4*TN, C)
    h1 = jnp.dot(p_all, w1_ref[...], preferred_element_type=jnp.float32)
    h1 = jnp.maximum(h1 + b1_ref[...], 0.0)                      # BN1 bias + ReLU

    # 2x2 conv collapses the 2x2 map to 1x1: one fused K=512 matmul over the
    # lane-concatenated window features (sublane-aligned slices, tn % 8 == 0).
    h1_cat = jnp.concatenate([h1[k * tn:(k + 1) * tn, :] for k in range(4)],
                             axis=-1).astype(jnp.bfloat16)       # (TN, 512)
    h2 = jnp.dot(h1_cat, w2_ref[...], preferred_element_type=jnp.float32)
    h2 = jnp.maximum(h2 + b2_ref[...], 0.0)                      # BN2 bias + ReLU

    logits = jnp.dot(h2.astype(jnp.bfloat16), wl_ref[...],
                     preferred_element_type=jnp.float32) + bl_ref[...]
    out_ref[...] = logits.astype(out_ref.dtype)                  # lane-dense store


def auxiliary_head_forward(x_nchw, kparams, *, input_size, n_classes):
    """x_nchw: (N, C, H, W), f32 (bf16 also accepted; halves input DMA)."""
    assert input_size in (7, 8)
    stride = input_size - 5
    n, c, h, w = x_nchw.shape
    assert h == input_size and w == input_size
    nc_pad = kparams["wl"].shape[1]

    # Free (metadata-only) re-layout: collapse the two trailing contiguous
    # spatial dims.  No transpose / extra HBM pass over x.
    x = x_nchw.reshape(n, c, h * w)

    # ---- batch-tile sizing from a VMEM budget using *padded* tile dims ----
    itemsize = jnp.dtype(x.dtype).itemsize
    x_row = _round_up(c, 8) * _round_up(h * w, 128) * itemsize   # sublane/lane padded
    out_row = nc_pad * 4
    w_bytes = 2 * sum(int(np.prod(kparams[k].shape)) *
                      jnp.dtype(kparams[k].dtype).itemsize
                      for k in ("w1", "b1", "w2", "b2", "wl", "bl"))
    budget = 24 * 1024 * 1024            # headroom inside 32 MiB scoped VMEM (v7x-safe)
    max_tn = max(8, ((budget - w_bytes) // (2 * (x_row + out_row)) // 8) * 8)

    cap = 256                            # fill the 256-wide MXU M dim on v6e/v7x
    # >= 2 grid steps whenever the batch allows it -> both v7x TensorCores engage.
    tn = min(cap, max_tn, max(8, 8 * pl.cdiv(pl.cdiv(n, 2), 8)))
    n_pad = tn * pl.cdiv(n, tn)
    if n_pad != n:
        x = jnp.pad(x, ((0, n_pad - n), (0, 0), (0, 0)))
    grid = (n_pad // tn,)

    out = pl.pallas_call(
        functools.partial(aux_head_kernel, h=h, w=w, stride=stride),
        out_shape=jax.ShapeDtypeStruct((n_pad, nc_pad), jnp.float32),
        grid=grid,
        in_specs=[
            # x tile pipelined over the batch; weights are grid-invariant and
            # stay VMEM-resident.  (If xprof shows exposed input DMA, add
            # pipeline_mode=pl.Buffered(3) on this spec.)
            pl.BlockSpec((tn, c, h * w), lambda i: (i, 0, 0)),
            pl.BlockSpec(kparams["w1"].shape, lambda i: (0, 0)),
            pl.BlockSpec(kparams["b1"].shape, lambda i: (0, 0)),
            pl.BlockSpec(kparams["w2"].shape, lambda i: (0, 0)),
            pl.BlockSpec(kparams["b2"].shape, lambda i: (0, 0)),
            pl.BlockSpec(kparams["wl"].shape, lambda i: (0, 0)),
            pl.BlockSpec(kparams["bl"].shape, lambda i: (0, 0)),
        ],
        out_specs=pl.BlockSpec((tn, nc_pad), lambda i: (i, 0)),
        compiler_params=pltpu.CompilerParams(
            dimension_semantics=("parallel",),
            vmem_limit_bytes=32 * 1024 * 1024,
        ),
    )(x, kparams["w1"], kparams["b1"], kparams["w2"], kparams["b2"],
      kparams["wl"], kparams["bl"])

    return out[:n, :n_classes]


def make_torch_params(key, C, n_classes):
    """PyTorch-shaped parameters (deterministic synthetic init)."""
    ks = jax.random.split(key, 12)
    return {
        "w1_t": 0.05 * jax.random.normal(ks[0], (128, C, 1, 1), jnp.float32),    # Conv2d(C,128,1)
        "w2_t": 0.05 * jax.random.normal(ks[1], (768, 128, 2, 2), jnp.float32),  # Conv2d(128,768,2)
        "wl_t": 0.05 * jax.random.normal(ks[2], (n_classes, 768), jnp.float32),  # Linear(768,NC)
        "bl_t": 0.05 * jax.random.normal(ks[3], (n_classes,), jnp.float32),
        "g1": 1.0 + 0.1 * jax.random.normal(ks[4], (128,), jnp.float32),         # BN1
        "be1": 0.1 * jax.random.normal(ks[5], (128,), jnp.float32),
        "m1": 0.1 * jax.random.normal(ks[6], (128,), jnp.float32),
        "v1": 1.0 + 0.1 * jnp.abs(jax.random.normal(ks[7], (128,), jnp.float32)),
        "g2": 1.0 + 0.1 * jax.random.normal(ks[8], (768,), jnp.float32),         # BN2
        "be2": 0.1 * jax.random.normal(ks[9], (768,), jnp.float32),
        "m2": 0.1 * jax.random.normal(ks[10], (768,), jnp.float32),
        "v2": 1.0 + 0.1 * jnp.abs(jax.random.normal(ks[11], (768,), jnp.float32)),
    }


def prepare_kernel_params(p, *, n_classes_pad):
    """Fold eval-mode BN (and the 1/25 avg-pool scale) into weights/biases,
    re-layout, lane-pad, cast MXU operands to bf16."""
    eps = 1e-5
    s1 = p["g1"] / jnp.sqrt(p["v1"] + eps)
    b1 = p["be1"] - p["m1"] * s1
    s2 = p["g2"] / jnp.sqrt(p["v2"] + eps)
    b2 = p["be2"] - p["m2"] * s2

    # 1x1 conv: fold BN1 scale AND the 1/25 pool normalization into w1.
    w1 = jnp.transpose(p["w1_t"][:, :, 0, 0]) * (s1[None, :] / 25.0)             # (C, 128)
    # (768,128,2,2) -> four (128,768) blocks in (i,j) row-major order -> (512,768)
    w2_blocks = [jnp.transpose(p["w2_t"][:, :, i, j])
                 for i in range(2) for j in range(2)]
    w2 = jnp.concatenate(w2_blocks, axis=0) * s2[None, :]                        # (512, 768)

    wl = jnp.transpose(p["wl_t"])                                                # (768, NC)
    nc = wl.shape[1]
    wl = jnp.pad(wl, ((0, 0), (0, n_classes_pad - nc)))                          # (768, NCpad)
    bl = jnp.pad(p["bl_t"], ((0, n_classes_pad - nc),))                          # (NCpad,)

    return {
        "w1": w1.astype(jnp.bfloat16),
        "b1": b1[None, :].astype(jnp.float32),
        "w2": w2.astype(jnp.bfloat16),
        "b2": b2[None, :].astype(jnp.float32),
        "wl": wl.astype(jnp.bfloat16),
        "bl": bl[None, :].astype(jnp.float32),
    }


def reference(x_nchw, p, *, input_size):
    """Pure-JAX f32 reference with the same eval-mode BN semantics as PyTorch."""
    s = input_size - 5
    eps = 1e-5
    x = jnp.maximum(x_nchw, 0.0)                                  # ReLU
    x = jnp.transpose(x, (0, 2, 3, 1))                            # NHWC
    pooled = jnp.stack([
        jnp.stack([x[:, i * s:i * s + 5, j * s:j * s + 5, :].mean(axis=(1, 2))
                   for j in range(2)], axis=1)
        for i in range(2)], axis=1)                               # (N,2,2,C)
    h1 = jnp.einsum("nijc,kc->nijk", pooled, p["w1_t"][:, :, 0, 0])
    h1 = (h1 - p["m1"]) / jnp.sqrt(p["v1"] + eps) * p["g1"] + p["be1"]
    h1 = jnp.maximum(h1, 0.0)
    h2 = jnp.einsum("nijk,okij->no", h1, p["w2_t"])
    h2 = (h2 - p["m2"]) / jnp.sqrt(p["v2"] + eps) * p["g2"] + p["be2"]
    h2 = jnp.maximum(h2, 0.0)
    return h2 @ jnp.transpose(p["wl_t"]) + p["bl_t"]


if __name__ == "__main__":
    key = jax.random.PRNGKey(0)
    k_x, k_p = jax.random.split(key)

    N, C, input_size, n_classes = 2, 16, 8, 10
    x = jax.random.normal(k_x, (N, C, input_size, input_size), jnp.float32)
    torch_params = make_torch_params(k_p, C, n_classes)

    nc_pad = pl.cdiv(n_classes, 128) * 128
    kparams = prepare_kernel_params(torch_params, n_classes_pad=nc_pad)

    out = auxiliary_head_forward(x, kparams, input_size=input_size,
                                 n_classes=n_classes)
    out = jax.block_until_ready(out)

    ref = reference(x, torch_params, input_size=input_size)
    np.testing.assert_allclose(np.asarray(out), np.asarray(ref),
                               rtol=2e-2, atol=2e-2)
    print("KERNEL_OK")
</pallas_src>

<mosaic_0001>
module attributes {stable_mosaic.version = 11 : i64} {
  func.func @aux_head_kernel(%arg0: i32, %arg1: memref<8x16x64xf32, #tpu.memory_space<vmem>>, %arg2: memref<16x128xbf16, #tpu.memory_space<vmem>>, %arg3: memref<1x128xf32, #tpu.memory_space<vmem>>, %arg4: memref<512x768xbf16, #tpu.memory_space<vmem>>, %arg5: memref<1x768xf32, #tpu.memory_space<vmem>>, %arg6: memref<768x128xbf16, #tpu.memory_space<vmem>>, %arg7: memref<1x128xf32, #tpu.memory_space<vmem>>, %arg8: memref<8x128xf32, #tpu.memory_space<vmem>>) attributes {dimension_semantics = [#tpu.dimension_semantics<parallel>], iteration_bounds = array<i64: 1>, scalar_prefetch = 0 : i64, scratch_operands = 0 : i64, tpu.core_type = #tpu.core_type<tc>, window_params = [{transform_indices = @transform_0, window_bounds = array<i64: 8, 16, 64>}, {pipeline_mode = #tpu.pipeline_mode<synchronous>, transform_indices = @transform_1, window_bounds = array<i64: 16, 128>}, {pipeline_mode = #tpu.pipeline_mode<synchronous>, transform_indices = @transform_2, window_bounds = array<i64: 1, 128>}, {pipeline_mode = #tpu.pipeline_mode<synchronous>, transform_indices = @transform_3, window_bounds = array<i64: 512, 768>}, {pipeline_mode = #tpu.pipeline_mode<synchronous>, transform_indices = @transform_4, window_bounds = array<i64: 1, 768>}, {pipeline_mode = #tpu.pipeline_mode<synchronous>, transform_indices = @transform_5, window_bounds = array<i64: 768, 128>}, {pipeline_mode = #tpu.pipeline_mode<synchronous>, transform_indices = @transform_6, window_bounds = array<i64: 1, 128>}, {transform_indices = @transform_7, window_bounds = array<i64: 8, 128>}]} {
    %c0 = arith.constant 0 : index
    %c0_0 = arith.constant 0 : index
    %c0_1 = arith.constant 0 : index
    %0 = vector.load %arg1[%c0, %c0_0, %c0_1] : memref<8x16x64xf32, #tpu.memory_space<vmem>>, vector<8x16x64xf32>
    %cst = arith.constant 0.000000e+00 : f32
    %1 = vector.broadcast %cst : f32 to vector<8x16x64xf32>
    %2 = arith.maximumf %0, %1 : vector<8x16x64xf32>
    %3 = vector.extract_strided_slice %2 {offsets = [0, 0, 0], sizes = [8, 16, 5], strides = [1, 1, 1]} : vector<8x16x64xf32> to vector<8x16x5xf32>
    %cst_2 = arith.constant dense<0.000000e+00> : vector<8x16xf32>
    %4 = vector.multi_reduction <add>, %3, %cst_2 [2] : vector<8x16x5xf32> to vector<8x16xf32>
    %5 = vector.extract_strided_slice %2 {offsets = [0, 0, 8], sizes = [8, 16, 5], strides = [1, 1, 1]} : vector<8x16x64xf32> to vector<8x16x5xf32>
    %cst_3 = arith.constant dense<0.000000e+00> : vector<8x16xf32>
    %6 = vector.multi_reduction <add>, %5, %cst_3 [2] : vector<8x16x5xf32> to vector<8x16xf32>
    %7 = vector.extract_strided_slice %2 {offsets = [0, 0, 16], sizes = [8, 16, 5], strides = [1, 1, 1]} : vector<8x16x64xf32> to vector<8x16x5xf32>
    %cst_4 = arith.constant dense<0.000000e+00> : vector<8x16xf32>
    %8 = vector.multi_reduction <add>, %7, %cst_4 [2] : vector<8x16x5xf32> to vector<8x16xf32>
    %9 = vector.extract_strided_slice %2 {offsets = [0, 0, 24], sizes = [8, 16, 5], strides = [1, 1, 1]} : vector<8x16x64xf32> to vector<8x16x5xf32>
    %cst_5 = arith.constant dense<0.000000e+00> : vector<8x16xf32>
    %10 = vector.multi_reduction <add>, %9, %cst_5 [2] : vector<8x16x5xf32> to vector<8x16xf32>
    %11 = vector.extract_strided_slice %2 {offsets = [0, 0, 32], sizes = [8, 16, 5], strides = [1, 1, 1]} : vector<8x16x64xf32> to vector<8x16x5xf32>
    %cst_6 = arith.constant dense<0.000000e+00> : vector<8x16xf32>
    %12 = vector.multi_reduction <add>, %11, %cst_6 [2] : vector<8x16x5xf32> to vector<8x16xf32>
    %13 = vector.extract_strided_slice %2 {offsets = [0, 0, 40], sizes = [8, 16, 5], strides = [1, 1, 1]} : vector<8x16x64xf32> to vector<8x16x5xf32>
    %cst_7 = arith.constant dense<0.000000e+00> : vector<8x16xf32>
    %14 = vector.multi_reduction <add>, %13, %cst_7 [2] : vector<8x16x5xf32> to vector<8x16xf32>
    %15 = vector.extract_strided_slice %2 {offsets = [0, 0, 48], sizes = [8, 16, 5], strides = [1, 1, 1]} : vector<8x16x64xf32> to vector<8x16x5xf32>
    %cst_8 = arith.constant dense<0.000000e+00> : vector<8x16xf32>
    %16 = vector.multi_reduction <add>, %15, %cst_8 [2] : vector<8x16x5xf32> to vector<8x16xf32>
    %17 = vector.extract_strided_slice %2 {offsets = [0, 0, 56], sizes = [8, 16, 5], strides = [1, 1, 1]} : vector<8x16x64xf32> to vector<8x16x5xf32>
    %cst_9 = arith.constant dense<0.000000e+00> : vector<8x16xf32>
    %18 = vector.multi_reduction <add>, %17, %cst_9 [2] : vector<8x16x5xf32> to vector<8x16xf32>
    %19 = vector.extract_strided_slice %2 {offsets = [0, 0, 3], sizes = [8, 16, 5], strides = [1, 1, 1]} : vector<8x16x64xf32> to vector<8x16x5xf32>
    %cst_10 = arith.constant dense<0.000000e+00> : vector<8x16xf32>
    %20 = vector.multi_reduction <add>, %19, %cst_10 [2] : vector<8x16x5xf32> to vector<8x16xf32>
    %21 = vector.extract_strided_slice %2 {offsets = [0, 0, 11], sizes = [8, 16, 5], strides = [1, 1, 1]} : vector<8x16x64xf32> to vector<8x16x5xf32>
    %cst_11 = arith.constant dense<0.000000e+00> : vector<8x16xf32>
    %22 = vector.multi_reduction <add>, %21, %cst_11 [2] : vector<8x16x5xf32> to vector<8x16xf32>
    %23 = vector.extract_strided_slice %2 {offsets = [0, 0, 19], sizes = [8, 16, 5], strides = [1, 1, 1]} : vector<8x16x64xf32> to vector<8x16x5xf32>
    %cst_12 = arith.constant dense<0.000000e+00> : vector<8x16xf32>
    %24 = vector.multi_reduction <add>, %23, %cst_12 [2] : vector<8x16x5xf32> to vector<8x16xf32>
    %25 = vector.extract_strided_slice %2 {offsets = [0, 0, 27], sizes = [8, 16, 5], strides = [1, 1, 1]} : vector<8x16x64xf32> to vector<8x16x5xf32>
    %cst_13 = arith.constant dense<0.000000e+00> : vector<8x16xf32>
    %26 = vector.multi_reduction <add>, %25, %cst_13 [2] : vector<8x16x5xf32> to vector<8x16xf32>
    %27 = vector.extract_strided_slice %2 {offsets = [0, 0, 35], sizes = [8, 16, 5], strides = [1, 1, 1]} : vector<8x16x64xf32> to vector<8x16x5xf32>
    %cst_14 = arith.constant dense<0.000000e+00> : vector<8x16xf32>
    %28 = vector.multi_reduction <add>, %27, %cst_14 [2] : vector<8x16x5xf32> to vector<8x16xf32>
    %29 = vector.extract_strided_slice %2 {offsets = [0, 0, 43], sizes = [8, 16, 5], strides = [1, 1, 1]} : vector<8x16x64xf32> to vector<8x16x5xf32>
    %cst_15 = arith.constant dense<0.000000e+00> : vector<8x16xf32>
    %30 = vector.multi_reduction <add>, %29, %cst_15 [2] : vector<8x16x5xf32> to vector<8x16xf32>
    %31 = vector.extract_strided_slice %2 {offsets = [0, 0, 51], sizes = [8, 16, 5], strides = [1, 1, 1]} : vector<8x16x64xf32> to vector<8x16x5xf32>
    %cst_16 = arith.constant dense<0.000000e+00> : vector<8x16xf32>
    %32 = vector.multi_reduction <add>, %31, %cst_16 [2] : vector<8x16x5xf32> to vector<8x16xf32>
    %33 = vector.extract_strided_slice %2 {offsets = [0, 0, 59], sizes = [8, 16, 5], strides = [1, 1, 1]} : vector<8x16x64xf32> to vector<8x16x5xf32>
    %cst_17 = arith.constant dense<0.000000e+00> : vector<8x16xf32>
    %34 = vector.multi_reduction <add>, %33, %cst_17 [2] : vector<8x16x5xf32> to vector<8x16xf32>
    %35 = arith.addf %4, %6 : vector<8x16xf32>
    %36 = arith.addf %35, %8 : vector<8x16xf32>
    %37 = arith.addf %36, %10 : vector<8x16xf32>
    %38 = arith.addf %37, %12 : vector<8x16xf32>
    %39 = arith.addf %20, %22 : vector<8x16xf32>
    %40 = arith.addf %39, %24 : vector<8x16xf32>
    %41 = arith.addf %40, %26 : vector<8x16xf32>
    %42 = arith.addf %41, %28 : vector<8x16xf32>
    %43 = arith.addf %10, %12 : vector<8x16xf32>
    %44 = arith.addf %43, %14 : vector<8x16xf32>
    %45 = arith.addf %44, %16 : vector<8x16xf32>
    %46 = arith.addf %45, %18 : vector<8x16xf32>
    %47 = arith.addf %26, %28 : vector<8x16xf32>
    %48 = arith.addf %47, %30 : vector<8x16xf32>
    %49 = arith.addf %48, %32 : vector<8x16xf32>
    %50 = arith.addf %49, %34 : vector<8x16xf32>
    %51 = tpu.concatenate %38, %42, %46, %50 in 0 : vector<8x16xf32>, vector<8x16xf32>, vector<8x16xf32>, vector<8x16xf32> -> vector<32x16xf32>
    %52 = arith.truncf %51 : vector<32x16xf32> to vector<32x16xbf16>
    %c0_18 = arith.constant 0 : index
    %c0_19 = arith.constant 0 : index
    %53 = vector.load %arg2[%c0_18, %c0_19] : memref<16x128xbf16, #tpu.memory_space<vmem>>, vector<16x128xbf16>
    %cst_20 = arith.constant dense<0.000000e+00> : vector<32x128xf32>
    %54 = tpu.matmul %52, %53, %cst_20 {dimension_numbers = #tpu.dot_dimension_numbers<[1], [0], [0], [1], [0, 0, 1, 1], [], []>} : vector<32x16xbf16>, vector<16x128xbf16>, vector<32x128xf32> -> vector<32x128xf32>
    %c0_21 = arith.constant 0 : index
    %c0_22 = arith.constant 0 : index
    %55 = vector.load %arg3[%c0_21, %c0_22] : memref<1x128xf32, #tpu.memory_space<vmem>>, vector<1x128xf32>
    %56 = vector.broadcast %55 : vector<1x128xf32> to vector<32x128xf32>
    %57 = arith.addf %54, %56 : vector<32x128xf32>
    %cst_23 = arith.constant 0.000000e+00 : f32
    %58 = vector.broadcast %cst_23 : f32 to vector<32x128xf32>
    %59 = arith.maximumf %57, %58 : vector<32x128xf32>
    %60 = vector.extract_strided_slice %59 {offsets = [0, 0], sizes = [8, 128], strides = [1, 1]} : vector<32x128xf32> to vector<8x128xf32>
    %61 = vector.extract_strided_slice %59 {offsets = [8, 0], sizes = [8, 128], strides = [1, 1]} : vector<32x128xf32> to vector<8x128xf32>
    %62 = vector.extract_strided_slice %59 {offsets = [16, 0], sizes = [8, 128], strides = [1, 1]} : vector<32x128xf32> to vector<8x128xf32>
    %63 = vector.extract_strided_slice %59 {offsets = [24, 0], sizes = [8, 128], strides = [1, 1]} : vector<32x128xf32> to vector<8x128xf32>
    %64 = tpu.concatenate %60, %61, %62, %63 in 1 : vector<8x128xf32>, vector<8x128xf32>, vector<8x128xf32>, vector<8x128xf32> -> vector<8x512xf32>
    %65 = arith.truncf %64 : vector<8x512xf32> to vector<8x512xbf16>
    %c0_24 = arith.constant 0 : index
    %c0_25 = arith.constant 0 : index
    %66 = vector.load %arg4[%c0_24, %c0_25] : memref<512x768xbf16, #tpu.memory_space<vmem>>, vector<512x768xbf16>
    %cst_26 = arith.constant dense<0.000000e+00> : vector<8x768xf32>
    %67 = tpu.matmul %65, %66, %cst_26 {dimension_numbers = #tpu.dot_dimension_numbers<[1], [0], [0], [1], [0, 0, 1, 1], [], []>} : vector<8x512xbf16>, vector<512x768xbf16>, vector<8x768xf32> -> vector<8x768xf32>
    %c0_27 = arith.constant 0 : index
    %c0_28 = arith.constant 0 : index
    %68 = vector.load %arg5[%c0_27, %c0_28] : memref<1x768xf32, #tpu.memory_space<vmem>>, vector<1x768xf32>
    %69 = vector.broadcast %68 : vector<1x768xf32> to vector<8x768xf32>
    %70 = arith.addf %67, %69 : vector<8x768xf32>
    %cst_29 = arith.constant 0.000000e+00 : f32
    %71 = vector.broadcast %cst_29 : f32 to vector<8x768xf32>
    %72 = arith.maximumf %70, %71 : vector<8x768xf32>
    %73 = arith.truncf %72 : vector<8x768xf32> to vector<8x768xbf16>
    %c0_30 = arith.constant 0 : index
    %c0_31 = arith.constant 0 : index
    %74 = vector.load %arg6[%c0_30, %c0_31] : memref<768x128xbf16, #tpu.memory_space<vmem>>, vector<768x128xbf16>
    %cst_32 = arith.constant dense<0.000000e+00> : vector<8x128xf32>
    %75 = tpu.matmul %73, %74, %cst_32 {dimension_numbers = #tpu.dot_dimension_numbers<[1], [0], [0], [1], [0, 0, 1, 1], [], []>} : vector<8x768xbf16>, vector<768x128xbf16>, vector<8x128xf32> -> vector<8x128xf32>
    %c0_33 = arith.constant 0 : index
    %c0_34 = arith.constant 0 : index
    %76 = vector.load %arg7[%c0_33, %c0_34] : memref<1x128xf32, #tpu.memory_space<vmem>>, vector<1x128xf32>
    %77 = vector.broadcast %76 : vector<1x128xf32> to vector<8x128xf32>
    %78 = arith.addf %75, %77 : vector<8x128xf32>
    %c0_35 = arith.constant 0 : index
    %c0_36 = arith.constant 0 : index
    %79 = vector.load %arg8[%c0_35, %c0_36] : memref<8x128xf32, #tpu.memory_space<vmem>>, vector<8x128xf32>
    tpu.vector_store %arg8[%c0_35, %c0_36], %78 {strides = array<i32>} : memref<8x128xf32, #tpu.memory_space<vmem>>, vector<8x128xf32>,
    return
  }
  func.func @transform_0(%arg0: i32) -> (i32, i32, i32) {
    %c0_i32 = arith.constant 0 : i32
    %c0_i32_0 = arith.constant 0 : i32
    %c0_i32_1 = arith.constant 0 : i32
    return %arg0, %c0_i32, %c0_i32_0 : i32, i32, i32
  }
  func.func @transform_1(%arg0: i32) -> (i32, i32) {
    %c0_i32 = arith.constant 0 : i32
    %c0_i32_0 = arith.constant 0 : i32
    %c0_i32_1 = arith.constant 0 : i32
    return %c0_i32, %c0_i32_0 : i32, i32
  }
  func.func @transform_2(%arg0: i32) -> (i32, i32) {
    %c0_i32 = arith.constant 0 : i32
    %c0_i32_0 = arith.constant 0 : i32
    %c0_i32_1 = arith.constant 0 : i32
    return %c0_i32, %c0_i32_0 : i32, i32
  }
  func.func @transform_3(%arg0: i32) -> (i32, i32) {
    %c0_i32 = arith.constant 0 : i32
    %c0_i32_0 = arith.constant 0 : i32
    %c0_i32_1 = arith.constant 0 : i32
    return %c0_i32, %c0_i32_0 : i32, i32
  }
  func.func @transform_4(%arg0: i32) -> (i32, i32) {
    %c0_i32 = arith.constant 0 : i32
    %c0_i32_0 = arith.constant 0 : i32
    %c0_i32_1 = arith.constant 0 : i32
    return %c0_i32, %c0_i32_0 : i32, i32
  }
  func.func @transform_5(%arg0: i32) -> (i32, i32) {
    %c0_i32 = arith.constant 0 : i32
    %c0_i32_0 = arith.constant 0 : i32
    %c0_i32_1 = arith.constant 0 : i32
    return %c0_i32, %c0_i32_0 : i32, i32
  }
  func.func @transform_6(%arg0: i32) -> (i32, i32) {
    %c0_i32 = arith.constant 0 : i32
    %c0_i32_0 = arith.constant 0 : i32
    %c0_i32_1 = arith.constant 0 : i32
    return %c0_i32, %c0_i32_0 : i32, i32
  }
  func.func @transform_7(%arg0: i32) -> (i32, i32) {
    %c0_i32 = arith.constant 0 : i32
    %c0_i32_0 = arith.constant 0 : i32
    return %arg0, %c0_i32 : i32, i32
  }
}

</mosaic_0001>

<llo_original>
// kernel: tpu_custom_call.1
$region0: #{tpu_custom_call.1}
  #allocation0 [shape = 'u32[]', space=smem, size = 0x4, offset = 0x4, fixed_abs, tag = 'smem constant byte address 0x4 - core index']
  #allocation1 [shape = 'u32[144,128]{1,0:T(1,128)}', space=vmem, size = 0x12000, scoped, tag = 'internal scratch']
  %s0 = inlined_call_operand.hbm [shape: f32[8,16,64], index: 0, kind: input, shape index: {}]
  %s1 = inlined_call_operand.hbm [shape: bf16[16,128], index: 1, kind: input, shape index: {}]
  %s2 = inlined_call_operand.vmem [shape: f32[1,128], index: 2, kind: input, shape index: {}]
  %s3 = inlined_call_operand.hbm [shape: bf16[512,768], index: 3, kind: input, shape index: {}]
  %s4 = inlined_call_operand.vmem [shape: f32[1,768], index: 4, kind: input, shape index: {}]
  %s5 = inlined_call_operand.hbm [shape: bf16[768,128], index: 5, kind: input, shape index: {}]
  %s6 = inlined_call_operand.vmem [shape: f32[1,128], index: 6, kind: input, shape index: {}]
  %s7 = inlined_call_operand.hbm [shape: f32[8,128], index: 7, kind: output, shape index: {}]
  %s8 = sld [smem:[#allocation0]]
  $region54: #{tpu_custom_call.1} parent=0
    _
  %s10 = ssub.s32 1, %s8
  %s11 = scalar_select 0, %s10, %s8
  $region1: #{tpu_custom_call.1} parent=0
    #allocation2 [shape = 'u8[65536]{0}', space=vmem, size = 0x10000, scoped, tag = 'input window, operand 0, single buffered']
    #allocation3 [shape = 's32[1]{0}', space=sflag, size = 0x4, scoped, tag = 'scoped memory for tpu_custom_call.1']
    #allocation4 [shape = 's32[1]{0}', space=sflag, size = 0x4, scoped, tag = 'scoped memory for tpu_custom_call.1']
    #allocation5 [shape = 'u8[4096]{0}', space=vmem, size = 0x1000, scoped, tag = 'input window, operand 1, single buffered']
    #allocation6 [shape = 's32[1]{0}', space=sflag, size = 0x4, scoped, tag = 'scoped memory for tpu_custom_call.1']
    #allocation7 [shape = 'u8[786432]{0}', space=vmem, size = 0xc0000, scoped, tag = 'input window, operand 3, single buffered']
    #allocation8 [shape = 'u8[196608]{0}', space=vmem, size = 0x30000, scoped, tag = 'input window, operand 5, single buffered']
    #allocation9 [shape = 's32[1]{0}', space=sflag, size = 0x4, scoped, tag = 'scoped memory for tpu_custom_call.1']
    #allocation10 [shape = 'u8[4096]{0}', space=vmem, size = 0x1000, scoped, tag = 'output window, operand 0, single buffered']
    %12 = vsyncpa [#allocation3], 0
    %13 = vsyncpa [#allocation6], 0
    %14 = vsyncpa [#allocation9], 0
    %15 = vsyncpa [#allocation4], 0
    // Predicated region
    $region2: #{tpu_custom_call.1} parent=1 // pred_check
      _
    $region3: #{tpu_custom_call.1} parent=1 // pred_check_branch
      %17 = sbr.rel (0) target = $region5
    $region4: #{tpu_custom_call.1} parent=1 // pred_region
      %s19 = ssub.s32 2048, 2048
      %20 = vsyncadd [#allocation3], %s19
      %s21 = sshll.u32 [#allocation2], 4
      %s22 = int_to_ptr.vmem [resolvable:$true] %s21
      %27 = dma.hbm_to_vmem [thread:$0]  %s0, 2048, %s22, [#allocation3], 128, 128, 8
    $region5: #{tpu_custom_call.1} parent=1 // pred_fallthru
      _
    // Predicated region
    $region6: #{tpu_custom_call.1} parent=1 // pred_check
      _
    $region7: #{tpu_custom_call.1} parent=1 // pred_check_branch
      %29 = sbr.rel (0) target = $region9
    $region8: #{tpu_custom_call.1} parent=1 // pred_region
      %s31 = ssub.s32 128, 128
      %32 = vsyncadd [#allocation6], %s31
      %s33 = sshll.u32 [#allocation5], 4
      %s34 = int_to_ptr.vmem [resolvable:$true] %s33
      %39 = dma.hbm_to_vmem [thread:$0]  %s1, 128, %s34, [#allocation6], 64, 64, 4
    $region9: #{tpu_custom_call.1} parent=1 // pred_fallthru
      _
    // Predicated region
    $region10: #{tpu_custom_call.1} parent=1 // pred_check
      _
    $region11: #{tpu_custom_call.1} parent=1 // pred_check_branch
      %41 = sbr.rel (0) target = $region13
    $region12: #{tpu_custom_call.1} parent=1 // pred_region
      _
    $region13: #{tpu_custom_call.1} parent=1 // pred_fallthru
      _
    // Predicated region
    $region14: #{tpu_custom_call.1} parent=1 // pred_check
      _
    $region15: #{tpu_custom_call.1} parent=1 // pred_check_branch
      %43 = sbr.rel (0) target = $region17
    $region16: #{tpu_custom_call.1} parent=1 // pred_region
      %s45 = ssub.s32 24576, 24576
      %46 = vsyncadd [#allocation6], %s45
      %s47 = sshll.u32 [#allocation7], 4
      %s48 = int_to_ptr.vmem [resolvable:$true] %s47
      %53 = dma.hbm_to_vmem [thread:$0]  %s3, 24576, %s48, [#allocation6], 384, 384, 24
    $region17: #{tpu_custom_call.1} parent=1 // pred_fallthru
      _
    // Predicated region
    $region18: #{tpu_custom_call.1} parent=1 // pred_check
      _
    $region19: #{tpu_custom_call.1} parent=1 // pred_check_branch
      %55 = sbr.rel (0) target = $region21
    $region20: #{tpu_custom_call.1} parent=1 // pred_region
      _
    $region21: #{tpu_custom_call.1} parent=1 // pred_fallthru
      _
    // Predicated region
    $region22: #{tpu_custom_call.1} parent=1 // pred_check
      _
    $region23: #{tpu_custom_call.1} parent=1 // pred_check_branch
      %57 = sbr.rel (0) target = $region25
    $region24: #{tpu_custom_call.1} parent=1 // pred_region
      %s59 = ssub.s32 6144, 6144
      %60 = vsyncadd [#allocation9], %s59
      %s61 = sshll.u32 [#allocation8], 4
      %s62 = int_to_ptr.vmem [resolvable:$true] %s61
      %67 = dma.hbm_to_vmem [thread:$0]  %s5, 6144, %s62, [#allocation9], 64, 64, 4
    $region25: #{tpu_custom_call.1} parent=1 // pred_fallthru
      _
    // Predicated region
    $region26: #{tpu_custom_call.1} parent=1 // pred_check
      _
    $region27: #{tpu_custom_call.1} parent=1 // pred_check_branch
      %69 = sbr.rel (0) target = $region29
    $region28: #{tpu_custom_call.1} parent=1 // pred_region
      _
    $region29: #{tpu_custom_call.1} parent=1 // pred_fallthru
      _
    // Predicated region
    $region30: #{tpu_custom_call.1} parent=1 // pred_check
      _
    $region31: #{tpu_custom_call.1} parent=1 // pred_check_branch
      %71 = sbr.rel (0) target = $region33
    $region32: #{tpu_custom_call.1} parent=1 // pred_region
      %72 = dma.done [#allocation3], 2048
    $region33: #{tpu_custom_call.1} parent=1 // pred_fallthru
      _
    // Predicated region
    $region34: #{tpu_custom_call.1} parent=1 // pred_check
      _
    $region35: #{tpu_custom_call.1} parent=1 // pred_check_branch
      %74 = sbr.rel (0) target = $region37
    $region36: #{tpu_custom_call.1} parent=1 // pred_region
      %75 = dma.done [#allocation6], 128
    $region37: #{tpu_custom_call.1} parent=1 // pred_fallthru
      _
    // Predicated region
    $region38: #{tpu_custom_call.1} parent=1 // pred_check
      _
    $region39: #{tpu_custom_call.1} parent=1 // pred_check_branch
      %77 = sbr.rel (0) target = $region41
    $region40: #{tpu_custom_call.1} parent=1 // pred_region
      %78 = dma.done [#allocation6], 24576
    $region41: #{tpu_custom_call.1} parent=1 // pred_fallthru
      _
    // Predicated region
    $region42: #{tpu_custom_call.1} parent=1 // pred_check
      _
    $region43: #{tpu_custom_call.1} parent=1 // pred_check_branch
      %80 = sbr.rel (0) target = $region45
    $region44: #{tpu_custom_call.1} parent=1 // pred_region
      %81 = dma.done [#allocation9], 6144
    $region45: #{tpu_custom_call.1} parent=1 // pred_fallthru
      _
    %v83 = vld [vmem:[#allocation2] sm:$0xff]
    %v84 = vld [vmem:[#allocation2 + $0x8] sm:$0xff]
    %v85 = vld [vmem:[#allocation2 + $0x10] sm:$0xff]
    %v86 = vld [vmem:[#allocation2 + $0x18] sm:$0xff]
    %v87 = vld [vmem:[#allocation2 + $0x20] sm:$0xff]
    %v88 = vld [vmem:[#allocation2 + $0x28] sm:$0xff]
    %v89 = vld [vmem:[#allocation2 + $0x30] sm:$0xff]
    %v90 = vld [vmem:[#allocation2 + $0x38] sm:$0xff]
    %v91 = vld [vmem:[#allocation2 + $0x40] sm:$0xff]
    %v92 = vld [vmem:[#allocation2 + $0x48] sm:$0xff]
    %v93 = vld [vmem:[#allocation2 + $0x50] sm:$0xff]
    %v94 = vld [vmem:[#allocation2 + $0x58] sm:$0xff]
    %v95 = vld [vmem:[#allocation2 + $0x60] sm:$0xff]
    %v96 = vld [vmem:[#allocation2 + $0x68] sm:$0xff]
    %v97 = vld [vmem:[#allocation2 + $0x70] sm:$0xff]
    %v98 = vld [vmem:[#allocation2 + $0x78] sm:$0xff]
    %v99 = vmax.f32 %v83, 0.0
    %v100 = vmax.f32 %v84, 0.0
    %v101 = vmax.f32 %v85, 0.0
    %v102 = vmax.f32 %v86, 0.0
    %v103 = vmax.f32 %v87, 0.0
    %v104 = vmax.f32 %v88, 0.0
    %v105 = vmax.f32 %v89, 0.0
    %v106 = vmax.f32 %v90, 0.0
    %v107 = vmax.f32 %v91, 0.0
    %v108 = vmax.f32 %v92, 0.0
    %v109 = vmax.f32 %v93, 0.0
    %v110 = vmax.f32 %v94, 0.0
    %v111 = vmax.f32 %v95, 0.0
    %v112 = vmax.f32 %v96, 0.0
    %v113 = vmax.f32 %v97, 0.0
    %v114 = vmax.f32 %v98, 0.0
    %vm115 = vcmask 39936
    %v116 = vsel %vm115, %v99, 0.0
    %117 = vadd.xlane.f32.xlu0 %v116
    %v118 = vpop.xlane.xlu0 %117
    %v119 = vsel %vm115, %v100, 0.0
    %120 = vadd.xlane.f32.xlu0 %v119
    %v121 = vpop.xlane.xlu0 %120
    %v122 = vsel %vm115, %v101, 0.0
    %123 = vadd.xlane.f32.xlu0 %v122
    %v124 = vpop.xlane.xlu0 %123
    %v125 = vsel %vm115, %v102, 0.0
    %126 = vadd.xlane.f32.xlu0 %v125
    %v127 = vpop.xlane.xlu0 %126
    %v128 = vsel %vm115, %v103, 0.0
    %129 = vadd.xlane.f32.xlu0 %v128
    %v130 = vpop.xlane.xlu0 %129
    %v131 = vsel %vm115, %v104, 0.0
    %132 = vadd.xlane.f32.xlu0 %v131
    %v133 = vpop.xlane.xlu0 %132
    %v134 = vsel %vm115, %v105, 0.0
    %135 = vadd.xlane.f32.xlu0 %v134
    %v136 = vpop.xlane.xlu0 %135
    %v137 = vsel %vm115, %v106, 0.0
    %138 = vadd.xlane.f32.xlu0 %v137
    %v139 = vpop.xlane.xlu0 %138
    %v140 = vsel %vm115, %v107, 0.0
    %141 = vadd.xlane.f32.xlu0 %v140
    %v142 = vpop.xlane.xlu0 %141
    %v143 = vsel %vm115, %v108, 0.0
    %144 = vadd.xlane.f32.xlu0 %v143
    %v145 = vpop.xlane.xlu0 %144
    %v146 = vsel %vm115, %v109, 0.0
    %147 = vadd.xlane.f32.xlu0 %v146
    %v148 = vpop.xlane.xlu0 %147
    %v149 = vsel %vm115, %v110, 0.0
    %150 = vadd.xlane.f32.xlu0 %v149
    %v151 = vpop.xlane.xlu0 %150
    %v152 = vsel %vm115, %v111, 0.0
    %153 = vadd.xlane.f32.xlu0 %v152
    %v154 = vpop.xlane.xlu0 %153
    %v155 = vsel %vm115, %v112, 0.0
    %156 = vadd.xlane.f32.xlu0 %v155
    %v157 = vpop.xlane.xlu0 %156
    %v158 = vsel %vm115, %v113, 0.0
    %159 = vadd.xlane.f32.xlu0 %v158
    %v160 = vpop.xlane.xlu0 %159
    %v161 = vsel %vm115, %v114, 0.0
    %162 = vadd.xlane.f32.xlu0 %v161
    %v163 = vpop.xlane.xlu0 %162
    %180 = vrot.lane.b32.xlu0 %v99, 120
    %v181 = vpop.permute.xlu0 %180
    %182 = vrot.lane.b32.xlu0 %v100, 120
    %v183 = vpop.permute.xlu0 %182
    %184 = vrot.lane.b32.xlu0 %v101, 120
    %v185 = vpop.permute.xlu0 %184
    %186 = vrot.lane.b32.xlu0 %v102, 120
    %v187 = vpop.permute.xlu0 %186
    %188 = vrot.lane.b32.xlu0 %v103, 120
    %v189 = vpop.permute.xlu0 %188
    %190 = vrot.lane.b32.xlu0 %v104, 120
    %v191 = vpop.permute.xlu0 %190
    %192 = vrot.lane.b32.xlu0 %v105, 120
    %v193 = vpop.permute.xlu0 %192
    %194 = vrot.lane.b32.xlu0 %v106, 120
    %v195 = vpop.permute.xlu0 %194
    %196 = vrot.lane.b32.xlu0 %v107, 120
    %v197 = vpop.permute.xlu0 %196
    %198 = vrot.lane.b32.xlu0 %v108, 120
    %v199 = vpop.permute.xlu0 %198
    %200 = vrot.lane.b32.xlu0 %v109, 120
    %v201 = vpop.permute.xlu0 %200
    %202 = vrot.lane.b32.xlu0 %v110, 120
    %v203 = vpop.permute.xlu0 %202
    %204 = vrot.lane.b32.xlu0 %v111, 120
    %v205 = vpop.permute.xlu0 %204
    %206 = vrot.lane.b32.xlu0 %v112, 120
    %v207 = vpop.permute.xlu0 %206
    %208 = vrot.lane.b32.xlu0 %v113, 120
    %v209 = vpop.permute.xlu0 %208
    %210 = vrot.lane.b32.xlu0 %v114, 120
    %v211 = vpop.permute.xlu0 %210
    %v228 = vsel %vm115, %v181, 0.0
    %229 = vadd.xlane.f32.xlu0 %v228
    %v230 = vpop.xlane.xlu0 %229
    %v231 = vsel %vm115, %v183, 0.0
    %232 = vadd.xlane.f32.xlu0 %v231
    %v233 = vpop.xlane.xlu0 %232
    %v234 = vsel %vm115, %v185, 0.0
    %235 = vadd.xlane.f32.xlu0 %v234
    %v236 = vpop.xlane.xlu0 %235
    %v237 = vsel %vm115, %v187, 0.0
    %238 = vadd.xlane.f32.xlu0 %v237
    %v239 = vpop.xlane.xlu0 %238
    %v240 = vsel %vm115, %v189, 0.0
    %241 = vadd.xlane.f32.xlu0 %v240
    %v242 = vpop.xlane.xlu0 %241
    %v243 = vsel %vm115, %v191, 0.0
    %244 = vadd.xlane.f32.xlu0 %v243
    %v245 = vpop.xlane.xlu0 %244
    %v246 = vsel %vm115, %v193, 0.0
    %247 = vadd.xlane.f32.xlu0 %v246
    %v248 = vpop.xlane.xlu0 %247
    %v249 = vsel %vm115, %v195, 0.0
    %250 = vadd.xlane.f32.xlu0 %v249
    %v251 = vpop.xlane.xlu0 %250
    %v252 = vsel %vm115, %v197, 0.0
    %253 = vadd.xlane.f32.xlu0 %v252
    %v254 = vpop.xlane.xlu0 %253
    %v255 = vsel %vm115, %v199, 0.0
    %256 = vadd.xlane.f32.xlu0 %v255
    %v257 = vpop.xlane.xlu0 %256
    %v258 = vsel %vm115, %v201, 0.0
    %259 = vadd.xlane.f32.xlu0 %v258
    %v260 = vpop.xlane.xlu0 %259
    %v261 = vsel %vm115, %v203, 0.0
    %262 = vadd.xlane.f32.xlu0 %v261
    %v263 = vpop.xlane.xlu0 %262
    %v264 = vsel %vm115, %v205, 0.0
    %265 = vadd.xlane.f32.xlu0 %v264
    %v266 = vpop.xlane.xlu0 %265
    %v267 = vsel %vm115, %v207, 0.0
    %268 = vadd.xlane.f32.xlu0 %v267
    %v269 = vpop.xlane.xlu0 %268
    %v270 = vsel %vm115, %v209, 0.0
    %271 = vadd.xlane.f32.xlu0 %v270
    %v272 = vpop.xlane.xlu0 %271
    %v273 = vsel %vm115, %v211, 0.0
    %274 = vadd.xlane.f32.xlu0 %v273
    %v275 = vpop.xlane.xlu0 %274
    %276 = vrot.lane.b32.xlu0 %v99, 112
    %v277 = vpop.permute.xlu0 %276
    %278 = vrot.lane.b32.xlu0 %v100, 112
    %v279 = vpop.permute.xlu0 %278
    %280 = vrot.lane.b32.xlu0 %v101, 112
    %v281 = vpop.permute.xlu0 %280
    %282 = vrot.lane.b32.xlu0 %v102, 112
    %v283 = vpop.permute.xlu0 %282
    %284 = vrot.lane.b32.xlu0 %v103, 112
    %v285 = vpop.permute.xlu0 %284
    %286 = vrot.lane.b32.xlu0 %v104, 112
    %v287 = vpop.permute.xlu0 %286
    %288 = vrot.lane.b32.xlu0 %v105, 112
    %v289 = vpop.permute.xlu0 %288
    %290 = vrot.lane.b32.xlu0 %v106, 112
    %v291 = vpop.permute.xlu0 %290
    %292 = vrot.lane.b32.xlu0 %v107, 112
    %v293 = vpop.permute.xlu0 %292
    %294 = vrot.lane.b32.xlu0 %v108, 112
    %v295 = vpop.permute.xlu0 %294
    %296 = vrot.lane.b32.xlu0 %v109, 112
    %v297 = vpop.permute.xlu0 %296
    %298 = vrot.lane.b32.xlu0 %v110, 112
    %v299 = vpop.permute.xlu0 %298
    %300 = vrot.lane.b32.xlu0 %v111, 112
    %v301 = vpop.permute.xlu0 %300
    %302 = vrot.lane.b32.xlu0 %v112, 112
    %v303 = vpop.permute.xlu0 %302
    %304 = vrot.lane.b32.xlu0 %v113, 112
    %v305 = vpop.permute.xlu0 %304
    %306 = vrot.lane.b32.xlu0 %v114, 112
    %v307 = vpop.permute.xlu0 %306
    %v324 = vsel %vm115, %v277, 0.0
    %325 = vadd.xlane.f32.xlu0 %v324
    %v326 = vpop.xlane.xlu0 %325
    %v327 = vsel %vm115, %v279, 0.0
    %328 = vadd.xlane.f32.xlu0 %v327
    %v329 = vpop.xlane.xlu0 %328
    %v330 = vsel %vm115, %v281, 0.0
    %331 = vadd.xlane.f32.xlu0 %v330
    %v332 = vpop.xlane.xlu0 %331
    %v333 = vsel %vm115, %v283, 0.0
    %334 = vadd.xlane.f32.xlu0 %v333
    %v335 = vpop.xlane.xlu0 %334
    %v336 = vsel %vm115, %v285, 0.0
    %337 = vadd.xlane.f32.xlu0 %v336
    %v338 = vpop.xlane.xlu0 %337
    %v339 = vsel %vm115, %v287, 0.0
    %340 = vadd.xlane.f32.xlu0 %v339
    %v341 = vpop.xlane.xlu0 %340
    %v342 = vsel %vm115, %v289, 0.0
    %343 = vadd.xlane.f32.xlu0 %v342
    %v344 = vpop.xlane.xlu0 %343
    %v345 = vsel %vm115, %v291, 0.0
    %346 = vadd.xlane.f32.xlu0 %v345
    %v347 = vpop.xlane.xlu0 %346
    %v348 = vsel %vm115, %v293, 0.0
    %349 = vadd.xlane.f32.xlu0 %v348
    %v350 = vpop.xlane.xlu0 %349
    %v351 = vsel %vm115, %v295, 0.0
    %352 = vadd.xlane.f32.xlu0 %v351
    %v353 = vpop.xlane.xlu0 %352
    %v354 = vsel %vm115, %v297, 0.0
    %355 = vadd.xlane.f32.xlu0 %v354
    %v356 = vpop.xlane.xlu0 %355
    %v357 = vsel %vm115, %v299, 0.0
    %358 = vadd.xlane.f32.xlu0 %v357
    %v359 = vpop.xlane.xlu0 %358
    %v360 = vsel %vm115, %v301, 0.0
    %361 = vadd.xlane.f32.xlu0 %v360
    %v362 = vpop.xlane.xlu0 %361
    %v363 = vsel %vm115, %v303, 0.0
    %364 = vadd.xlane.f32.xlu0 %v363
    %v365 = vpop.xlane.xlu0 %364
    %v366 = vsel %vm115, %v305, 0.0
    %367 = vadd.xlane.f32.xlu0 %v366
    %v368 = vpop.xlane.xlu0 %367
    %v369 = vsel %vm115, %v307, 0.0
    %370 = vadd.xlane.f32.xlu0 %v369
    %v371 = vpop.xlane.xlu0 %370
    %372 = vrot.lane.b32.xlu0 %v99, 104
    %v373 = vpop.permute.xlu0 %372
    %374 = vrot.lane.b32.xlu0 %v100, 104
    %v375 = vpop.permute.xlu0 %374
    %376 = vrot.lane.b32.xlu0 %v101, 104
    %v377 = vpop.permute.xlu0 %376
    %378 = vrot.lane.b32.xlu0 %v102, 104
    %v379 = vpop.permute.xlu0 %378
    %380 = vrot.lane.b32.xlu0 %v103, 104
    %v381 = vpop.permute.xlu0 %380
    %382 = vrot.lane.b32.xlu0 %v104, 104
    %v383 = vpop.permute.xlu0 %382
    %384 = vrot.lane.b32.xlu0 %v105, 104
    %v385 = vpop.permute.xlu0 %384
    %386 = vrot.lane.b32.xlu0 %v106, 104
    %v387 = vpop.permute.xlu0 %386
    %388 = vrot.lane.b32.xlu0 %v107, 104
    %v389 = vpop.permute.xlu0 %388
    %390 = vrot.lane.b32.xlu0 %v108, 104
    %v391 = vpop.permute.xlu0 %390
    %392 = vrot.lane.b32.xlu0 %v109, 104
    %v393 = vpop.permute.xlu0 %392
    %394 = vrot.lane.b32.xlu0 %v110, 104
    %v395 = vpop.permute.xlu0 %394
    %396 = vrot.lane.b32.xlu0 %v111, 104
    %v397 = vpop.permute.xlu0 %396
    %398 = vrot.lane.b32.xlu0 %v112, 104
    %v399 = vpop.permute.xlu0 %398
    %400 = vrot.lane.b32.xlu0 %v113, 104
    %v401 = vpop.permute.xlu0 %400
    %402 = vrot.lane.b32.xlu0 %v114, 104
    %v403 = vpop.permute.xlu0 %402
    %v420 = vsel %vm115, %v373, 0.0
    %421 = vadd.xlane.f32.xlu0 %v420
    %v422 = vpop.xlane.xlu0 %421
    %v423 = vsel %vm115, %v375, 0.0
    %424 = vadd.xlane.f32.xlu0 %v423
    %v425 = vpop.xlane.xlu0 %424
    %v426 = vsel %vm115, %v377, 0.0
    %427 = vadd.xlane.f32.xlu0 %v426
    %v428 = vpop.xlane.xlu0 %427
    %v429 = vsel %vm115, %v379, 0.0
    %430 = vadd.xlane.f32.xlu0 %v429
    %v431 = vpop.xlane.xlu0 %430
    %v432 = vsel %vm115, %v381, 0.0
    %433 = vadd.xlane.f32.xlu0 %v432
    %v434 = vpop.xlane.xlu0 %433
    %v435 = vsel %vm115, %v383, 0.0
    %436 = vadd.xlane.f32.xlu0 %v435
    %v437 = vpop.xlane.xlu0 %436
    %v438 = vsel %vm115, %v385, 0.0
    %439 = vadd.xlane.f32.xlu0 %v438
    %v440 = vpop.xlane.xlu0 %439
    %v441 = vsel %vm115, %v387, 0.0
    %442 = vadd.xlane.f32.xlu0 %v441
    %v443 = vpop.xlane.xlu0 %442
    %v444 = vsel %vm115, %v389, 0.0
    %445 = vadd.xlane.f32.xlu0 %v444
    %v446 = vpop.xlane.xlu0 %445
    %v447 = vsel %vm115, %v391, 0.0
    %448 = vadd.xlane.f32.xlu0 %v447
    %v449 = vpop.xlane.xlu0 %448
    %v450 = vsel %vm115, %v393, 0.0
    %451 = vadd.xlane.f32.xlu0 %v450
    %v452 = vpop.xlane.xlu0 %451
    %v453 = vsel %vm115, %v395, 0.0
    %454 = vadd.xlane.f32.xlu0 %v453
    %v455 = vpop.xlane.xlu0 %454
    %v456 = vsel %vm115, %v397, 0.0
    %457 = vadd.xlane.f32.xlu0 %v456
    %v458 = vpop.xlane.xlu0 %457
    %v459 = vsel %vm115, %v399, 0.0
    %460 = vadd.xlane.f32.xlu0 %v459
    %v461 = vpop.xlane.xlu0 %460
    %v462 = vsel %vm115, %v401, 0.0
    %463 = vadd.xlane.f32.xlu0 %v462
    %v464 = vpop.xlane.xlu0 %463
    %v465 = vsel %vm115, %v403, 0.0
    %466 = vadd.xlane.f32.xlu0 %v465
    %v467 = vpop.xlane.xlu0 %466
    %468 = vrot.lane.b32.xlu0 %v99, 96
    %v469 = vpop.permute.xlu0 %468
    %470 = vrot.lane.b32.xlu0 %v100, 96
    %v471 = vpop.permute.xlu0 %470
    %472 = vrot.lane.b32.xlu0 %v101, 96
    %v473 = vpop.permute.xlu0 %472
    %474 = vrot.lane.b32.xlu0 %v102, 96
    %v475 = vpop.permute.xlu0 %474
    %476 = vrot.lane.b32.xlu0 %v103, 96
    %v477 = vpop.permute.xlu0 %476
    %478 = vrot.lane.b32.xlu0 %v104, 96
    %v479 = vpop.permute.xlu0 %478
    %480 = vrot.lane.b32.xlu0 %v105, 96
    %v481 = vpop.permute.xlu0 %480
    %482 = vrot.lane.b32.xlu0 %v106, 96
    %v483 = vpop.permute.xlu0 %482
    %484 = vrot.lane.b32.xlu0 %v107, 96
    %v485 = vpop.permute.xlu0 %484
    %486 = vrot.lane.b32.xlu0 %v108, 96
    %v487 = vpop.permute.xlu0 %486
    %488 = vrot.lane.b32.xlu0 %v109, 96
    %v489 = vpop.permute.xlu0 %488
    %490 = vrot.lane.b32.xlu0 %v110, 96
    %v491 = vpop.permute.xlu0 %490
    %492 = vrot.lane.b32.xlu0 %v111, 96
    %v493 = vpop.permute.xlu0 %492
    %494 = vrot.lane.b32.xlu0 %v112, 96
    %v495 = vpop.permute.xlu0 %494
    %496 = vrot.lane.b32.xlu0 %v113, 96
    %v497 = vpop.permute.xlu0 %496
    %498 = vrot.lane.b32.xlu0 %v114, 96
    %v499 = vpop.permute.xlu0 %498
    %v516 = vsel %vm115, %v469, 0.0
    %517 = vadd.xlane.f32.xlu0 %v516
    %v518 = vpop.xlane.xlu0 %517
    %v519 = vsel %vm115, %v471, 0.0
    %520 = vadd.xlane.f32.xlu0 %v519
    %v521 = vpop.xlane.xlu0 %520
    %v522 = vsel %vm115, %v473, 0.0
    %523 = vadd.xlane.f32.xlu0 %v522
    %v524 = vpop.xlane.xlu0 %523
    %v525 = vsel %vm115, %v475, 0.0
    %526 = vadd.xlane.f32.xlu0 %v525
    %v527 = vpop.xlane.xlu0 %526
    %v528 = vsel %vm115, %v477, 0.0
    %529 = vadd.xlane.f32.xlu0 %v528
    %v530 = vpop.xlane.xlu0 %529
    %v531 = vsel %vm115, %v479, 0.0
    %532 = vadd.xlane.f32.xlu0 %v531
    %v533 = vpop.xlane.xlu0 %532
    %v534 = vsel %vm115, %v481, 0.0
    %535 = vadd.xlane.f32.xlu0 %v534
    %v536 = vpop.xlane.xlu0 %535
    %v537 = vsel %vm115, %v483, 0.0
    %538 = vadd.xlane.f32.xlu0 %v537
    %v539 = vpop.xlane.xlu0 %538
    %v540 = vsel %vm115, %v485, 0.0
    %541 = vadd.xlane.f32.xlu0 %v540
    %v542 = vpop.xlane.xlu0 %541
    %v543 = vsel %vm115, %v487, 0.0
    %544 = vadd.xlane.f32.xlu0 %v543
    %v545 = vpop.xlane.xlu0 %544
    %v546 = vsel %vm115, %v489, 0.0
    %547 = vadd.xlane.f32.xlu0 %v546
    %v548 = vpop.xlane.xlu0 %547
    %v549 = vsel %vm115, %v491, 0.0
    %550 = vadd.xlane.f32.xlu0 %v549
    %v551 = vpop.xlane.xlu0 %550
    %v552 = vsel %vm115, %v493, 0.0
    %553 = vadd.xlane.f32.xlu0 %v552
    %v554 = vpop.xlane.xlu0 %553
    %v555 = vsel %vm115, %v495, 0.0
    %556 = vadd.xlane.f32.xlu0 %v555
    %v557 = vpop.xlane.xlu0 %556
    %v558 = vsel %vm115, %v497, 0.0
    %559 = vadd.xlane.f32.xlu0 %v558
    %v560 = vpop.xlane.xlu0 %559
    %v561 = vsel %vm115, %v499, 0.0
    %562 = vadd.xlane.f32.xlu0 %v561
    %v563 = vpop.xlane.xlu0 %562
    %564 = vrot.lane.b32.xlu0 %v99, 88
    %v565 = vpop.permute.xlu0 %564
    %566 = vrot.lane.b32.xlu0 %v100, 88
    %v567 = vpop.permute.xlu0 %566
    %568 = vrot.lane.b32.xlu0 %v101, 88
    %v569 = vpop.permute.xlu0 %568
    %570 = vrot.lane.b32.xlu0 %v102, 88
    %v571 = vpop.permute.xlu0 %570
    %572 = vrot.lane.b32.xlu0 %v103, 88
    %v573 = vpop.permute.xlu0 %572
    %574 = vrot.lane.b32.xlu0 %v104, 88
    %v575 = vpop.permute.xlu0 %574
    %576 = vrot.lane.b32.xlu0 %v105, 88
    %v577 = vpop.permute.xlu0 %576
    %578 = vrot.lane.b32.xlu0 %v106, 88
    %v579 = vpop.permute.xlu0 %578
    %580 = vrot.lane.b32.xlu0 %v107, 88
    %v581 = vpop.permute.xlu0 %580
    %582 = vrot.lane.b32.xlu0 %v108, 88
    %v583 = vpop.permute.xlu0 %582
    %584 = vrot.lane.b32.xlu0 %v109, 88
    %v585 = vpop.permute.xlu0 %584
    %586 = vrot.lane.b32.xlu0 %v110, 88
    %v587 = vpop.permute.xlu0 %586
    %588 = vrot.lane.b32.xlu0 %v111, 88
    %v589 = vpop.permute.xlu0 %588
    %590 = vrot.lane.b32.xlu0 %v112, 88
    %v591 = vpop.permute.xlu0 %590
    %592 = vrot.lane.b32.xlu0 %v113, 88
    %v593 = vpop.permute.xlu0 %592
    %594 = vrot.lane.b32.xlu0 %v114, 88
    %v595 = vpop.permute.xlu0 %594
    %v612 = vsel %vm115, %v565, 0.0
    %613 = vadd.xlane.f32.xlu0 %v612
    %v614 = vpop.xlane.xlu0 %613
    %v615 = vsel %vm115, %v567, 0.0
    %616 = vadd.xlane.f32.xlu0 %v615
    %v617 = vpop.xlane.xlu0 %616
    %v618 = vsel %vm115, %v569, 0.0
    %619 = vadd.xlane.f32.xlu0 %v618
    %v620 = vpop.xlane.xlu0 %619
    %v621 = vsel %vm115, %v571, 0.0
    %622 = vadd.xlane.f32.xlu0 %v621
    %v623 = vpop.xlane.xlu0 %622
    %v624 = vsel %vm115, %v573, 0.0
    %625 = vadd.xlane.f32.xlu0 %v624
    %v626 = vpop.xlane.xlu0 %625
    %v627 = vsel %vm115, %v575, 0.0
    %628 = vadd.xlane.f32.xlu0 %v627
    %v629 = vpop.xlane.xlu0 %628
    %v630 = vsel %vm115, %v577, 0.0
    %631 = vadd.xlane.f32.xlu0 %v630
    %v632 = vpop.xlane.xlu0 %631
    %v633 = vsel %vm115, %v579, 0.0
    %634 = vadd.xlane.f32.xlu0 %v633
    %v635 = vpop.xlane.xlu0 %634
    %v636 = vsel %vm115, %v581, 0.0
    %637 = vadd.xlane.f32.xlu0 %v636
    %v638 = vpop.xlane.xlu0 %637
    %v639 = vsel %vm115, %v583, 0.0
    %640 = vadd.xlane.f32.xlu0 %v639
    %v641 = vpop.xlane.xlu0 %640
    %v642 = vsel %vm115, %v585, 0.0
    %643 = vadd.xlane.f32.xlu0 %v642
    %v644 = vpop.xlane.xlu0 %643
    %v645 = vsel %vm115, %v587, 0.0
    %646 = vadd.xlane.f32.xlu0 %v645
    %v647 = vpop.xlane.xlu0 %646
    %v648 = vsel %vm115, %v589, 0.0
    %649 = vadd.xlane.f32.xlu0 %v648
    %v650 = vpop.xlane.xlu0 %649
    %v651 = vsel %vm115, %v591, 0.0
    %652 = vadd.xlane.f32.xlu0 %v651
    %v653 = vpop.xlane.xlu0 %652
    %v654 = vsel %vm115, %v593, 0.0
    %655 = vadd.xlane.f32.xlu0 %v654
    %v656 = vpop.xlane.xlu0 %655
    %v657 = vsel %vm115, %v595, 0.0
    %658 = vadd.xlane.f32.xlu0 %v657
    %v659 = vpop.xlane.xlu0 %658
    %660 = vrot.lane.b32.xlu0 %v99, 80
    %v661 = vpop.permute.xlu0 %660
    %662 = vrot.lane.b32.xlu0 %v100, 80
    %v663 = vpop.permute.xlu0 %662
    %664 = vrot.lane.b32.xlu0 %v101, 80
    %v665 = vpop.permute.xlu0 %664
    %666 = vrot.lane.b32.xlu0 %v102, 80
    %v667 = vpop.permute.xlu0 %666
    %668 = vrot.lane.b32.xlu0 %v103, 80
    %v669 = vpop.permute.xlu0 %668
    %670 = vrot.lane.b32.xlu0 %v104, 80
    %v671 = vpop.permute.xlu0 %670
    %672 = vrot.lane.b32.xlu0 %v105, 80
    %v673 = vpop.permute.xlu0 %672
    %674 = vrot.lane.b32.xlu0 %v106, 80
    %v675 = vpop.permute.xlu0 %674
    %676 = vrot.lane.b32.xlu0 %v107, 80
    %v677 = vpop.permute.xlu0 %676
    %678 = vrot.lane.b32.xlu0 %v108, 80
    %v679 = vpop.permute.xlu0 %678
    %680 = vrot.lane.b32.xlu0 %v109, 80
    %v681 = vpop.permute.xlu0 %680
    %682 = vrot.lane.b32.xlu0 %v110, 80
    %v683 = vpop.permute.xlu0 %682
    %684 = vrot.lane.b32.xlu0 %v111, 80
    %v685 = vpop.permute.xlu0 %684
    %686 = vrot.lane.b32.xlu0 %v112, 80
    %v687 = vpop.permute.xlu0 %686
    %688 = vrot.lane.b32.xlu0 %v113, 80
    %v689 = vpop.permute.xlu0 %688
    %690 = vrot.lane.b32.xlu0 %v114, 80
    %v691 = vpop.permute.xlu0 %690
    %v708 = vsel %vm115, %v661, 0.0
    %709 = vadd.xlane.f32.xlu0 %v708
    %v710 = vpop.xlane.xlu0 %709
    %v711 = vsel %vm115, %v663, 0.0
    %712 = vadd.xlane.f32.xlu0 %v711
    %v713 = vpop.xlane.xlu0 %712
    %v714 = vsel %vm115, %v665, 0.0
    %715 = vadd.xlane.f32.xlu0 %v714
    %v716 = vpop.xlane.xlu0 %715
    %v717 = vsel %vm115, %v667, 0.0
    %718 = vadd.xlane.f32.xlu0 %v717
    %v719 = vpop.xlane.xlu0 %718
    %v720 = vsel %vm115, %v669, 0.0
    %721 = vadd.xlane.f32.xlu0 %v720
    %v722 = vpop.xlane.xlu0 %721
    %v723 = vsel %vm115, %v671, 0.0
    %724 = vadd.xlane.f32.xlu0 %v723
    %v725 = vpop.xlane.xlu0 %724
    %v726 = vsel %vm115, %v673, 0.0
    %727 = vadd.xlane.f32.xlu0 %v726
    %v728 = vpop.xlane.xlu0 %727
    %v729 = vsel %vm115, %v675, 0.0
    %730 = vadd.xlane.f32.xlu0 %v729
    %v731 = vpop.xlane.xlu0 %730
    %v732 = vsel %vm115, %v677, 0.0
    %733 = vadd.xlane.f32.xlu0 %v732
    %v734 = vpop.xlane.xlu0 %733
    %v735 = vsel %vm115, %v679, 0.0
    %736 = vadd.xlane.f32.xlu0 %v735
    %v737 = vpop.xlane.xlu0 %736
    %v738 = vsel %vm115, %v681, 0.0
    %739 = vadd.xlane.f32.xlu0 %v738
    %v740 = vpop.xlane.xlu0 %739
    %v741 = vsel %vm115, %v683, 0.0
    %742 = vadd.xlane.f32.xlu0 %v741
    %v743 = vpop.xlane.xlu0 %742
    %v744 = vsel %vm115, %v685, 0.0
    %745 = vadd.xlane.f32.xlu0 %v744
    %v746 = vpop.xlane.xlu0 %745
    %v747 = vsel %vm115, %v687, 0.0
    %748 = vadd.xlane.f32.xlu0 %v747
    %v749 = vpop.xlane.xlu0 %748
    %v750 = vsel %vm115, %v689, 0.0
    %751 = vadd.xlane.f32.xlu0 %v750
    %v752 = vpop.xlane.xlu0 %751
    %v753 = vsel %vm115, %v691, 0.0
    %754 = vadd.xlane.f32.xlu0 %v753
    %v755 = vpop.xlane.xlu0 %754
    %756 = vrot.lane.b32.xlu0 %v99, 72
    %v757 = vpop.permute.xlu0 %756
    %758 = vrot.lane.b32.xlu0 %v100, 72
    %v759 = vpop.permute.xlu0 %758
    %760 = vrot.lane.b32.xlu0 %v101, 72
    %v761 = vpop.permute.xlu0 %760
    %762 = vrot.lane.b32.xlu0 %v102, 72
    %v763 = vpop.permute.xlu0 %762
    %764 = vrot.lane.b32.xlu0 %v103, 72
    %v765 = vpop.permute.xlu0 %764
    %766 = vrot.lane.b32.xlu0 %v104, 72
    %v767 = vpop.permute.xlu0 %766
    %768 = vrot.lane.b32.xlu0 %v105, 72
    %v769 = vpop.permute.xlu0 %768
    %770 = vrot.lane.b32.xlu0 %v106, 72
    %v771 = vpop.permute.xlu0 %770
    %772 = vrot.lane.b32.xlu0 %v107, 72
    %v773 = vpop.permute.xlu0 %772
    %774 = vrot.lane.b32.xlu0 %v108, 72
    %v775 = vpop.permute.xlu0 %774
    %776 = vrot.lane.b32.xlu0 %v109, 72
    %v777 = vpop.permute.xlu0 %776
    %778 = vrot.lane.b32.xlu0 %v110, 72
    %v779 = vpop.permute.xlu0 %778
    %780 = vrot.lane.b32.xlu0 %v111, 72
    %v781 = vpop.permute.xlu0 %780
    %782 = vrot.lane.b32.xlu0 %v112, 72
    %v783 = vpop.permute.xlu0 %782
    %784 = vrot.lane.b32.xlu0 %v113, 72
    %v785 = vpop.permute.xlu0 %784
    %786 = vrot.lane.b32.xlu0 %v114, 72
    %v787 = vpop.permute.xlu0 %786
    %v804 = vsel %vm115, %v757, 0.0
    %805 = vadd.xlane.f32.xlu0 %v804
    %v806 = vpop.xlane.xlu0 %805
    %v807 = vsel %vm115, %v759, 0.0
    %808 = vadd.xlane.f32.xlu0 %v807
    %v809 = vpop.xlane.xlu0 %808
    %v810 = vsel %vm115, %v761, 0.0
    %811 = vadd.xlane.f32.xlu0 %v810
    %v812 = vpop.xlane.xlu0 %811
    %v813 = vsel %vm115, %v763, 0.0
    %814 = vadd.xlane.f32.xlu0 %v813
    %v815 = vpop.xlane.xlu0 %814
    %v816 = vsel %vm115, %v765, 0.0
    %817 = vadd.xlane.f32.xlu0 %v816
    %v818 = vpop.xlane.xlu0 %817
    %v819 = vsel %vm115, %v767, 0.0
    %820 = vadd.xlane.f32.xlu0 %v819
    %v821 = vpop.xlane.xlu0 %820
    %v822 = vsel %vm115, %v769, 0.0
    %823 = vadd.xlane.f32.xlu0 %v822
    %v824 = vpop.xlane.xlu0 %823
    %v825 = vsel %vm115, %v771, 0.0
    %826 = vadd.xlane.f32.xlu0 %v825
    %v827 = vpop.xlane.xlu0 %826
    %v828 = vsel %vm115, %v773, 0.0
    %829 = vadd.xlane.f32.xlu0 %v828
    %v830 = vpop.xlane.xlu0 %829
    %v831 = vsel %vm115, %v775, 0.0
    %832 = vadd.xlane.f32.xlu0 %v831
    %v833 = vpop.xlane.xlu0 %832
    %v834 = vsel %vm115, %v777, 0.0
    %835 = vadd.xlane.f32.xlu0 %v834
    %v836 = vpop.xlane.xlu0 %835
    %v837 = vsel %vm115, %v779, 0.0
    %838 = vadd.xlane.f32.xlu0 %v837
    %v839 = vpop.xlane.xlu0 %838
    %v840 = vsel %vm115, %v781, 0.0
    %841 = vadd.xlane.f32.xlu0 %v840
    %v842 = vpop.xlane.xlu0 %841
    %v843 = vsel %vm115, %v783, 0.0
    %844 = vadd.xlane.f32.xlu0 %v843
    %v845 = vpop.xlane.xlu0 %844
    %v846 = vsel %vm115, %v785, 0.0
    %847 = vadd.xlane.f32.xlu0 %v846
    %v848 = vpop.xlane.xlu0 %847
    %v849 = vsel %vm115, %v787, 0.0
    %850 = vadd.xlane.f32.xlu0 %v849
    %v851 = vpop.xlane.xlu0 %850
    %852 = vrot.lane.b32.xlu0 %v99, 125
    %v853 = vpop.permute.xlu0 %852
    %854 = vrot.lane.b32.xlu0 %v100, 125
    %v855 = vpop.permute.xlu0 %854
    %856 = vrot.lane.b32.xlu0 %v101, 125
    %v857 = vpop.permute.xlu0 %856
    %858 = vrot.lane.b32.xlu0 %v102, 125
    %v859 = vpop.permute.xlu0 %858
    %860 = vrot.lane.b32.xlu0 %v103, 125
    %v861 = vpop.permute.xlu0 %860
    %862 = vrot.lane.b32.xlu0 %v104, 125
    %v863 = vpop.permute.xlu0 %862
    %864 = vrot.lane.b32.xlu0 %v105, 125
    %v865 = vpop.permute.xlu0 %864
    %866 = vrot.lane.b32.xlu0 %v106, 125
    %v867 = vpop.permute.xlu0 %866
    %868 = vrot.lane.b32.xlu0 %v107, 125
    %v869 = vpop.permute.xlu0 %868
    %870 = vrot.lane.b32.xlu0 %v108, 125
    %v871 = vpop.permute.xlu0 %870
    %872 = vrot.lane.b32.xlu0 %v109, 125
    %v873 = vpop.permute.xlu0 %872
    %874 = vrot.lane.b32.xlu0 %v110, 125
    %v875 = vpop.permute.xlu0 %874
    %876 = vrot.lane.b32.xlu0 %v111, 125
    %v877 = vpop.permute.xlu0 %876
    %878 = vrot.lane.b32.xlu0 %v112, 125
    %v879 = vpop.permute.xlu0 %878
    %880 = vrot.lane.b32.xlu0 %v113, 125
    %v881 = vpop.permute.xlu0 %880
    %882 = vrot.lane.b32.xlu0 %v114, 125
    %v883 = vpop.permute.xlu0 %882
    %v900 = vsel %vm115, %v853, 0.0
    %901 = vadd.xlane.f32.xlu0 %v900
    %v902 = vpop.xlane.xlu0 %901
    %v903 = vsel %vm115, %v855, 0.0
    %904 = vadd.xlane.f32.xlu0 %v903
    %v905 = vpop.xlane.xlu0 %904
    %v906 = vsel %vm115, %v857, 0.0
    %907 = vadd.xlane.f32.xlu0 %v906
    %v908 = vpop.xlane.xlu0 %907
    %v909 = vsel %vm115, %v859, 0.0
    %910 = vadd.xlane.f32.xlu0 %v909
    %v911 = vpop.xlane.xlu0 %910
    %v912 = vsel %vm115, %v861, 0.0
    %913 = vadd.xlane.f32.xlu0 %v912
    %v914 = vpop.xlane.xlu0 %913
    %v915 = vsel %vm115, %v863, 0.0
    %916 = vadd.xlane.f32.xlu0 %v915
    %v917 = vpop.xlane.xlu0 %916
    %v918 = vsel %vm115, %v865, 0.0
    %919 = vadd.xlane.f32.xlu0 %v918
    %v920 = vpop.xlane.xlu0 %919
    %v921 = vsel %vm115, %v867, 0.0
    %922 = vadd.xlane.f32.xlu0 %v921
    %v923 = vpop.xlane.xlu0 %922
    %v924 = vsel %vm115, %v869, 0.0
    %925 = vadd.xlane.f32.xlu0 %v924
    %v926 = vpop.xlane.xlu0 %925
    %v927 = vsel %vm115, %v871, 0.0
    %928 = vadd.xlane.f32.xlu0 %v927
    %v929 = vpop.xlane.xlu0 %928
    %v930 = vsel %vm115, %v873, 0.0
    %931 = vadd.xlane.f32.xlu0 %v930
    %v932 = vpop.xlane.xlu0 %931
    %v933 = vsel %vm115, %v875, 0.0
    %934 = vadd.xlane.f32.xlu0 %v933
    %v935 = vpop.xlane.xlu0 %934
    %v936 = vsel %vm115, %v877, 0.0
    %937 = vadd.xlane.f32.xlu0 %v936
    %v938 = vpop.xlane.xlu0 %937
    %v939 = vsel %vm115, %v879, 0.0
    %940 = vadd.xlane.f32.xlu0 %v939
    %v941 = vpop.xlane.xlu0 %940
    %v942 = vsel %vm115, %v881, 0.0
    %943 = vadd.xlane.f32.xlu0 %v942
    %v944 = vpop.xlane.xlu0 %943
    %v945 = vsel %vm115, %v883, 0.0
    %946 = vadd.xlane.f32.xlu0 %v945
    %v947 = vpop.xlane.xlu0 %946
    %948 = vrot.lane.b32.xlu0 %v99, 117
    %v949 = vpop.permute.xlu0 %948
    %950 = vrot.lane.b32.xlu0 %v100, 117
    %v951 = vpop.permute.xlu0 %950
    %952 = vrot.lane.b32.xlu0 %v101, 117
    %v953 = vpop.permute.xlu0 %952
    %954 = vrot.lane.b32.xlu0 %v102, 117
    %v955 = vpop.permute.xlu0 %954
    %956 = vrot.lane.b32.xlu0 %v103, 117
    %v957 = vpop.permute.xlu0 %956
    %958 = vrot.lane.b32.xlu0 %v104, 117
    %v959 = vpop.permute.xlu0 %958
    %960 = vrot.lane.b32.xlu0 %v105, 117
    %v961 = vpop.permute.xlu0 %960
    %962 = vrot.lane.b32.xlu0 %v106, 117
    %v963 = vpop.permute.xlu0 %962
    %964 = vrot.lane.b32.xlu0 %v107, 117
    %v965 = vpop.permute.xlu0 %964
    %966 = vrot.lane.b32.xlu0 %v108, 117
    %v967 = vpop.permute.xlu0 %966
    %968 = vrot.lane.b32.xlu0 %v109, 117
    %v969 = vpop.permute.xlu0 %968
    %970 = vrot.lane.b32.xlu0 %v110, 117
    %v971 = vpop.permute.xlu0 %970
    %972 = vrot.lane.b32.xlu0 %v111, 117
    %v973 = vpop.permute.xlu0 %972
    %974 = vrot.lane.b32.xlu0 %v112, 117
    %v975 = vpop.permute.xlu0 %974
    %976 = vrot.lane.b32.xlu0 %v113, 117
    %v977 = vpop.permute.xlu0 %976
    %978 = vrot.lane.b32.xlu0 %v114, 117
    %v979 = vpop.permute.xlu0 %978
    %v996 = vsel %vm115, %v949, 0.0
    %997 = vadd.xlane.f32.xlu0 %v996
    %v998 = vpop.xlane.xlu0 %997
    %v999 = vsel %vm115, %v951, 0.0
    %1000 = vadd.xlane.f32.xlu0 %v999
    %v1001 = vpop.xlane.xlu0 %1000
    %v1002 = vsel %vm115, %v953, 0.0
    %1003 = vadd.xlane.f32.xlu0 %v1002
    %v1004 = vpop.xlane.xlu0 %1003
    %v1005 = vsel %vm115, %v955, 0.0
    %1006 = vadd.xlane.f32.xlu0 %v1005
    %v1007 = vpop.xlane.xlu0 %1006
    %v1008 = vsel %vm115, %v957, 0.0
    %1009 = vadd.xlane.f32.xlu0 %v1008
    %v1010 = vpop.xlane.xlu0 %1009
    %v1011 = vsel %vm115, %v959, 0.0
    %1012 = vadd.xlane.f32.xlu0 %v1011
    %v1013 = vpop.xlane.xlu0 %1012
    %v1014 = vsel %vm115, %v961, 0.0
    %1015 = vadd.xlane.f32.xlu0 %v1014
    %v1016 = vpop.xlane.xlu0 %1015
    %v1017 = vsel %vm115, %v963, 0.0
    %1018 = vadd.xlane.f32.xlu0 %v1017
    %v1019 = vpop.xlane.xlu0 %1018
    %v1020 = vsel %vm115, %v965, 0.0
    %1021 = vadd.xlane.f32.xlu0 %v1020
    %v1022 = vpop.xlane.xlu0 %1021
    %v1023 = vsel %vm115, %v967, 0.0
    %1024 = vadd.xlane.f32.xlu0 %v1023
    %v1025 = vpop.xlane.xlu0 %1024
    %v1026 = vsel %vm115, %v969, 0.0
    %1027 = vadd.xlane.f32.xlu0 %v1026
    %v1028 = vpop.xlane.xlu0 %1027
    %v1029 = vsel %vm115, %v971, 0.0
    %1030 = vadd.xlane.f32.xlu0 %v1029
    %v1031 = vpop.xlane.xlu0 %1030
    %v1032 = vsel %vm115, %v973, 0.0
    %1033 = vadd.xlane.f32.xlu0 %v1032
    %v1034 = vpop.xlane.xlu0 %1033
    %v1035 = vsel %vm115, %v975, 0.0
    %1036 = vadd.xlane.f32.xlu0 %v1035
    %v1037 = vpop.xlane.xlu0 %1036
    %v1038 = vsel %vm115, %v977, 0.0
    %1039 = vadd.xlane.f32.xlu0 %v1038
    %v1040 = vpop.xlane.xlu0 %1039
    %v1041 = vsel %vm115, %v979, 0.0
    %1042 = vadd.xlane.f32.xlu0 %v1041
    %v1043 = vpop.xlane.xlu0 %1042
    %1044 = vrot.lane.b32.xlu0 %v99, 109
    %v1045 = vpop.permute.xlu0 %1044
    %1046 = vrot.lane.b32.xlu0 %v100, 109
    %v1047 = vpop.permute.xlu0 %1046
    %1048 = vrot.lane.b32.xlu0 %v101, 109
    %v1049 = vpop.permute.xlu0 %1048
    %1050 = vrot.lane.b32.xlu0 %v102, 109
    %v1051 = vpop.permute.xlu0 %1050
    %1052 = vrot.lane.b32.xlu0 %v103, 109
    %v1053 = vpop.permute.xlu0 %1052
    %1054 = vrot.lane.b32.xlu0 %v104, 109
    %v1055 = vpop.permute.xlu0 %1054
    %1056 = vrot.lane.b32.xlu0 %v105, 109
    %v1057 = vpop.permute.xlu0 %1056
    %1058 = vrot.lane.b32.xlu0 %v106, 109
    %v1059 = vpop.permute.xlu0 %1058
    %1060 = vrot.lane.b32.xlu0 %v107, 109
    %v1061 = vpop.permute.xlu0 %1060
    %1062 = vrot.lane.b32.xlu0 %v108, 109
    %v1063 = vpop.permute.xlu0 %1062
    %1064 = vrot.lane.b32.xlu0 %v109, 109
    %v1065 = vpop.permute.xlu0 %1064
    %1066 = vrot.lane.b32.xlu0 %v110, 109
    %v1067 = vpop.permute.xlu0 %1066
    %1068 = vrot.lane.b32.xlu0 %v111, 109
    %v1069 = vpop.permute.xlu0 %1068
    %1070 = vrot.lane.b32.xlu0 %v112, 109
    %v1071 = vpop.permute.xlu0 %1070
    %1072 = vrot.lane.b32.xlu0 %v113, 109
    %v1073 = vpop.permute.xlu0 %1072
    %1074 = vrot.lane.b32.xlu0 %v114, 109
    %v1075 = vpop.permute.xlu0 %1074
    %v1092 = vsel %vm115, %v1045, 0.0
    %1093 = vadd.xlane.f32.xlu0 %v1092
    %v1094 = vpop.xlane.xlu0 %1093
    %v1095 = vsel %vm115, %v1047, 0.0
    %1096 = vadd.xlane.f32.xlu0 %v1095
    %v1097 = vpop.xlane.xlu0 %1096
    %v1098 = vsel %vm115, %v1049, 0.0
    %1099 = vadd.xlane.f32.xlu0 %v1098
    %v1100 = vpop.xlane.xlu0 %1099
    %v1101 = vsel %vm115, %v1051, 0.0
    %1102 = vadd.xlane.f32.xlu0 %v1101
    %v1103 = vpop.xlane.xlu0 %1102
    %v1104 = vsel %vm115, %v1053, 0.0
    %1105 = vadd.xlane.f32.xlu0 %v1104
    %v1106 = vpop.xlane.xlu0 %1105
    %v1107 = vsel %vm115, %v1055, 0.0
    %1108 = vadd.xlane.f32.xlu0 %v1107
    %v1109 = vpop.xlane.xlu0 %1108
    %v1110 = vsel %vm115, %v1057, 0.0
    %1111 = vadd.xlane.f32.xlu0 %v1110
    %v1112 = vpop.xlane.xlu0 %1111
    %v1113 = vsel %vm115, %v1059, 0.0
    %1114 = vadd.xlane.f32.xlu0 %v1113
    %v1115 = vpop.xlane.xlu0 %1114
    %v1116 = vsel %vm115, %v1061, 0.0
    %1117 = vadd.xlane.f32.xlu0 %v1116
    %v1118 = vpop.xlane.xlu0 %1117
    %v1119 = vsel %vm115, %v1063, 0.0
    %1120 = vadd.xlane.f32.xlu0 %v1119
    %v1121 = vpop.xlane.xlu0 %1120
    %v1122 = vsel %vm115, %v1065, 0.0
    %1123 = vadd.xlane.f32.xlu0 %v1122
    %v1124 = vpop.xlane.xlu0 %1123
    %v1125 = vsel %vm115, %v1067, 0.0
    %1126 = vadd.xlane.f32.xlu0 %v1125
    %v1127 = vpop.xlane.xlu0 %1126
    %v1128 = vsel %vm115, %v1069, 0.0
    %1129 = vadd.xlane.f32.xlu0 %v1128
    %v1130 = vpop.xlane.xlu0 %1129
    %v1131 = vsel %vm115, %v1071, 0.0
    %1132 = vadd.xlane.f32.xlu0 %v1131
    %v1133 = vpop.xlane.xlu0 %1132
    %v1134 = vsel %vm115, %v1073, 0.0
    %1135 = vadd.xlane.f32.xlu0 %v1134
    %v1136 = vpop.xlane.xlu0 %1135
    %v1137 = vsel %vm115, %v1075, 0.0
    %1138 = vadd.xlane.f32.xlu0 %v1137
    %v1139 = vpop.xlane.xlu0 %1138
    %1140 = vrot.lane.b32.xlu0 %v99, 101
    %v1141 = vpop.permute.xlu0 %1140
    %1142 = vrot.lane.b32.xlu0 %v100, 101
    %v1143 = vpop.permute.xlu0 %1142
    %1144 = vrot.lane.b32.xlu0 %v101, 101
    %v1145 = vpop.permute.xlu0 %1144
    %1146 = vrot.lane.b32.xlu0 %v102, 101
    %v1147 = vpop.permute.xlu0 %1146
    %1148 = vrot.lane.b32.xlu0 %v103, 101
    %v1149 = vpop.permute.xlu0 %1148
    %1150 = vrot.lane.b32.xlu0 %v104, 101
    %v1151 = vpop.permute.xlu0 %1150
    %1152 = vrot.lane.b32.xlu0 %v105, 101
    %v1153 = vpop.permute.xlu0 %1152
    %1154 = vrot.lane.b32.xlu0 %v106, 101
    %v1155 = vpop.permute.xlu0 %1154
    %1156 = vrot.lane.b32.xlu0 %v107, 101
    %v1157 = vpop.permute.xlu0 %1156
    %1158 = vrot.lane.b32.xlu0 %v108, 101
    %v1159 = vpop.permute.xlu0 %1158
    %1160 = vrot.lane.b32.xlu0 %v109, 101
    %v1161 = vpop.permute.xlu0 %1160
    %1162 = vrot.lane.b32.xlu0 %v110, 101
    %v1163 = vpop.permute.xlu0 %1162
    %1164 = vrot.lane.b32.xlu0 %v111, 101
    %v1165 = vpop.permute.xlu0 %1164
    %1166 = vrot.lane.b32.xlu0 %v112, 101
    %v1167 = vpop.permute.xlu0 %1166
    %1168 = vrot.lane.b32.xlu0 %v113, 101
    %v1169 = vpop.permute.xlu0 %1168
    %1170 = vrot.lane.b32.xlu0 %v114, 101
    %v1171 = vpop.permute.xlu0 %1170
    %v1188 = vsel %vm115, %v1141, 0.0
    %1189 = vadd.xlane.f32.xlu0 %v1188
    %v1190 = vpop.xlane.xlu0 %1189
    %v1191 = vsel %vm115, %v1143, 0.0
    %1192 = vadd.xlane.f32.xlu0 %v1191
    %v1193 = vpop.xlane.xlu0 %1192
    %v1194 = vsel %vm115, %v1145, 0.0
    %1195 = vadd.xlane.f32.xlu0 %v1194
    %v1196 = vpop.xlane.xlu0 %1195
    %v1197 = vsel %vm115, %v1147, 0.0
    %1198 = vadd.xlane.f32.xlu0 %v1197
    %v1199 = vpop.xlane.xlu0 %1198
    %v1200 = vsel %vm115, %v1149, 0.0
    %1201 = vadd.xlane.f32.xlu0 %v1200
    %v1202 = vpop.xlane.xlu0 %1201
    %v1203 = vsel %vm115, %v1151, 0.0
    %1204 = vadd.xlane.f32.xlu0 %v1203
    %v1205 = vpop.xlane.xlu0 %1204
    %v1206 = vsel %vm115, %v1153, 0.0
    %1207 = vadd.xlane.f32.xlu0 %v1206
    %v1208 = vpop.xlane.xlu0 %1207
    %v1209 = vsel %vm115, %v1155, 0.0
    %1210 = vadd.xlane.f32.xlu0 %v1209
    %v1211 = vpop.xlane.xlu0 %1210
    %v1212 = vsel %vm115, %v1157, 0.0
    %1213 = vadd.xlane.f32.xlu0 %v1212
    %v1214 = vpop.xlane.xlu0 %1213
    %v1215 = vsel %vm115, %v1159, 0.0
    %1216 = vadd.xlane.f32.xlu0 %v1215
    %v1217 = vpop.xlane.xlu0 %1216
    %v1218 = vsel %vm115, %v1161, 0.0
    %1219 = vadd.xlane.f32.xlu0 %v1218
    %v1220 = vpop.xlane.xlu0 %1219
    %v1221 = vsel %vm115, %v1163, 0.0
    %1222 = vadd.xlane.f32.xlu0 %v1221
    %v1223 = vpop.xlane.xlu0 %1222
    %v1224 = vsel %vm115, %v1165, 0.0
    %1225 = vadd.xlane.f32.xlu0 %v1224
    %v1226 = vpop.xlane.xlu0 %1225
    %v1227 = vsel %vm115, %v1167, 0.0
    %1228 = vadd.xlane.f32.xlu0 %v1227
    %v1229 = vpop.xlane.xlu0 %1228
    %v1230 = vsel %vm115, %v1169, 0.0
    %1231 = vadd.xlane.f32.xlu0 %v1230
    %v1232 = vpop.xlane.xlu0 %1231
    %v1233 = vsel %vm115, %v1171, 0.0
    %1234 = vadd.xlane.f32.xlu0 %v1233
    %v1235 = vpop.xlane.xlu0 %1234
    %1236 = vrot.lane.b32.xlu0 %v99, 93
    %v1237 = vpop.permute.xlu0 %1236
    %1238 = vrot.lane.b32.xlu0 %v100, 93
    %v1239 = vpop.permute.xlu0 %1238
    %1240 = vrot.lane.b32.xlu0 %v101, 93
    %v1241 = vpop.permute.xlu0 %1240
    %1242 = vrot.lane.b32.xlu0 %v102, 93
    %v1243 = vpop.permute.xlu0 %1242
    %1244 = vrot.lane.b32.xlu0 %v103, 93
    %v1245 = vpop.permute.xlu0 %1244
    %1246 = vrot.lane.b32.xlu0 %v104, 93
    %v1247 = vpop.permute.xlu0 %1246
    %1248 = vrot.lane.b32.xlu0 %v105, 93
    %v1249 = vpop.permute.xlu0 %1248
    %1250 = vrot.lane.b32.xlu0 %v106, 93
    %v1251 = vpop.permute.xlu0 %1250
    %1252 = vrot.lane.b32.xlu0 %v107, 93
    %v1253 = vpop.permute.xlu0 %1252
    %1254 = vrot.lane.b32.xlu0 %v108, 93
    %v1255 = vpop.permute.xlu0 %1254
    %1256 = vrot.lane.b32.xlu0 %v109, 93
    %v1257 = vpop.permute.xlu0 %1256
    %1258 = vrot.lane.b32.xlu0 %v110, 93
    %v1259 = vpop.permute.xlu0 %1258
    %1260 = vrot.lane.b32.xlu0 %v111, 93
    %v1261 = vpop.permute.xlu0 %1260
    %1262 = vrot.lane.b32.xlu0 %v112, 93
    %v1263 = vpop.permute.xlu0 %1262
    %1264 = vrot.lane.b32.xlu0 %v113, 93
    %v1265 = vpop.permute.xlu0 %1264
    %1266 = vrot.lane.b32.xlu0 %v114, 93
    %v1267 = vpop.permute.xlu0 %1266
    %v1284 = vsel %vm115, %v1237, 0.0
    %1285 = vadd.xlane.f32.xlu0 %v1284
    %v1286 = vpop.xlane.xlu0 %1285
    %v1287 = vsel %vm115, %v1239, 0.0
    %1288 = vadd.xlane.f32.xlu0 %v1287
    %v1289 = vpop.xlane.xlu0 %1288
    %v1290 = vsel %vm115, %v1241, 0.0
    %1291 = vadd.xlane.f32.xlu0 %v1290
    %v1292 = vpop.xlane.xlu0 %1291
    %v1293 = vsel %vm115, %v1243, 0.0
    %1294 = vadd.xlane.f32.xlu0 %v1293
    %v1295 = vpop.xlane.xlu0 %1294
    %v1296 = vsel %vm115, %v1245, 0.0
    %1297 = vadd.xlane.f32.xlu0 %v1296
    %v1298 = vpop.xlane.xlu0 %1297
    %v1299 = vsel %vm115, %v1247, 0.0
    %1300 = vadd.xlane.f32.xlu0 %v1299
    %v1301 = vpop.xlane.xlu0 %1300
    %v1302 = vsel %vm115, %v1249, 0.0
    %1303 = vadd.xlane.f32.xlu0 %v1302
    %v1304 = vpop.xlane.xlu0 %1303
    %v1305 = vsel %vm115, %v1251, 0.0
    %1306 = vadd.xlane.f32.xlu0 %v1305
    %v1307 = vpop.xlane.xlu0 %1306
    %v1308 = vsel %vm115, %v1253, 0.0
    %1309 = vadd.xlane.f32.xlu0 %v1308
    %v1310 = vpop.xlane.xlu0 %1309
    %v1311 = vsel %vm115, %v1255, 0.0
    %1312 = vadd.xlane.f32.xlu0 %v1311
    %v1313 = vpop.xlane.xlu0 %1312
    %v1314 = vsel %vm115, %v1257, 0.0
    %1315 = vadd.xlane.f32.xlu0 %v1314
    %v1316 = vpop.xlane.xlu0 %1315
    %v1317 = vsel %vm115, %v1259, 0.0
    %1318 = vadd.xlane.f32.xlu0 %v1317
    %v1319 = vpop.xlane.xlu0 %1318
    %v1320 = vsel %vm115, %v1261, 0.0
    %1321 = vadd.xlane.f32.xlu0 %v1320
    %v1322 = vpop.xlane.xlu0 %1321
    %v1323 = vsel %vm115, %v1263, 0.0
    %1324 = vadd.xlane.f32.xlu0 %v1323
    %v1325 = vpop.xlane.xlu0 %1324
    %v1326 = vsel %vm115, %v1265, 0.0
    %1327 = vadd.xlane.f32.xlu0 %v1326
    %v1328 = vpop.xlane.xlu0 %1327
    %v1329 = vsel %vm115, %v1267, 0.0
    %1330 = vadd.xlane.f32.xlu0 %v1329
    %v1331 = vpop.xlane.xlu0 %1330
    %1332 = vrot.lane.b32.xlu0 %v99, 85
    %v1333 = vpop.permute.xlu0 %1332
    %1334 = vrot.lane.b32.xlu0 %v100, 85
    %v1335 = vpop.permute.xlu0 %1334
    %1336 = vrot.lane.b32.xlu0 %v101, 85
    %v1337 = vpop.permute.xlu0 %1336
    %1338 = vrot.lane.b32.xlu0 %v102, 85
    %v1339 = vpop.permute.xlu0 %1338
    %1340 = vrot.lane.b32.xlu0 %v103, 85
    %v1341 = vpop.permute.xlu0 %1340
    %1342 = vrot.lane.b32.xlu0 %v104, 85
    %v1343 = vpop.permute.xlu0 %1342
    %1344 = vrot.lane.b32.xlu0 %v105, 85
    %v1345 = vpop.permute.xlu0 %1344
    %1346 = vrot.lane.b32.xlu0 %v106, 85
    %v1347 = vpop.permute.xlu0 %1346
    %1348 = vrot.lane.b32.xlu0 %v107, 85
    %v1349 = vpop.permute.xlu0 %1348
    %1350 = vrot.lane.b32.xlu0 %v108, 85
    %v1351 = vpop.permute.xlu0 %1350
    %1352 = vrot.lane.b32.xlu0 %v109, 85
    %v1353 = vpop.permute.xlu0 %1352
    %1354 = vrot.lane.b32.xlu0 %v110, 85
    %v1355 = vpop.permute.xlu0 %1354
    %1356 = vrot.lane.b32.xlu0 %v111, 85
    %v1357 = vpop.permute.xlu0 %1356
    %1358 = vrot.lane.b32.xlu0 %v112, 85
    %v1359 = vpop.permute.xlu0 %1358
    %1360 = vrot.lane.b32.xlu0 %v113, 85
    %v1361 = vpop.permute.xlu0 %1360
    %1362 = vrot.lane.b32.xlu0 %v114, 85
    %v1363 = vpop.permute.xlu0 %1362
    %v1380 = vsel %vm115, %v1333, 0.0
    %1381 = vadd.xlane.f32.xlu0 %v1380
    %v1382 = vpop.xlane.xlu0 %1381
    %v1383 = vsel %vm115, %v1335, 0.0
    %1384 = vadd.xlane.f32.xlu0 %v1383
    %v1385 = vpop.xlane.xlu0 %1384
    %v1386 = vsel %vm115, %v1337, 0.0
    %1387 = vadd.xlane.f32.xlu0 %v1386
    %v1388 = vpop.xlane.xlu0 %1387
    %v1389 = vsel %vm115, %v1339, 0.0
    %1390 = vadd.xlane.f32.xlu0 %v1389
    %v1391 = vpop.xlane.xlu0 %1390
    %v1392 = vsel %vm115, %v1341, 0.0
    %1393 = vadd.xlane.f32.xlu0 %v1392
    %v1394 = vpop.xlane.xlu0 %1393
    %v1395 = vsel %vm115, %v1343, 0.0
    %1396 = vadd.xlane.f32.xlu0 %v1395
    %v1397 = vpop.xlane.xlu0 %1396
    %v1398 = vsel %vm115, %v1345, 0.0
    %1399 = vadd.xlane.f32.xlu0 %v1398
    %v1400 = vpop.xlane.xlu0 %1399
    %v1401 = vsel %vm115, %v1347, 0.0
    %1402 = vadd.xlane.f32.xlu0 %v1401
    %v1403 = vpop.xlane.xlu0 %1402
    %v1404 = vsel %vm115, %v1349, 0.0
    %1405 = vadd.xlane.f32.xlu0 %v1404
    %v1406 = vpop.xlane.xlu0 %1405
    %v1407 = vsel %vm115, %v1351, 0.0
    %1408 = vadd.xlane.f32.xlu0 %v1407
    %v1409 = vpop.xlane.xlu0 %1408
    %v1410 = vsel %vm115, %v1353, 0.0
    %1411 = vadd.xlane.f32.xlu0 %v1410
    %v1412 = vpop.xlane.xlu0 %1411
    %v1413 = vsel %vm115, %v1355, 0.0
    %1414 = vadd.xlane.f32.xlu0 %v1413
    %v1415 = vpop.xlane.xlu0 %1414
    %v1416 = vsel %vm115, %v1357, 0.0
    %1417 = vadd.xlane.f32.xlu0 %v1416
    %v1418 = vpop.xlane.xlu0 %1417
    %v1419 = vsel %vm115, %v1359, 0.0
    %1420 = vadd.xlane.f32.xlu0 %v1419
    %v1421 = vpop.xlane.xlu0 %1420
    %v1422 = vsel %vm115, %v1361, 0.0
    %1423 = vadd.xlane.f32.xlu0 %v1422
    %v1424 = vpop.xlane.xlu0 %1423
    %v1425 = vsel %vm115, %v1363, 0.0
    %1426 = vadd.xlane.f32.xlu0 %v1425
    %v1427 = vpop.xlane.xlu0 %1426
    %1428 = vrot.lane.b32.xlu0 %v99, 77
    %v1429 = vpop.permute.xlu0 %1428
    %1430 = vrot.lane.b32.xlu0 %v100, 77
    %v1431 = vpop.permute.xlu0 %1430
    %1432 = vrot.lane.b32.xlu0 %v101, 77
    %v1433 = vpop.permute.xlu0 %1432
    %1434 = vrot.lane.b32.xlu0 %v102, 77
    %v1435 = vpop.permute.xlu0 %1434
    %1436 = vrot.lane.b32.xlu0 %v103, 77
    %v1437 = vpop.permute.xlu0 %1436
    %1438 = vrot.lane.b32.xlu0 %v104, 77
    %v1439 = vpop.permute.xlu0 %1438
    %1440 = vrot.lane.b32.xlu0 %v105, 77
    %v1441 = vpop.permute.xlu0 %1440
    %1442 = vrot.lane.b32.xlu0 %v106, 77
    %v1443 = vpop.permute.xlu0 %1442
    %1444 = vrot.lane.b32.xlu0 %v107, 77
    %v1445 = vpop.permute.xlu0 %1444
    %1446 = vrot.lane.b32.xlu0 %v108, 77
    %v1447 = vpop.permute.xlu0 %1446
    %1448 = vrot.lane.b32.xlu0 %v109, 77
    %v1449 = vpop.permute.xlu0 %1448
    %1450 = vrot.lane.b32.xlu0 %v110, 77
    %v1451 = vpop.permute.xlu0 %1450
    %1452 = vrot.lane.b32.xlu0 %v111, 77
    %v1453 = vpop.permute.xlu0 %1452
    %1454 = vrot.lane.b32.xlu0 %v112, 77
    %v1455 = vpop.permute.xlu0 %1454
    %1456 = vrot.lane.b32.xlu0 %v113, 77
    %v1457 = vpop.permute.xlu0 %1456
    %1458 = vrot.lane.b32.xlu0 %v114, 77
    %v1459 = vpop.permute.xlu0 %1458
    %v1476 = vsel %vm115, %v1429, 0.0
    %1477 = vadd.xlane.f32.xlu0 %v1476
    %v1478 = vpop.xlane.xlu0 %1477
    %v1479 = vsel %vm115, %v1431, 0.0
    %1480 = vadd.xlane.f32.xlu0 %v1479
    %v1481 = vpop.xlane.xlu0 %1480
    %v1482 = vsel %vm115, %v1433, 0.0
    %1483 = vadd.xlane.f32.xlu0 %v1482
    %v1484 = vpop.xlane.xlu0 %1483
    %v1485 = vsel %vm115, %v1435, 0.0
    %1486 = vadd.xlane.f32.xlu0 %v1485
    %v1487 = vpop.xlane.xlu0 %1486
    %v1488 = vsel %vm115, %v1437, 0.0
    %1489 = vadd.xlane.f32.xlu0 %v1488
    %v1490 = vpop.xlane.xlu0 %1489
    %v1491 = vsel %vm115, %v1439, 0.0
    %1492 = vadd.xlane.f32.xlu0 %v1491
    %v1493 = vpop.xlane.xlu0 %1492
    %v1494 = vsel %vm115, %v1441, 0.0
    %1495 = vadd.xlane.f32.xlu0 %v1494
    %v1496 = vpop.xlane.xlu0 %1495
    %v1497 = vsel %vm115, %v1443, 0.0
    %1498 = vadd.xlane.f32.xlu0 %v1497
    %v1499 = vpop.xlane.xlu0 %1498
    %v1500 = vsel %vm115, %v1445, 0.0
    %1501 = vadd.xlane.f32.xlu0 %v1500
    %v1502 = vpop.xlane.xlu0 %1501
    %v1503 = vsel %vm115, %v1447, 0.0
    %1504 = vadd.xlane.f32.xlu0 %v1503
    %v1505 = vpop.xlane.xlu0 %1504
    %v1506 = vsel %vm115, %v1449, 0.0
    %1507 = vadd.xlane.f32.xlu0 %v1506
    %v1508 = vpop.xlane.xlu0 %1507
    %v1509 = vsel %vm115, %v1451, 0.0
    %1510 = vadd.xlane.f32.xlu0 %v1509
    %v1511 = vpop.xlane.xlu0 %1510
    %v1512 = vsel %vm115, %v1453, 0.0
    %1513 = vadd.xlane.f32.xlu0 %v1512
    %v1514 = vpop.xlane.xlu0 %1513
    %v1515 = vsel %vm115, %v1455, 0.0
    %1516 = vadd.xlane.f32.xlu0 %v1515
    %v1517 = vpop.xlane.xlu0 %1516
    %v1518 = vsel %vm115, %v1457, 0.0
    %1519 = vadd.xlane.f32.xlu0 %v1518
    %v1520 = vpop.xlane.xlu0 %1519
    %v1521 = vsel %vm115, %v1459, 0.0
    %1522 = vadd.xlane.f32.xlu0 %v1521
    %v1523 = vpop.xlane.xlu0 %1522
    %1524 = vrot.lane.b32.xlu0 %v99, 69
    %v1525 = vpop.permute.xlu0 %1524
    %1526 = vrot.lane.b32.xlu0 %v100, 69
    %v1527 = vpop.permute.xlu0 %1526
    %1528 = vrot.lane.b32.xlu0 %v101, 69
    %v1529 = vpop.permute.xlu0 %1528
    %1530 = vrot.lane.b32.xlu0 %v102, 69
    %v1531 = vpop.permute.xlu0 %1530
    %1532 = vrot.lane.b32.xlu0 %v103, 69
    %v1533 = vpop.permute.xlu0 %1532
    %1534 = vrot.lane.b32.xlu0 %v104, 69
    %v1535 = vpop.permute.xlu0 %1534
    %1536 = vrot.lane.b32.xlu0 %v105, 69
    %v1537 = vpop.permute.xlu0 %1536
    %1538 = vrot.lane.b32.xlu0 %v106, 69
    %v1539 = vpop.permute.xlu0 %1538
    %1540 = vrot.lane.b32.xlu0 %v107, 69
    %v1541 = vpop.permute.xlu0 %1540
    %1542 = vrot.lane.b32.xlu0 %v108, 69
    %v1543 = vpop.permute.xlu0 %1542
    %1544 = vrot.lane.b32.xlu0 %v109, 69
    %v1545 = vpop.permute.xlu0 %1544
    %1546 = vrot.lane.b32.xlu0 %v110, 69
    %v1547 = vpop.permute.xlu0 %1546
    %1548 = vrot.lane.b32.xlu0 %v111, 69
    %v1549 = vpop.permute.xlu0 %1548
    %1550 = vrot.lane.b32.xlu0 %v112, 69
    %v1551 = vpop.permute.xlu0 %1550
    %1552 = vrot.lane.b32.xlu0 %v113, 69
    %v1553 = vpop.permute.xlu0 %1552
    %1554 = vrot.lane.b32.xlu0 %v114, 69
    %v1555 = vpop.permute.xlu0 %1554
    %v1572 = vsel %vm115, %v1525, 0.0
    %1573 = vadd.xlane.f32.xlu0 %v1572
    %v1574 = vpop.xlane.xlu0 %1573
    %v1575 = vsel %vm115, %v1527, 0.0
    %1576 = vadd.xlane.f32.xlu0 %v1575
    %v1577 = vpop.xlane.xlu0 %1576
    %v1578 = vsel %vm115, %v1529, 0.0
    %1579 = vadd.xlane.f32.xlu0 %v1578
    %v1580 = vpop.xlane.xlu0 %1579
    %v1581 = vsel %vm115, %v1531, 0.0
    %1582 = vadd.xlane.f32.xlu0 %v1581
    %v1583 = vpop.xlane.xlu0 %1582
    %v1584 = vsel %vm115, %v1533, 0.0
    %1585 = vadd.xlane.f32.xlu0 %v1584
    %v1586 = vpop.xlane.xlu0 %1585
    %v1587 = vsel %vm115, %v1535, 0.0
    %1588 = vadd.xlane.f32.xlu0 %v1587
    %v1589 = vpop.xlane.xlu0 %1588
    %v1590 = vsel %vm115, %v1537, 0.0
    %1591 = vadd.xlane.f32.xlu0 %v1590
    %v1592 = vpop.xlane.xlu0 %1591
    %v1593 = vsel %vm115, %v1539, 0.0
    %1594 = vadd.xlane.f32.xlu0 %v1593
    %v1595 = vpop.xlane.xlu0 %1594
    %v1596 = vsel %vm115, %v1541, 0.0
    %1597 = vadd.xlane.f32.xlu0 %v1596
    %v1598 = vpop.xlane.xlu0 %1597
    %v1599 = vsel %vm115, %v1543, 0.0
    %1600 = vadd.xlane.f32.xlu0 %v1599
    %v1601 = vpop.xlane.xlu0 %1600
    %v1602 = vsel %vm115, %v1545, 0.0
    %1603 = vadd.xlane.f32.xlu0 %v1602
    %v1604 = vpop.xlane.xlu0 %1603
    %v1605 = vsel %vm115, %v1547, 0.0
    %1606 = vadd.xlane.f32.xlu0 %v1605
    %v1607 = vpop.xlane.xlu0 %1606
    %v1608 = vsel %vm115, %v1549, 0.0
    %1609 = vadd.xlane.f32.xlu0 %v1608
    %v1610 = vpop.xlane.xlu0 %1609
    %v1611 = vsel %vm115, %v1551, 0.0
    %1612 = vadd.xlane.f32.xlu0 %v1611
    %v1613 = vpop.xlane.xlu0 %1612
    %v1614 = vsel %vm115, %v1553, 0.0
    %1615 = vadd.xlane.f32.xlu0 %v1614
    %v1616 = vpop.xlane.xlu0 %1615
    %v1617 = vsel %vm115, %v1555, 0.0
    %1618 = vadd.xlane.f32.xlu0 %v1617
    %v1619 = vpop.xlane.xlu0 %1618
    %v1620 = vadd.f32 %v118, %v230
    %v1621 = vadd.f32 %v121, %v233
    %v1622 = vadd.f32 %v124, %v236
    %v1623 = vadd.f32 %v127, %v239
    %v1624 = vadd.f32 %v130, %v242
    %v1625 = vadd.f32 %v133, %v245
    %v1626 = vadd.f32 %v136, %v248
    %v1627 = vadd.f32 %v139, %v251
    %v1628 = vadd.f32 %v142, %v254
    %v1629 = vadd.f32 %v145, %v257
    %v1630 = vadd.f32 %v148, %v260
    %v1631 = vadd.f32 %v151, %v263
    %v1632 = vadd.f32 %v154, %v266
    %v1633 = vadd.f32 %v157, %v269
    %v1634 = vadd.f32 %v160, %v272
    %v1635 = vadd.f32 %v163, %v275
    %v1636 = vadd.f32 %v1620, %v326
    %v1637 = vadd.f32 %v1621, %v329
    %v1638 = vadd.f32 %v1622, %v332
    %v1639 = vadd.f32 %v1623, %v335
    %v1640 = vadd.f32 %v1624, %v338
    %v1641 = vadd.f32 %v1625, %v341
    %v1642 = vadd.f32 %v1626, %v344
    %v1643 = vadd.f32 %v1627, %v347
    %v1644 = vadd.f32 %v1628, %v350
    %v1645 = vadd.f32 %v1629, %v353
    %v1646 = vadd.f32 %v1630, %v356
    %v1647 = vadd.f32 %v1631, %v359
    %v1648 = vadd.f32 %v1632, %v362
    %v1649 = vadd.f32 %v1633, %v365
    %v1650 = vadd.f32 %v1634, %v368
    %v1651 = vadd.f32 %v1635, %v371
    %v1652 = vadd.f32 %v1636, %v422
    %v1653 = vadd.f32 %v1637, %v425
    %v1654 = vadd.f32 %v1638, %v428
    %v1655 = vadd.f32 %v1639, %v431
    %v1656 = vadd.f32 %v1640, %v434
    %v1657 = vadd.f32 %v1641, %v437
    %v1658 = vadd.f32 %v1642, %v440
    %v1659 = vadd.f32 %v1643, %v443
    %v1660 = vadd.f32 %v1644, %v446
    %v1661 = vadd.f32 %v1645, %v449
    %v1662 = vadd.f32 %v1646, %v452
    %v1663 = vadd.f32 %v1647, %v455
    %v1664 = vadd.f32 %v1648, %v458
    %v1665 = vadd.f32 %v1649, %v461
    %v1666 = vadd.f32 %v1650, %v464
    %v1667 = vadd.f32 %v1651, %v467
    %v1668 = vadd.f32 %v1652, %v518
    %v1669 = vadd.f32 %v1653, %v521
    %v1670 = vadd.f32 %v1654, %v524
    %v1671 = vadd.f32 %v1655, %v527
    %v1672 = vadd.f32 %v1656, %v530
    %v1673 = vadd.f32 %v1657, %v533
    %v1674 = vadd.f32 %v1658, %v536
    %v1675 = vadd.f32 %v1659, %v539
    %v1676 = vadd.f32 %v1660, %v542
    %v1677 = vadd.f32 %v1661, %v545
    %v1678 = vadd.f32 %v1662, %v548
    %v1679 = vadd.f32 %v1663, %v551
    %v1680 = vadd.f32 %v1664, %v554
    %v1681 = vadd.f32 %v1665, %v557
    %v1682 = vadd.f32 %v1666, %v560
    %v1683 = vadd.f32 %v1667, %v563
    %v1684 = vadd.f32 %v902, %v998
    %v1685 = vadd.f32 %v905, %v1001
    %v1686 = vadd.f32 %v908, %v1004
    %v1687 = vadd.f32 %v911, %v1007
    %v1688 = vadd.f32 %v914, %v1010
    %v1689 = vadd.f32 %v917, %v1013
    %v1690 = vadd.f32 %v920, %v1016
    %v1691 = vadd.f32 %v923, %v1019
    %v1692 = vadd.f32 %v926, %v1022
    %v1693 = vadd.f32 %v929, %v1025
    %v1694 = vadd.f32 %v932, %v1028
    %v1695 = vadd.f32 %v935, %v1031
    %v1696 = vadd.f32 %v938, %v1034
    %v1697 = vadd.f32 %v941, %v1037
    %v1698 = vadd.f32 %v944, %v1040
    %v1699 = vadd.f32 %v947, %v1043
    %v1700 = vadd.f32 %v1684, %v1094
    %v1701 = vadd.f32 %v1685, %v1097
    %v1702 = vadd.f32 %v1686, %v1100
    %v1703 = vadd.f32 %v1687, %v1103
    %v1704 = vadd.f32 %v1688, %v1106
    %v1705 = vadd.f32 %v1689, %v1109
    %v1706 = vadd.f32 %v1690, %v1112
    %v1707 = vadd.f32 %v1691, %v1115
    %v1708 = vadd.f32 %v1692, %v1118
    %v1709 = vadd.f32 %v1693, %v1121
    %v1710 = vadd.f32 %v1694, %v1124
    %v1711 = vadd.f32 %v1695, %v1127
    %v1712 = vadd.f32 %v1696, %v1130
    %v1713 = vadd.f32 %v1697, %v1133
    %v1714 = vadd.f32 %v1698, %v1136
    %v1715 = vadd.f32 %v1699, %v1139
    %v1716 = vadd.f32 %v1700, %v1190
    %v1717 = vadd.f32 %v1701, %v1193
    %v1718 = vadd.f32 %v1702, %v1196
    %v1719 = vadd.f32 %v1703, %v1199
    %v1720 = vadd.f32 %v1704, %v1202
    %v1721 = vadd.f32 %v1705, %v1205
    %v1722 = vadd.f32 %v1706, %v1208
    %v1723 = vadd.f32 %v1707, %v1211
    %v1724 = vadd.f32 %v1708, %v1214
    %v1725 = vadd.f32 %v1709, %v1217
    %v1726 = vadd.f32 %v1710, %v1220
    %v1727 = vadd.f32 %v1711, %v1223
    %v1728 = vadd.f32 %v1712, %v1226
    %v1729 = vadd.f32 %v1713, %v1229
    %v1730 = vadd.f32 %v1714, %v1232
    %v1731 = vadd.f32 %v1715, %v1235
    %v1732 = vadd.f32 %v1716, %v1286
    %v1733 = vadd.f32 %v1717, %v1289
    %v1734 = vadd.f32 %v1718, %v1292
    %v1735 = vadd.f32 %v1719, %v1295
    %v1736 = vadd.f32 %v1720, %v1298
    %v1737 = vadd.f32 %v1721, %v1301
    %v1738 = vadd.f32 %v1722, %v1304
    %v1739 = vadd.f32 %v1723, %v1307
    %v1740 = vadd.f32 %v1724, %v1310
    %v1741 = vadd.f32 %v1725, %v1313
    %v1742 = vadd.f32 %v1726, %v1316
    %v1743 = vadd.f32 %v1727, %v1319
    %v1744 = vadd.f32 %v1728, %v1322
    %v1745 = vadd.f32 %v1729, %v1325
    %v1746 = vadd.f32 %v1730, %v1328
    %v1747 = vadd.f32 %v1731, %v1331
    %v1748 = vadd.f32 %v422, %v518
    %v1749 = vadd.f32 %v425, %v521
    %v1750 = vadd.f32 %v428, %v524
    %v1751 = vadd.f32 %v431, %v527
    %v1752 = vadd.f32 %v434, %v530
    %v1753 = vadd.f32 %v437, %v533
    %v1754 = vadd.f32 %v440, %v536
    %v1755 = vadd.f32 %v443, %v539
    %v1756 = vadd.f32 %v446, %v542
    %v1757 = vadd.f32 %v449, %v545
    %v1758 = vadd.f32 %v452, %v548
    %v1759 = vadd.f32 %v455, %v551
    %v1760 = vadd.f32 %v458, %v554
    %v1761 = vadd.f32 %v461, %v557
    %v1762 = vadd.f32 %v464, %v560
    %v1763 = vadd.f32 %v467, %v563
    %v1764 = vadd.f32 %v1748, %v614
    %v1765 = vadd.f32 %v1749, %v617
    %v1766 = vadd.f32 %v1750, %v620
    %v1767 = vadd.f32 %v1751, %v623
    %v1768 = vadd.f32 %v1752, %v626
    %v1769 = vadd.f32 %v1753, %v629
    %v1770 = vadd.f32 %v1754, %v632
    %v1771 = vadd.f32 %v1755, %v635
    %v1772 = vadd.f32 %v1756, %v638
    %v1773 = vadd.f32 %v1757, %v641
    %v1774 = vadd.f32 %v1758, %v644
    %v1775 = vadd.f32 %v1759, %v647
    %v1776 = vadd.f32 %v1760, %v650
    %v1777 = vadd.f32 %v1761, %v653
    %v1778 = vadd.f32 %v1762, %v656
    %v1779 = vadd.f32 %v1763, %v659
    %v1780 = vadd.f32 %v1764, %v710
    %v1781 = vadd.f32 %v1765, %v713
    %v1782 = vadd.f32 %v1766, %v716
    %v1783 = vadd.f32 %v1767, %v719
    %v1784 = vadd.f32 %v1768, %v722
    %v1785 = vadd.f32 %v1769, %v725
    %v1786 = vadd.f32 %v1770, %v728
    %v1787 = vadd.f32 %v1771, %v731
    %v1788 = vadd.f32 %v1772, %v734
    %v1789 = vadd.f32 %v1773, %v737
    %v1790 = vadd.f32 %v1774, %v740
    %v1791 = vadd.f32 %v1775, %v743
    %v1792 = vadd.f32 %v1776, %v746
    %v1793 = vadd.f32 %v1777, %v749
    %v1794 = vadd.f32 %v1778, %v752
    %v1795 = vadd.f32 %v1779, %v755
    %v1796 = vadd.f32 %v1780, %v806
    %v1797 = vadd.f32 %v1781, %v809
    %v1798 = vadd.f32 %v1782, %v812
    %v1799 = vadd.f32 %v1783, %v815
    %v1800 = vadd.f32 %v1784, %v818
    %v1801 = vadd.f32 %v1785, %v821
    %v1802 = vadd.f32 %v1786, %v824
    %v1803 = vadd.f32 %v1787, %v827
    %v1804 = vadd.f32 %v1788, %v830
    %v1805 = vadd.f32 %v1789, %v833
    %v1806 = vadd.f32 %v1790, %v836
    %v1807 = vadd.f32 %v1791, %v839
    %v1808 = vadd.f32 %v1792, %v842
    %v1809 = vadd.f32 %v1793, %v845
    %v1810 = vadd.f32 %v1794, %v848
    %v1811 = vadd.f32 %v1795, %v851
    %v1812 = vadd.f32 %v1190, %v1286
    %v1813 = vadd.f32 %v1193, %v1289
    %v1814 = vadd.f32 %v1196, %v1292
    %v1815 = vadd.f32 %v1199, %v1295
    %v1816 = vadd.f32 %v1202, %v1298
    %v1817 = vadd.f32 %v1205, %v1301
    %v1818 = vadd.f32 %v1208, %v1304
    %v1819 = vadd.f32 %v1211, %v1307
    %v1820 = vadd.f32 %v1214, %v1310
    %v1821 = vadd.f32 %v1217, %v1313
    %v1822 = vadd.f32 %v1220, %v1316
    %v1823 = vadd.f32 %v1223, %v1319
    %v1824 = vadd.f32 %v1226, %v1322
    %v1825 = vadd.f32 %v1229, %v1325
    %v1826 = vadd.f32 %v1232, %v1328
    %v1827 = vadd.f32 %v1235, %v1331
    %v1828 = vadd.f32 %v1812, %v1382
    %v1829 = vadd.f32 %v1813, %v1385
    %v1830 = vadd.f32 %v1814, %v1388
    %v1831 = vadd.f32 %v1815, %v1391
    %v1832 = vadd.f32 %v1816, %v1394
    %v1833 = vadd.f32 %v1817, %v1397
    %v1834 = vadd.f32 %v1818, %v1400
    %v1835 = vadd.f32 %v1819, %v1403
    %v1836 = vadd.f32 %v1820, %v1406
    %v1837 = vadd.f32 %v1821, %v1409
    %v1838 = vadd.f32 %v1822, %v1412
    %v1839 = vadd.f32 %v1823, %v1415
    %v1840 = vadd.f32 %v1824, %v1418
    %v1841 = vadd.f32 %v1825, %v1421
    %v1842 = vadd.f32 %v1826, %v1424
    %v1843 = vadd.f32 %v1827, %v1427
    %v1844 = vadd.f32 %v1828, %v1478
    %v1845 = vadd.f32 %v1829, %v1481
    %v1846 = vadd.f32 %v1830, %v1484
    %v1847 = vadd.f32 %v1831, %v1487
    %v1848 = vadd.f32 %v1832, %v1490
    %v1849 = vadd.f32 %v1833, %v1493
    %v1850 = vadd.f32 %v1834, %v1496
    %v1851 = vadd.f32 %v1835, %v1499
    %v1852 = vadd.f32 %v1836, %v1502
    %v1853 = vadd.f32 %v1837, %v1505
    %v1854 = vadd.f32 %v1838, %v1508
    %v1855 = vadd.f32 %v1839, %v1511
    %v1856 = vadd.f32 %v1840, %v1514
    %v1857 = vadd.f32 %v1841, %v1517
    %v1858 = vadd.f32 %v1842, %v1520
    %v1859 = vadd.f32 %v1843, %v1523
    %v1860 = vadd.f32 %v1844, %v1574
    %v1861 = vadd.f32 %v1845, %v1577
    %v1862 = vadd.f32 %v1846, %v1580
    %v1863 = vadd.f32 %v1847, %v1583
    %v1864 = vadd.f32 %v1848, %v1586
    %v1865 = vadd.f32 %v1849, %v1589
    %v1866 = vadd.f32 %v1850, %v1592
    %v1867 = vadd.f32 %v1851, %v1595
    %v1868 = vadd.f32 %v1852, %v1598
    %v1869 = vadd.f32 %v1853, %v1601
    %v1870 = vadd.f32 %v1854, %v1604
    %v1871 = vadd.f32 %v1855, %v1607
    %v1872 = vadd.f32 %v1856, %v1610
    %v1873 = vadd.f32 %v1857, %v1613
    %v1874 = vadd.f32 %v1858, %v1616
    %v1875 = vadd.f32 %v1859, %v1619
    %v1892 = vlaneseq
    %v1893 = vand.u32 %v1892, 127
    %v1894 = vlaneseq
    %v1895 = vshrl.u32 %v1894, 7
    %v1896 = vsub.s32 %v1893, %v1895
    %v1897 = vrot.slane %v1668, %v1896
    %v1898 = vadd.s32 %v1893, 4294967288
    %v1899 = vlaneseq
    %v1900 = vshrl.u32 %v1899, 7
    %v1901 = vsub.s32 %v1898, %v1900
    %v1902 = vrot.slane %v1669, %v1901
    %vm1903 = vcmask 130112
    %v1904 = vsel %vm1903, %v1902, %v1897
    %v1905 = vlaneseq
    %v1906 = vshrl.u32 %v1905, 7
    %v1907 = vsub.s32 %v1893, %v1906
    %v1908 = vrot.slane %v1670, %v1907
    %v1909 = vlaneseq
    %v1910 = vshrl.u32 %v1909, 7
    %v1911 = vsub.s32 %v1898, %v1910
    %v1912 = vrot.slane %v1671, %v1911
    %v1913 = vsel %vm1903, %v1912, %v1908
    %v1914 = vlaneseq
    %v1915 = vshrl.u32 %v1914, 7
    %v1916 = vsub.s32 %v1893, %v1915
    %v1917 = vrot.slane %v1672, %v1916
    %v1918 = vlaneseq
    %v1919 = vshrl.u32 %v1918, 7
    %v1920 = vsub.s32 %v1898, %v1919
    %v1921 = vrot.slane %v1673, %v1920
    %v1922 = vsel %vm1903, %v1921, %v1917
    %v1923 = vlaneseq
    %v1924 = vshrl.u32 %v1923, 7
    %v1925 = vsub.s32 %v1893, %v1924
    %v1926 = vrot.slane %v1674, %v1925
    %v1927 = vlaneseq
    %v1928 = vshrl.u32 %v1927, 7
    %v1929 = vsub.s32 %v1898, %v1928
    %v1930 = vrot.slane %v1675, %v1929
    %v1931 = vsel %vm1903, %v1930, %v1926
    %v1932 = vlaneseq
    %v1933 = vshrl.u32 %v1932, 7
    %v1934 = vsub.s32 %v1893, %v1933
    %v1935 = vrot.slane %v1676, %v1934
    %v1936 = vlaneseq
    %v1937 = vshrl.u32 %v1936, 7
    %v1938 = vsub.s32 %v1898, %v1937
    %v1939 = vrot.slane %v1677, %v1938
    %v1940 = vsel %vm1903, %v1939, %v1935
    %v1941 = vlaneseq
    %v1942 = vshrl.u32 %v1941, 7
    %v1943 = vsub.s32 %v1893, %v1942
    %v1944 = vrot.slane %v1678, %v1943
    %v1945 = vlaneseq
    %v1946 = vshrl.u32 %v1945, 7
    %v1947 = vsub.s32 %v1898, %v1946
    %v1948 = vrot.slane %v1679, %v1947
    %v1949 = vsel %vm1903, %v1948, %v1944
    %v1950 = vlaneseq
    %v1951 = vshrl.u32 %v1950, 7
    %v1952 = vsub.s32 %v1893, %v1951
    %v1953 = vrot.slane %v1680, %v1952
    %v1954 = vlaneseq
    %v1955 = vshrl.u32 %v1954, 7
    %v1956 = vsub.s32 %v1898, %v1955
    %v1957 = vrot.slane %v1681, %v1956
    %v1958 = vsel %vm1903, %v1957, %v1953
    %v1959 = vlaneseq
    %v1960 = vshrl.u32 %v1959, 7
    %v1961 = vsub.s32 %v1893, %v1960
    %v1962 = vrot.slane %v1682, %v1961
    %v1963 = vlaneseq
    %v1964 = vshrl.u32 %v1963, 7
    %v1965 = vsub.s32 %v1898, %v1964
    %v1966 = vrot.slane %v1683, %v1965
    %v1967 = vsel %vm1903, %v1966, %v1962
    %vm1968 = vcmask 1041409
    %v1969 = vsel %vm1968, %v1913, %v1904
    %vm1970 = vcmask 1042434
    %v1971 = vsel %vm1970, %v1922, %v1969
    %vm1972 = vcmask 1043459
    %v1973 = vsel %vm1972, %v1931, %v1971
    %vm1974 = vcmask 1044484
    %v1975 = vsel %vm1974, %v1940, %v1973
    %vm1976 = vcmask 1045509
    %v1977 = vsel %vm1976, %v1949, %v1975
    %vm1978 = vcmask 1046534
    %v1979 = vsel %vm1978, %v1958, %v1977
    %vm1980 = vcmask 1047559
    %v1981 = vsel %vm1980, %v1967, %v1979
    %v1999 = vlaneseq
    %v2000 = vshrl.u32 %v1999, 7
    %v2001 = vsub.s32 %v1893, %v2000
    %v2002 = vrot.slane %v1732, %v2001
    %v2003 = vlaneseq
    %v2004 = vshrl.u32 %v2003, 7
    %v2005 = vsub.s32 %v1898, %v2004
    %v2006 = vrot.slane %v1733, %v2005
    %v2007 = vsel %vm1903, %v2006, %v2002
    %v2008 = vlaneseq
    %v2009 = vshrl.u32 %v2008, 7
    %v2010 = vsub.s32 %v1893, %v2009
    %v2011 = vrot.slane %v1734, %v2010
    %v2012 = vlaneseq
    %v2013 = vshrl.u32 %v2012, 7
    %v2014 = vsub.s32 %v1898, %v2013
    %v2015 = vrot.slane %v1735, %v2014
    %v2016 = vsel %vm1903, %v2015, %v2011
    %v2017 = vlaneseq
    %v2018 = vshrl.u32 %v2017, 7
    %v2019 = vsub.s32 %v1893, %v2018
    %v2020 = vrot.slane %v1736, %v2019
    %v2021 = vlaneseq
    %v2022 = vshrl.u32 %v2021, 7
    %v2023 = vsub.s32 %v1898, %v2022
    %v2024 = vrot.slane %v1737, %v2023
    %v2025 = vsel %vm1903, %v2024, %v2020
    %v2026 = vlaneseq
    %v2027 = vshrl.u32 %v2026, 7
    %v2028 = vsub.s32 %v1893, %v2027
    %v2029 = vrot.slane %v1738, %v2028
    %v2030 = vlaneseq
    %v2031 = vshrl.u32 %v2030, 7
    %v2032 = vsub.s32 %v1898, %v2031
    %v2033 = vrot.slane %v1739, %v2032
    %v2034 = vsel %vm1903, %v2033, %v2029
    %v2035 = vlaneseq
    %v2036 = vshrl.u32 %v2035, 7
    %v2037 = vsub.s32 %v1893, %v2036
    %v2038 = vrot.slane %v1740, %v2037
    %v2039 = vlaneseq
    %v2040 = vshrl.u32 %v2039, 7
    %v2041 = vsub.s32 %v1898, %v2040
    %v2042 = vrot.slane %v1741, %v2041
    %v2043 = vsel %vm1903, %v2042, %v2038
    %v2044 = vlaneseq
    %v2045 = vshrl.u32 %v2044, 7
    %v2046 = vsub.s32 %v1893, %v2045
    %v2047 = vrot.slane %v1742, %v2046
    %v2048 = vlaneseq
    %v2049 = vshrl.u32 %v2048, 7
    %v2050 = vsub.s32 %v1898, %v2049
    %v2051 = vrot.slane %v1743, %v2050
    %v2052 = vsel %vm1903, %v2051, %v2047
    %v2053 = vlaneseq
    %v2054 = vshrl.u32 %v2053, 7
    %v2055 = vsub.s32 %v1893, %v2054
    %v2056 = vrot.slane %v1744, %v2055
    %v2057 = vlaneseq
    %v2058 = vshrl.u32 %v2057, 7
    %v2059 = vsub.s32 %v1898, %v2058
    %v2060 = vrot.slane %v1745, %v2059
    %v2061 = vsel %vm1903, %v2060, %v2056
    %v2062 = vlaneseq
    %v2063 = vshrl.u32 %v2062, 7
    %v2064 = vsub.s32 %v1893, %v2063
    %v2065 = vrot.slane %v1746, %v2064
    %v2066 = vlaneseq
    %v2067 = vshrl.u32 %v2066, 7
    %v2068 = vsub.s32 %v1898, %v2067
    %v2069 = vrot.slane %v1747, %v2068
    %v2070 = vsel %vm1903, %v2069, %v2065
    %v2071 = vsel %vm1968, %v2016, %v2007
    %v2072 = vsel %vm1970, %v2025, %v2071
    %v2073 = vsel %vm1972, %v2034, %v2072
    %v2074 = vsel %vm1974, %v2043, %v2073
    %v2075 = vsel %vm1976, %v2052, %v2074
    %v2076 = vsel %vm1978, %v2061, %v2075
    %v2077 = vsel %vm1980, %v2070, %v2076
    %v2095 = vlaneseq
    %v2096 = vshrl.u32 %v2095, 7
    %v2097 = vsub.s32 %v1893, %v2096
    %v2098 = vrot.slane %v1796, %v2097
    %v2099 = vlaneseq
    %v2100 = vshrl.u32 %v2099, 7
    %v2101 = vsub.s32 %v1898, %v2100
    %v2102 = vrot.slane %v1797, %v2101
    %v2103 = vsel %vm1903, %v2102, %v2098
    %v2104 = vlaneseq
    %v2105 = vshrl.u32 %v2104, 7
    %v2106 = vsub.s32 %v1893, %v2105
    %v2107 = vrot.slane %v1798, %v2106
    %v2108 = vlaneseq
    %v2109 = vshrl.u32 %v2108, 7
    %v2110 = vsub.s32 %v1898, %v2109
    %v2111 = vrot.slane %v1799, %v2110
    %v2112 = vsel %vm1903, %v2111, %v2107
    %v2113 = vlaneseq
    %v2114 = vshrl.u32 %v2113, 7
    %v2115 = vsub.s32 %v1893, %v2114
    %v2116 = vrot.slane %v1800, %v2115
    %v2117 = vlaneseq
    %v2118 = vshrl.u32 %v2117, 7
    %v2119 = vsub.s32 %v1898, %v2118
    %v2120 = vrot.slane %v1801, %v2119
    %v2121 = vsel %vm1903, %v2120, %v2116
    %v2122 = vlaneseq
    %v2123 = vshrl.u32 %v2122, 7
    %v2124 = vsub.s32 %v1893, %v2123
    %v2125 = vrot.slane %v1802, %v2124
    %v2126 = vlaneseq
    %v2127 = vshrl.u32 %v2126, 7
    %v2128 = vsub.s32 %v1898, %v2127
    %v2129 = vrot.slane %v1803, %v2128
    %v2130 = vsel %vm1903, %v2129, %v2125
    %v2131 = vlaneseq
    %v2132 = vshrl.u32 %v2131, 7
    %v2133 = vsub.s32 %v1893, %v2132
    %v2134 = vrot.slane %v1804, %v2133
    %v2135 = vlaneseq
    %v2136 = vshrl.u32 %v2135, 7
    %v2137 = vsub.s32 %v1898, %v2136
    %v2138 = vrot.slane %v1805, %v2137
    %v2139 = vsel %vm1903, %v2138, %v2134
    %v2140 = vlaneseq
    %v2141 = vshrl.u32 %v2140, 7
    %v2142 = vsub.s32 %v1893, %v2141
    %v2143 = vrot.slane %v1806, %v2142
    %v2144 = vlaneseq
    %v2145 = vshrl.u32 %v2144, 7
    %v2146 = vsub.s32 %v1898, %v2145
    %v2147 = vrot.slane %v1807, %v2146
    %v2148 = vsel %vm1903, %v2147, %v2143
    %v2149 = vlaneseq
    %v2150 = vshrl.u32 %v2149, 7
    %v2151 = vsub.s32 %v1893, %v2150
    %v2152 = vrot.slane %v1808, %v2151
    %v2153 = vlaneseq
    %v2154 = vshrl.u32 %v2153, 7
    %v2155 = vsub.s32 %v1898, %v2154
    %v2156 = vrot.slane %v1809, %v2155
    %v2157 = vsel %vm1903, %v2156, %v2152
    %v2158 = vlaneseq
    %v2159 = vshrl.u32 %v2158, 7
    %v2160 = vsub.s32 %v1893, %v2159
    %v2161 = vrot.slane %v1810, %v2160
    %v2162 = vlaneseq
    %v2163 = vshrl.u32 %v2162, 7
    %v2164 = vsub.s32 %v1898, %v2163
    %v2165 = vrot.slane %v1811, %v2164
    %v2166 = vsel %vm1903, %v2165, %v2161
    %v2167 = vsel %vm1968, %v2112, %v2103
    %v2168 = vsel %vm1970, %v2121, %v2167
    %v2169 = vsel %vm1972, %v2130, %v2168
    %v2170 = vsel %vm1974, %v2139, %v2169
    %v2171 = vsel %vm1976, %v2148, %v2170
    %v2172 = vsel %vm1978, %v2157, %v2171
    %v2173 = vsel %vm1980, %v2166, %v2172
    %v2191 = vlaneseq
    %v2192 = vshrl.u32 %v2191, 7
    %v2193 = vsub.s32 %v1893, %v2192
    %v2194 = vrot.slane %v1860, %v2193
    %v2195 = vlaneseq
    %v2196 = vshrl.u32 %v2195, 7
    %v2197 = vsub.s32 %v1898, %v2196
    %v2198 = vrot.slane %v1861, %v2197
    %v2199 = vsel %vm1903, %v2198, %v2194
    %v2200 = vlaneseq
    %v2201 = vshrl.u32 %v2200, 7
    %v2202 = vsub.s32 %v1893, %v2201
    %v2203 = vrot.slane %v1862, %v2202
    %v2204 = vlaneseq
    %v2205 = vshrl.u32 %v2204, 7
    %v2206 = vsub.s32 %v1898, %v2205
    %v2207 = vrot.slane %v1863, %v2206
    %v2208 = vsel %vm1903, %v2207, %v2203
    %v2209 = vlaneseq
    %v2210 = vshrl.u32 %v2209, 7
    %v2211 = vsub.s32 %v1893, %v2210
    %v2212 = vrot.slane %v1864, %v2211
    %v2213 = vlaneseq
    %v2214 = vshrl.u32 %v2213, 7
    %v2215 = vsub.s32 %v1898, %v2214
    %v2216 = vrot.slane %v1865, %v2215
    %v2217 = vsel %vm1903, %v2216, %v2212
    %v2218 = vlaneseq
    %v2219 = vshrl.u32 %v2218, 7
    %v2220 = vsub.s32 %v1893, %v2219
    %v2221 = vrot.slane %v1866, %v2220
    %v2222 = vlaneseq
    %v2223 = vshrl.u32 %v2222, 7
    %v2224 = vsub.s32 %v1898, %v2223
    %v2225 = vrot.slane %v1867, %v2224
    %v2226 = vsel %vm1903, %v2225, %v2221
    %v2227 = vlaneseq
    %v2228 = vshrl.u32 %v2227, 7
    %v2229 = vsub.s32 %v1893, %v2228
    %v2230 = vrot.slane %v1868, %v2229
    %v2231 = vlaneseq
    %v2232 = vshrl.u32 %v2231, 7
    %v2233 = vsub.s32 %v1898, %v2232
    %v2234 = vrot.slane %v1869, %v2233
    %v2235 = vsel %vm1903, %v2234, %v2230
    %v2236 = vlaneseq
    %v2237 = vshrl.u32 %v2236, 7
    %v2238 = vsub.s32 %v1893, %v2237
    %v2239 = vrot.slane %v1870, %v2238
    %v2240 = vlaneseq
    %v2241 = vshrl.u32 %v2240, 7
    %v2242 = vsub.s32 %v1898, %v2241
    %v2243 = vrot.slane %v1871, %v2242
    %v2244 = vsel %vm1903, %v2243, %v2239
    %v2245 = vlaneseq
    %v2246 = vshrl.u32 %v2245, 7
    %v2247 = vsub.s32 %v1893, %v2246
    %v2248 = vrot.slane %v1872, %v2247
    %v2249 = vlaneseq
    %v2250 = vshrl.u32 %v2249, 7
    %v2251 = vsub.s32 %v1898, %v2250
    %v2252 = vrot.slane %v1873, %v2251
    %v2253 = vsel %vm1903, %v2252, %v2248
    %v2254 = vlaneseq
    %v2255 = vshrl.u32 %v2254, 7
    %v2256 = vsub.s32 %v1893, %v2255
    %v2257 = vrot.slane %v1874, %v2256
    %v2258 = vlaneseq
    %v2259 = vshrl.u32 %v2258, 7
    %v2260 = vsub.s32 %v1898, %v2259
    %v2261 = vrot.slane %v1875, %v2260
    %v2262 = vsel %vm1903, %v2261, %v2257
    %v2263 = vsel %vm1968, %v2208, %v2199
    %v2264 = vsel %vm1970, %v2217, %v2263
    %v2265 = vsel %vm1972, %v2226, %v2264
    %v2266 = vsel %vm1974, %v2235, %v2265
    %v2267 = vsel %vm1976, %v2244, %v2266
    %v2268 = vsel %vm1978, %v2253, %v2267
    %v2269 = vsel %vm1980, %v2262, %v2268
    %v2271 = vpack.c.bf16 %v2077, %v1981
    %v2272 = vpack.c.bf16 %v2269, %v2173
    %v2273 = vld [vmem:[#allocation5] sm:$0xf]
    %v2274 = vld [vmem:[#allocation5 + $0x4] sm:$0xf]
    %v2275 = vld [vmem:[%s2] sm:$0x1]
    %v2277 = vlaneseq
    %v2278 = vshrl.u32 %v2277, 7
    %v2279 = vsub.s32 0, %v2278
    %v2280 = vrot.slane %v2275, %v2279
    %v2284 = vunpack.c.l.b16 %v2273
    %v2285 = vunpack.c.l.b16 %v2274
    %v2286 = vpack.c.b16 %v2285, %v2284
    %vm2288 = vcmask 130048
    %v2290 = vsel %vm2288, %v2271, 0
    %v2293 = vsel %vm2288, %v2272, 0
    %2295 = vmatprep.subr.bf16.mxu0 0
    %2296 = vmatpush1.bf16.msra.mxu0 %v2286
    %2297 = vmatprep.subr.bf16.mxu0 0
    %2298 = vmatpush1.bf16.msra.mxu0 0
    %2299 = vmatprep.subr.bf16.mxu0 0
    %2300 = vmatpush1.bf16.msra.mxu0 0
    %2301 = vmatprep.subr.bf16.mxu0 0
    %2302 = vmatpush1.bf16.msra.mxu0 0
    %2303 = vmatprep.subr.bf16.mxu0 0
    %2304 = vmatpush1.bf16.msra.mxu0 0
    %2305 = vmatprep.subr.bf16.mxu0 0
    %2306 = vmatpush1.bf16.msra.mxu0 0
    %2307 = vmatprep.subr.bf16.mxu0 0
    %2308 = vmatpush1.bf16.msra.mxu0 0
    %2309 = vmatprep.subr.bf16.mxu0 0
    %2310 = vmatpush1.bf16.msra.mxu0 0
    %2311 = vmatprep.subr.bf16.mxu0 0
    %2312 = vmatpush1.bf16.msra.mxu0 0
    %2313 = vmatprep.subr.bf16.mxu0 0
    %2314 = vmatpush1.bf16.msra.mxu0 0
    %2315 = vmatprep.subr.bf16.mxu0 0
    %2316 = vmatpush1.bf16.msra.mxu0 0
    %2317 = vmatprep.subr.bf16.mxu0 0
    %2318 = vmatpush1.bf16.msra.mxu0 0
    %2319 = vmatprep.subr.bf16.mxu0 0
    %2320 = vmatpush1.bf16.msra.mxu0 0
    %2321 = vmatprep.subr.bf16.mxu0 0
    %2322 = vmatpush1.bf16.msra.mxu0 0
    %2323 = vmatprep.subr.bf16.mxu0 0
    %2324 = vmatpush1.bf16.msra.mxu0 0
    %2325 = vmatprep.subr.bf16.mxu0 0
    %2326 = vmatpush1.bf16.msra.mxu0 0
    %2327 = vmatprep.mubr.bf16.mxu0 0
    %2328 = vmatmul.mubr.bf16.gmra.mrb[0].mxu0 %v2290
    %v2329 = vpop.f32.mrb[0].mxu0
    %v2330 = vadd.f32 %v2280, %v2329
    %v2331 = vpop.f32.mrb[0].mxu0
    %v2332 = vpop.f32.mrb[0].mxu0
    %v2333 = vadd.f32 %v2280, %v2332
    %v2334 = vpop.f32.mrb[0].mxu0
    %2335 = vmatprep.mubr.bf16.mxu0 0
    %2336 = vmatmul.mubr.bf16.gmra.mrb[0].mxu0 %v2293
    %v2337 = vpop.f32.mrb[0].mxu0
    %v2338 = vadd.f32 %v2280, %v2337
    %v2339 = vpop.f32.mrb[0].mxu0
    %v2340 = vpop.f32.mrb[0].mxu0
    %v2341 = vadd.f32 %v2280, %v2340
    %v2342 = vpop.f32.mrb[0].mxu0
    %2343 = vdwg.mxu0
    %v2344 = vmax.f32 %v2330, 0.0
    %v2345 = vmax.f32 %v2333, 0.0
    %v2346 = vmax.f32 %v2338, 0.0
    %v2347 = vmax.f32 %v2341, 0.0
    %v2348 = vpack.c.bf16 %v2344, %v2344
    %v2349 = vpack.c.bf16 %v2345, %v2345
    %v2350 = vpack.c.bf16 %v2346, %v2346
    %v2351 = vpack.c.bf16 %v2347, %v2347
    %v2352 = vld [vmem:[#allocation7] sm:$0xff]
    %v2353 = vld [vmem:[#allocation7 + $0x8] sm:$0xff]
    %v2354 = vld [vmem:[#allocation7 + $0x10] sm:$0xff]
    %v2355 = vld [vmem:[#allocation7 + $0x18] sm:$0xff]
    %v2356 = vld [vmem:[#allocation7 + $0x20] sm:$0xff]
    %v2357 = vld [vmem:[#allocation7 + $0x28] sm:$0xff]
    %v2358 = vld [vmem:[#allocation7 + $0x30] sm:$0xff]
    %v2359 = vld [vmem:[#allocation7 + $0x38] sm:$0xff]
    %v2360 = vld [vmem:[#allocation7 + $0x40] sm:$0xff]
    %v2361 = vld [vmem:[#allocation7 + $0x48] sm:$0xff]
    %v2362 = vld [vmem:[#allocation7 + $0x50] sm:$0xff]
    %v2363 = vld [vmem:[#allocation7 + $0x58] sm:$0xff]
    %v2364 = vld [vmem:[#allocation7 + $0x60] sm:$0xff]
    %v2365 = vld [vmem:[#allocation7 + $0x68] sm:$0xff]
    %v2366 = vld [vmem:[#allocation7 + $0x70] sm:$0xff]
    %v2367 = vld [vmem:[#allocation7 + $0x78] sm:$0xff]
    %v2368 = vld [vmem:[#allocation7 + $0x80] sm:$0xff]
    %v2369 = vld [vmem:[#allocation7 + $0x88] sm:$0xff]
    %v2370 = vld [vmem:[#allocation7 + $0x90] sm:$0xff]
    %v2371 = vld [vmem:[#allocation7 + $0x98] sm:$0xff]
    %v2372 = vld [vmem:[#allocation7 + $0xa0] sm:$0xff]
    %v2373 = vld [vmem:[#allocation7 + $0xa8] sm:$0xff]
    %v2374 = vld [vmem:[#allocation7 + $0xb0] sm:$0xff]
    %v2375 = vld [vmem:[#allocation7 + $0xb8] sm:$0xff]
    %v2376 = vld [vmem:[#allocation7 + $0xc0] sm:$0xff]
    %v2377 = vld [vmem:[#allocation7 + $0xc8] sm:$0xff]
    %v2378 = vld [vmem:[#allocation7 + $0xd0] sm:$0xff]
    %v2379 = vld [vmem:[#allocation7 + $0xd8] sm:$0xff]
    %v2380 = vld [vmem:[#allocation7 + $0xe0] sm:$0xff]
    %v2381 = vld [vmem:[#allocation7 + $0xe8] sm:$0xff]
    %v2382 = vld [vmem:[#allocation7 + $0xf0] sm:$0xff]
    %v2383 = vld [vmem:[#allocation7 + $0xf8] sm:$0xff]
    %v2384 = vld [vmem:[#allocation7 + $0x100] sm:$0xff]
    %v2385 = vld [vmem:[#allocation7 + $0x108] sm:$0xff]
    %v2386 = vld [vmem:[#allocation7 + $0x110] sm:$0xff]
    %v2387 = vld [vmem:[#allocation7 + $0x118] sm:$0xff]
    %v2388 = vld [vmem:[#allocation7 + $0x120] sm:$0xff]
    %v2389 = vld [vmem:[#allocation7 + $0x128] sm:$0xff]
    %v2390 = vld [vmem:[#allocation7 + $0x130] sm:$0xff]
    %v2391 = vld [vmem:[#allocation7 + $0x138] sm:$0xff]
    %v2392 = vld [vmem:[#allocation7 + $0x140] sm:$0xff]
    %v2393 = vld [vmem:[#allocation7 + $0x148] sm:$0xff]
    %v2394 = vld [vmem:[#allocation7 + $0x150] sm:$0xff]
    %v2395 = vld [vmem:[#allocation7 + $0x158] sm:$0xff]
    %v2396 = vld [vmem:[#allocation7 + $0x160] sm:$0xff]
    %v2397 = vld [vmem:[#allocation7 + $0x168] sm:$0xff]
    %v2398 = vld [vmem:[#allocation7 + $0x170] sm:$0xff]
    %v2399 = vld [vmem:[#allocation7 + $0x178] sm:$0xff]
    %v2400 = vld [vmem:[#allocation7 + $0x180] sm:$0xff]
    %v2401 = vld [vmem:[#allocation7 + $0x188] sm:$0xff]
    %v2402 = vld [vmem:[#allocation7 + $0x190] sm:$0xff]
    %v2403 = vld [vmem:[#allocation7 + $0x198] sm:$0xff]
    %v2404 = vld [vmem:[#allocation7 + $0x1a0] sm:$0xff]
    %v2405 = vld [vmem:[#allocation7 + $0x1a8] sm:$0xff]
    %v2406 = vld [vmem:[#allocation7 + $0x1b0] sm:$0xff]
    %v2407 = vld [vmem:[#allocation7 + $0x1b8] sm:$0xff]
    %v2408 = vld [vmem:[#allocation7 + $0x1c0] sm:$0xff]
    %v2409 = vld [vmem:[#allocation7 + $0x1c8] sm:$0xff]
    %v2410 = vld [vmem:[#allocation7 + $0x1d0] sm:$0xff]
    %v2411 = vld [vmem:[#allocation7 + $0x1d8] sm:$0xff]
    %v2412 = vld [vmem:[#allocation7 + $0x1e0] sm:$0xff]
    %v2413 = vld [vmem:[#allocation7 + $0x1e8] sm:$0xff]
    %v2414 = vld [vmem:[#allocation7 + $0x1f0] sm:$0xff]
    %v2415 = vld [vmem:[#allocation7 + $0x1f8] sm:$0xff]
    %v2416 = vld [vmem:[#allocation7 + $0x200] sm:$0xff]
    %v2417 = vld [vmem:[#allocation7 + $0x208] sm:$0xff]
    %v2418 = vld [vmem:[#allocation7 + $0x210] sm:$0xff]
    %v2419 = vld [vmem:[#allocation7 + $0x218] sm:$0xff]
    %v2420 = vld [vmem:[#allocation7 + $0x220] sm:$0xff]
    %v2421 = vld [vmem:[#allocation7 + $0x228] sm:$0xff]
    %v2422 = vld [vmem:[#allocation7 + $0x230] sm:$0xff]
    %v2423 = vld [vmem:[#allocation7 + $0x238] sm:$0xff]
    %v2424 = vld [vmem:[#allocation7 + $0x240] sm:$0xff]
    %v2425 = vld [vmem:[#allocation7 + $0x248] sm:$0xff]
    %v2426 = vld [vmem:[#allocation7 + $0x250] sm:$0xff]
    %v2427 = vld [vmem:[#allocation7 + $0x258] sm:$0xff]
    %v2428 = vld [vmem:[#allocation7 + $0x260] sm:$0xff]
    %v2429 = vld [vmem:[#allocation7 + $0x268] sm:$0xff]
    %v2430 = vld [vmem:[#allocation7 + $0x270] sm:$0xff]
    %v2431 = vld [vmem:[#allocation7 + $0x278] sm:$0xff]
    %v2432 = vld [vmem:[#allocation7 + $0x280] sm:$0xff]
    %v2433 = vld [vmem:[#allocation7 + $0x288] sm:$0xff]
    %v2434 = vld [vmem:[#allocation7 + $0x290] sm:$0xff]
    %v2435 = vld [vmem:[#allocation7 + $0x298] sm:$0xff]
    %v2436 = vld [vmem:[#allocation7 + $0x2a0] sm:$0xff]
    %v2437 = vld [vmem:[#allocation7 + $0x2a8] sm:$0xff]
    %v2438 = vld [vmem:[#allocation7 + $0x2b0] sm:$0xff]
    %v2439 = vld [vmem:[#allocation7 + $0x2b8] sm:$0xff]
    %v2440 = vld [vmem:[#allocation7 + $0x2c0] sm:$0xff]
    %v2441 = vld [vmem:[#allocation7 + $0x2c8] sm:$0xff]
    %v2442 = vld [vmem:[#allocation7 + $0x2d0] sm:$0xff]
    %v2443 = vld [vmem:[#allocation7 + $0x2d8] sm:$0xff]
    %v2444 = vld [vmem:[#allocation7 + $0x2e0] sm:$0xff]
    %v2445 = vld [vmem:[#allocation7 + $0x2e8] sm:$0xff]
    %v2446 = vld [vmem:[#allocation7 + $0x2f0] sm:$0xff]
    %v2447 = vld [vmem:[#allocation7 + $0x2f8] sm:$0xff]
    %v2448 = vld [vmem:[#allocation7 + $0x300] sm:$0xff]
    %v2449 = vld [vmem:[#allocation7 + $0x308] sm:$0xff]
    %v2450 = vld [vmem:[#allocation7 + $0x310] sm:$0xff]
    %v2451 = vld [vmem:[#allocation7 + $0x318] sm:$0xff]
    %v2452 = vld [vmem:[#allocation7 + $0x320] sm:$0xff]
    %v2453 = vld [vmem:[#allocation7 + $0x328] sm:$0xff]
    %v2454 = vld [vmem:[#allocation7 + $0x330] sm:$0xff]
    %v2455 = vld [vmem:[#allocation7 + $0x338] sm:$0xff]
    %v2456 = vld [vmem:[#allocation7 + $0x340] sm:$0xff]
    %v2457 = vld [vmem:[#allocation7 + $0x348] sm:$0xff]
    %v2458 = vld [vmem:[#allocation7 + $0x350] sm:$0xff]
    %v2459 = vld [vmem:[#allocation7 + $0x358] sm:$0xff]
    %v2460 = vld [vmem:[#allocation7 + $0x360] sm:$0xff]
    %v2461 = vld [vmem:[#allocation7 + $0x368] sm:$0xff]
    %v2462 = vld [vmem:[#allocation7 + $0x370] sm:$0xff]
    %v2463 = vld [vmem:[#allocation7 + $0x378] sm:$0xff]
    %v2464 = vld [vmem:[#allocation7 + $0x380] sm:$0xff]
    %v2465 = vld [vmem:[#allocation7 + $0x388] sm:$0xff]
    %v2466 = vld [vmem:[#allocation7 + $0x390] sm:$0xff]
    %v2467 = vld [vmem:[#allocation7 + $0x398] sm:$0xff]
    %v2468 = vld [vmem:[#allocation7 + $0x3a0] sm:$0xff]
    %v2469 = vld [vmem:[#allocation7 + $0x3a8] sm:$0xff]
    %v2470 = vld [vmem:[#allocation7 + $0x3b0] sm:$0xff]
    %v2471 = vld [vmem:[#allocation7 + $0x3b8] sm:$0xff]
    %v2472 = vld [vmem:[#allocation7 + $0x3c0] sm:$0xff]
    %v2473 = vld [vmem:[#allocation7 + $0x3c8] sm:$0xff]
    %v2474 = vld [vmem:[#allocation7 + $0x3d0] sm:$0xff]
    %v2475 = vld [vmem:[#allocation7 + $0x3d8] sm:$0xff]
    %v2476 = vld [vmem:[#allocation7 + $0x3e0] sm:$0xff]
    %v2477 = vld [vmem:[#allocation7 + $0x3e8] sm:$0xff]
    %v2478 = vld [vmem:[#allocation7 + $0x3f0] sm:$0xff]
    %v2479 = vld [vmem:[#allocation7 + $0x3f8] sm:$0xff]
    %v2480 = vld [vmem:[#allocation7 + $0x400] sm:$0xff]
    %v2481 = vld [vmem:[#allocation7 + $0x408] sm:$0xff]
    %v2482 = vld [vmem:[#allocation7 + $0x410] sm:$0xff]
    %v2483 = vld [vmem:[#allocation7 + $0x418] sm:$0xff]
    %v2484 = vld [vmem:[#allocation7 + $0x420] sm:$0xff]
    %v2485 = vld [vmem:[#allocation7 + $0x428] sm:$0xff]
    %v2486 = vld [vmem:[#allocation7 + $0x430] sm:$0xff]
    %v2487 = vld [vmem:[#allocation7 + $0x438] sm:$0xff]
    %v2488 = vld [vmem:[#allocation7 + $0x440] sm:$0xff]
    %v2489 = vld [vmem:[#allocation7 + $0x448] sm:$0xff]
    %v2490 = vld [vmem:[#allocation7 + $0x450] sm:$0xff]
    %v2491 = vld [vmem:[#allocation7 + $0x458] sm:$0xff]
    %v2492 = vld [vmem:[#allocation7 + $0x460] sm:$0xff]
    %v2493 = vld [vmem:[#allocation7 + $0x468] sm:$0xff]
    %v2494 = vld [vmem:[#allocation7 + $0x470] sm:$0xff]
    %v2495 = vld [vmem:[#allocation7 + $0x478] sm:$0xff]
    %v2496 = vld [vmem:[#allocation7 + $0x480] sm:$0xff]
    %v2497 = vld [vmem:[#allocation7 + $0x488] sm:$0xff]
    %v2498 = vld [vmem:[#allocation7 + $0x490] sm:$0xff]
    %v2499 = vld [vmem:[#allocation7 + $0x498] sm:$0xff]
    %v2500 = vld [vmem:[#allocation7 + $0x4a0] sm:$0xff]
    %v2501 = vld [vmem:[#allocation7 + $0x4a8] sm:$0xff]
    %v2502 = vld [vmem:[#allocation7 + $0x4b0] sm:$0xff]
    %v2503 = vld [vmem:[#allocation7 + $0x4b8] sm:$0xff]
    %v2504 = vld [vmem:[#allocation7 + $0x4c0] sm:$0xff]
    %v2505 = vld [vmem:[#allocation7 + $0x4c8] sm:$0xff]
    %v2506 = vld [vmem:[#allocation7 + $0x4d0] sm:$0xff]
    %v2507 = vld [vmem:[#allocation7 + $0x4d8] sm:$0xff]
    %v2508 = vld [vmem:[#allocation7 + $0x4e0] sm:$0xff]
    %v2509 = vld [vmem:[#allocation7 + $0x4e8] sm:$0xff]
    %v2510 = vld [vmem:[#allocation7 + $0x4f0] sm:$0xff]
    %v2511 = vld [vmem:[#allocation7 + $0x4f8] sm:$0xff]
    %v2512 = vld [vmem:[#allocation7 + $0x500] sm:$0xff]
    %v2513 = vld [vmem:[#allocation7 + $0x508] sm:$0xff]
    %v2514 = vld [vmem:[#allocation7 + $0x510] sm:$0xff]
    %v2515 = vld [vmem:[#allocation7 + $0x518] sm:$0xff]
    %v2516 = vld [vmem:[#allocation7 + $0x520] sm:$0xff]
    %v2517 = vld [vmem:[#allocation7 + $0x528] sm:$0xff]
    %v2518 = vld [vmem:[#allocation7 + $0x530] sm:$0xff]
    %v2519 = vld [vmem:[#allocation7 + $0x538] sm:$0xff]
    %v2520 = vld [vmem:[#allocation7 + $0x540] sm:$0xff]
    %v2521 = vld [vmem:[#allocation7 + $0x548] sm:$0xff]
    %v2522 = vld [vmem:[#allocation7 + $0x550] sm:$0xff]
    %v2523 = vld [vmem:[#allocation7 + $0x558] sm:$0xff]
    %v2524 = vld [vmem:[#allocation7 + $0x560] sm:$0xff]
    %v2525 = vld [vmem:[#allocation7 + $0x568] sm:$0xff]
    %v2526 = vld [vmem:[#allocation7 + $0x570] sm:$0xff]
    %v2527 = vld [vmem:[#allocation7 + $0x578] sm:$0xff]
    %v2528 = vld [vmem:[#allocation7 + $0x580] sm:$0xff]
    %v2529 = vld [vmem:[#allocation7 + $0x588] sm:$0xff]
    %v2530 = vld [vmem:[#allocation7 + $0x590] sm:$0xff]
    %v2531 = vld [vmem:[#allocation7 + $0x598] sm:$0xff]
    %v2532 = vld [vmem:[#allocation7 + $0x5a0] sm:$0xff]
    %v2533 = vld [vmem:[#allocation7 + $0x5a8] sm:$0xff]
    %v2534 = vld [vmem:[#allocation7 + $0x5b0] sm:$0xff]
    %v2535 = vld [vmem:[#allocation7 + $0x5b8] sm:$0xff]
    %v2536 = vld [vmem:[#allocation7 + $0x5c0] sm:$0xff]
    %v2537 = vld [vmem:[#allocation7 + $0x5c8] sm:$0xff]
    %v2538 = vld [vmem:[#allocation7 + $0x5d0] sm:$0xff]
    %v2539 = vld [vmem:[#allocation7 + $0x5d8] sm:$0xff]
    %v2540 = vld [vmem:[#allocation7 + $0x5e0] sm:$0xff]
    %v2541 = vld [vmem:[#allocation7 + $0x5e8] sm:$0xff]
    %v2542 = vld [vmem:[#allocation7 + $0x5f0] sm:$0xff]
    %v2543 = vld [vmem:[#allocation7 + $0x5f8] sm:$0xff]
    %v2544 = vld [vmem:[%s4] sm:$0x3f]
    %v2546 = vlaneseq
    %v2547 = vshrl.u32 %v2546, 7
    %v2548 = vsub.s32 0, %v2547
    %v2549 = vrot.slane %v2544, %v2548
    %v2550 = vlaneseq
    %v2551 = vshrl.u32 %v2550, 7
    %v2552 = vsub.s32 1, %v2551
    %v2553 = vrot.slane %v2544, %v2552
    %v2554 = vlaneseq
    %v2555 = vshrl.u32 %v2554, 7
    %v2556 = vsub.s32 2, %v2555
    %v2557 = vrot.slane %v2544, %v2556
    %v2558 = vlaneseq
    %v2559 = vshrl.u32 %v2558, 7
    %v2560 = vsub.s32 3, %v2559
    %v2561 = vrot.slane %v2544, %v2560
    %v2562 = vlaneseq
    %v2563 = vshrl.u32 %v2562, 7
    %v2564 = vsub.s32 4, %v2563
    %v2565 = vrot.slane %v2544, %v2564
    %v2566 = vlaneseq
    %v2567 = vshrl.u32 %v2566, 7
    %v2568 = vsub.s32 5, %v2567
    %v2569 = vrot.slane %v2544, %v2568
    %v2768 = vunpack.c.l.b16 %v2352
    %v2769 = vunpack.c.h.b16 %v2352
    %v2770 = vunpack.c.l.b16 %v2353
    %v2771 = vunpack.c.h.b16 %v2353
    %v2772 = vunpack.c.l.b16 %v2354
    %v2773 = vunpack.c.h.b16 %v2354
    %v2774 = vunpack.c.l.b16 %v2355
    %v2775 = vunpack.c.h.b16 %v2355
    %v2776 = vunpack.c.l.b16 %v2356
    %v2777 = vunpack.c.h.b16 %v2356
    %v2778 = vunpack.c.l.b16 %v2357
    %v2779 = vunpack.c.h.b16 %v2357
    %v2780 = vunpack.c.l.b16 %v2358
    %v2781 = vunpack.c.h.b16 %v2358
    %v2782 = vunpack.c.l.b16 %v2359
    %v2783 = vunpack.c.h.b16 %v2359
    %v2784 = vunpack.c.l.b16 %v2360
    %v2785 = vunpack.c.h.b16 %v2360
    %v2786 = vunpack.c.l.b16 %v2361
    %v2787 = vunpack.c.h.b16 %v2361
    %v2788 = vunpack.c.l.b16 %v2362
    %v2789 = vunpack.c.h.b16 %v2362
    %v2790 = vunpack.c.l.b16 %v2363
    %v2791 = vunpack.c.h.b16 %v2363
    %v2792 = vunpack.c.l.b16 %v2364
    %v2793 = vunpack.c.h.b16 %v2364
    %v2794 = vunpack.c.l.b16 %v2365
    %v2795 = vunpack.c.h.b16 %v2365
    %v2796 = vunpack.c.l.b16 %v2366
    %v2797 = vunpack.c.h.b16 %v2366
    %v2798 = vunpack.c.l.b16 %v2367
    %v2799 = vunpack.c.h.b16 %v2367
    %v2800 = vunpack.c.l.b16 %v2368
    %v2801 = vunpack.c.h.b16 %v2368
    %v2802 = vunpack.c.l.b16 %v2369
    %v2803 = vunpack.c.h.b16 %v2369
    %v2804 = vunpack.c.l.b16 %v2370
    %v2805 = vunpack.c.h.b16 %v2370
    %v2806 = vunpack.c.l.b16 %v2371
    %v2807 = vunpack.c.h.b16 %v2371
    %v2808 = vunpack.c.l.b16 %v2372
    %v2809 = vunpack.c.h.b16 %v2372
    %v2810 = vunpack.c.l.b16 %v2373
    %v2811 = vunpack.c.h.b16 %v2373
    %v2812 = vunpack.c.l.b16 %v2374
    %v2813 = vunpack.c.h.b16 %v2374
    %v2814 = vunpack.c.l.b16 %v2375
    %v2815 = vunpack.c.h.b16 %v2375
    %v2816 = vunpack.c.l.b16 %v2376
    %v2817 = vunpack.c.h.b16 %v2376
    %v2818 = vunpack.c.l.b16 %v2377
    %v2819 = vunpack.c.h.b16 %v2377
    %v2820 = vunpack.c.l.b16 %v2378
    %v2821 = vunpack.c.h.b16 %v2378
    %v2822 = vunpack.c.l.b16 %v2379
    %v2823 = vunpack.c.h.b16 %v2379
    %v2824 = vunpack.c.l.b16 %v2380
    %v2825 = vunpack.c.h.b16 %v2380
    %v2826 = vunpack.c.l.b16 %v2381
    %v2827 = vunpack.c.h.b16 %v2381
    %v2828 = vunpack.c.l.b16 %v2382
    %v2829 = vunpack.c.h.b16 %v2382
    %v2830 = vunpack.c.l.b16 %v2383
    %v2831 = vunpack.c.h.b16 %v2383
    %v2832 = vunpack.c.l.b16 %v2384
    %v2833 = vunpack.c.h.b16 %v2384
    %v2834 = vunpack.c.l.b16 %v2385
    %v2835 = vunpack.c.h.b16 %v2385
    %v2836 = vunpack.c.l.b16 %v2386
    %v2837 = vunpack.c.h.b16 %v2386
    %v2838 = vunpack.c.l.b16 %v2387
    %v2839 = vunpack.c.h.b16 %v2387
    %v2840 = vunpack.c.l.b16 %v2388
    %v2841 = vunpack.c.h.b16 %v2388
    %v2842 = vunpack.c.l.b16 %v2389
    %v2843 = vunpack.c.h.b16 %v2389
    %v2844 = vunpack.c.l.b16 %v2390
    %v2845 = vunpack.c.h.b16 %v2390
    %v2846 = vunpack.c.l.b16 %v2391
    %v2847 = vunpack.c.h.b16 %v2391
    %v2848 = vunpack.c.l.b16 %v2392
    %v2849 = vunpack.c.h.b16 %v2392
    %v2850 = vunpack.c.l.b16 %v2393
    %v2851 = vunpack.c.h.b16 %v2393
    %v2852 = vunpack.c.l.b16 %v2394
    %v2853 = vunpack.c.h.b16 %v2394
    %v2854 = vunpack.c.l.b16 %v2395
    %v2855 = vunpack.c.h.b16 %v2395
    %v2856 = vunpack.c.l.b16 %v2396
    %v2857 = vunpack.c.h.b16 %v2396
    %v2858 = vunpack.c.l.b16 %v2397
    %v2859 = vunpack.c.h.b16 %v2397
    %v2860 = vunpack.c.l.b16 %v2398
    %v2861 = vunpack.c.h.b16 %v2398
    %v2862 = vunpack.c.l.b16 %v2399
    %v2863 = vunpack.c.h.b16 %v2399
    %v2864 = vunpack.c.l.b16 %v2400
    %v2865 = vunpack.c.h.b16 %v2400
    %v2866 = vunpack.c.l.b16 %v2401
    %v2867 = vunpack.c.h.b16 %v2401
    %v2868 = vunpack.c.l.b16 %v2402
    %v2869 = vunpack.c.h.b16 %v2402
    %v2870 = vunpack.c.l.b16 %v2403
    %v2871 = vunpack.c.h.b16 %v2403
    %v2872 = vunpack.c.l.b16 %v2404
    %v2873 = vunpack.c.h.b16 %v2404
    %v2874 = vunpack.c.l.b16 %v2405
    %v2875 = vunpack.c.h.b16 %v2405
    %v2876 = vunpack.c.l.b16 %v2406
    %v2877 = vunpack.c.h.b16 %v2406
    %v2878 = vunpack.c.l.b16 %v2407
    %v2879 = vunpack.c.h.b16 %v2407
    %v2880 = vunpack.c.l.b16 %v2408
    %v2881 = vunpack.c.h.b16 %v2408
    %v2882 = vunpack.c.l.b16 %v2409
    %v2883 = vunpack.c.h.b16 %v2409
    %v2884 = vunpack.c.l.b16 %v2410
    %v2885 = vunpack.c.h.b16 %v2410
    %v2886 = vunpack.c.l.b16 %v2411
    %v2887 = vunpack.c.h.b16 %v2411
    %v2888 = vunpack.c.l.b16 %v2412
    %v2889 = vunpack.c.h.b16 %v2412
    %v2890 = vunpack.c.l.b16 %v2413
    %v2891 = vunpack.c.h.b16 %v2413
    %v2892 = vunpack.c.l.b16 %v2414
    %v2893 = vunpack.c.h.b16 %v2414
    %v2894 = vunpack.c.l.b16 %v2415
    %v2895 = vunpack.c.h.b16 %v2415
    %v2896 = vunpack.c.l.b16 %v2416
    %v2897 = vunpack.c.h.b16 %v2416
    %v2898 = vunpack.c.l.b16 %v2417
    %v2899 = vunpack.c.h.b16 %v2417
    %v2900 = vunpack.c.l.b16 %v2418
    %v2901 = vunpack.c.h.b16 %v2418
    %v2902 = vunpack.c.l.b16 %v2419
    %v2903 = vunpack.c.h.b16 %v2419
    %v2904 = vunpack.c.l.b16 %v2420
    %v2905 = vunpack.c.h.b16 %v2420
    %v2906 = vunpack.c.l.b16 %v2421
    %v2907 = vunpack.c.h.b16 %v2421
    %v2908 = vunpack.c.l.b16 %v2422
    %v2909 = vunpack.c.h.b16 %v2422
    %v2910 = vunpack.c.l.b16 %v2423
    %v2911 = vunpack.c.h.b16 %v2423
    %v2912 = vunpack.c.l.b16 %v2424
    %v2913 = vunpack.c.h.b16 %v2424
    %v2914 = vunpack.c.l.b16 %v2425
    %v2915 = vunpack.c.h.b16 %v2425
    %v2916 = vunpack.c.l.b16 %v2426
    %v2917 = vunpack.c.h.b16 %v2426
    %v2918 = vunpack.c.l.b16 %v2427
    %v2919 = vunpack.c.h.b16 %v2427
    %v2920 = vunpack.c.l.b16 %v2428
    %v2921 = vunpack.c.h.b16 %v2428
    %v2922 = vunpack.c.l.b16 %v2429
    %v2923 = vunpack.c.h.b16 %v2429
    %v2924 = vunpack.c.l.b16 %v2430
    %v2925 = vunpack.c.h.b16 %v2430
    %v2926 = vunpack.c.l.b16 %v2431
    %v2927 = vunpack.c.h.b16 %v2431
    %v2928 = vunpack.c.l.b16 %v2432
    %v2929 = vunpack.c.h.b16 %v2432
    %v2930 = vunpack.c.l.b16 %v2433
    %v2931 = vunpack.c.h.b16 %v2433
    %v2932 = vunpack.c.l.b16 %v2434
    %v2933 = vunpack.c.h.b16 %v2434
    %v2934 = vunpack.c.l.b16 %v2435
    %v2935 = vunpack.c.h.b16 %v2435
    %v2936 = vunpack.c.l.b16 %v2436
    %v2937 = vunpack.c.h.b16 %v2436
    %v2938 = vunpack.c.l.b16 %v2437
    %v2939 = vunpack.c.h.b16 %v2437
    %v2940 = vunpack.c.l.b16 %v2438
    %v2941 = vunpack.c.h.b16 %v2438
    %v2942 = vunpack.c.l.b16 %v2439
    %v2943 = vunpack.c.h.b16 %v2439
    %v2944 = vunpack.c.l.b16 %v2440
    %v2945 = vunpack.c.h.b16 %v2440
    %v2946 = vunpack.c.l.b16 %v2441
    %v2947 = vunpack.c.h.b16 %v2441
    %v2948 = vunpack.c.l.b16 %v2442
    %v2949 = vunpack.c.h.b16 %v2442
    %v2950 = vunpack.c.l.b16 %v2443
    %v2951 = vunpack.c.h.b16 %v2443
    %v2952 = vunpack.c.l.b16 %v2444
    %v2953 = vunpack.c.h.b16 %v2444
    %v2954 = vunpack.c.l.b16 %v2445
    %v2955 = vunpack.c.h.b16 %v2445
    %v2956 = vunpack.c.l.b16 %v2446
    %v2957 = vunpack.c.h.b16 %v2446
    %v2958 = vunpack.c.l.b16 %v2447
    %v2959 = vunpack.c.h.b16 %v2447
    %v2960 = vunpack.c.l.b16 %v2448
    %v2961 = vunpack.c.h.b16 %v2448
    %v2962 = vunpack.c.l.b16 %v2449
    %v2963 = vunpack.c.h.b16 %v2449
    %v2964 = vunpack.c.l.b16 %v2450
    %v2965 = vunpack.c.h.b16 %v2450
    %v2966 = vunpack.c.l.b16 %v2451
    %v2967 = vunpack.c.h.b16 %v2451
    %v2968 = vunpack.c.l.b16 %v2452
    %v2969 = vunpack.c.h.b16 %v2452
    %v2970 = vunpack.c.l.b16 %v2453
    %v2971 = vunpack.c.h.b16 %v2453
    %v2972 = vunpack.c.l.b16 %v2454
    %v2973 = vunpack.c.h.b16 %v2454
    %v2974 = vunpack.c.l.b16 %v2455
    %v2975 = vunpack.c.h.b16 %v2455
    %v2976 = vunpack.c.l.b16 %v2456
    %v2977 = vunpack.c.h.b16 %v2456
    %v2978 = vunpack.c.l.b16 %v2457
    %v2979 = vunpack.c.h.b16 %v2457
    %v2980 = vunpack.c.l.b16 %v2458
    %v2981 = vunpack.c.h.b16 %v2458
    %v2982 = vunpack.c.l.b16 %v2459
    %v2983 = vunpack.c.h.b16 %v2459
    %v2984 = vunpack.c.l.b16 %v2460
    %v2985 = vunpack.c.h.b16 %v2460
    %v2986 = vunpack.c.l.b16 %v2461
    %v2987 = vunpack.c.h.b16 %v2461
    %v2988 = vunpack.c.l.b16 %v2462
    %v2989 = vunpack.c.h.b16 %v2462
    %v2990 = vunpack.c.l.b16 %v2463
    %v2991 = vunpack.c.h.b16 %v2463
    %v2992 = vunpack.c.l.b16 %v2464
    %v2993 = vunpack.c.h.b16 %v2464
    %v2994 = vunpack.c.l.b16 %v2465
    %v2995 = vunpack.c.h.b16 %v2465
    %v2996 = vunpack.c.l.b16 %v2466
    %v2997 = vunpack.c.h.b16 %v2466
    %v2998 = vunpack.c.l.b16 %v2467
    %v2999 = vunpack.c.h.b16 %v2467
    %v3000 = vunpack.c.l.b16 %v2468
    %v3001 = vunpack.c.h.b16 %v2468
    %v3002 = vunpack.c.l.b16 %v2469
    %v3003 = vunpack.c.h.b16 %v2469
    %v3004 = vunpack.c.l.b16 %v2470
    %v3005 = vunpack.c.h.b16 %v2470
    %v3006 = vunpack.c.l.b16 %v2471
    %v3007 = vunpack.c.h.b16 %v2471
    %v3008 = vunpack.c.l.b16 %v2472
    %v3009 = vunpack.c.h.b16 %v2472
    %v3010 = vunpack.c.l.b16 %v2473
    %v3011 = vunpack.c.h.b16 %v2473
    %v3012 = vunpack.c.l.b16 %v2474
    %v3013 = vunpack.c.h.b16 %v2474
    %v3014 = vunpack.c.l.b16 %v2475
    %v3015 = vunpack.c.h.b16 %v2475
    %v3016 = vunpack.c.l.b16 %v2476
    %v3017 = vunpack.c.h.b16 %v2476
    %v3018 = vunpack.c.l.b16 %v2477
    %v3019 = vunpack.c.h.b16 %v2477
    %v3020 = vunpack.c.l.b16 %v2478
    %v3021 = vunpack.c.h.b16 %v2478
    %v3022 = vunpack.c.l.b16 %v2479
    %v3023 = vunpack.c.h.b16 %v2479
    %v3024 = vunpack.c.l.b16 %v2480
    %v3025 = vunpack.c.h.b16 %v2480
    %v3026 = vunpack.c.l.b16 %v2481
    %v3027 = vunpack.c.h.b16 %v2481
    %v3028 = vunpack.c.l.b16 %v2482
    %v3029 = vunpack.c.h.b16 %v2482
    %v3030 = vunpack.c.l.b16 %v2483
    %v3031 = vunpack.c.h.b16 %v2483
    %v3032 = vunpack.c.l.b16 %v2484
    %v3033 = vunpack.c.h.b16 %v2484
    %v3034 = vunpack.c.l.b16 %v2485
    %v3035 = vunpack.c.h.b16 %v2485
    %v3036 = vunpack.c.l.b16 %v2486
    %v3037 = vunpack.c.h.b16 %v2486
    %v3038 = vunpack.c.l.b16 %v2487
    %v3039 = vunpack.c.h.b16 %v2487
    %v3040 = vunpack.c.l.b16 %v2488
    %v3041 = vunpack.c.h.b16 %v2488
    %v3042 = vunpack.c.l.b16 %v2489
    %v3043 = vunpack.c.h.b16 %v2489
    %v3044 = vunpack.c.l.b16 %v2490
    %v3045 = vunpack.c.h.b16 %v2490
    %v3046 = vunpack.c.l.b16 %v2491
    %v3047 = vunpack.c.h.b16 %v2491
    %v3048 = vunpack.c.l.b16 %v2492
    %v3049 = vunpack.c.h.b16 %v2492
    %v3050 = vunpack.c.l.b16 %v2493
    %v3051 = vunpack.c.h.b16 %v2493
    %v3052 = vunpack.c.l.b16 %v2494
    %v3053 = vunpack.c.h.b16 %v2494
    %v3054 = vunpack.c.l.b16 %v2495
    %v3055 = vunpack.c.h.b16 %v2495
    %v3056 = vunpack.c.l.b16 %v2496
    %v3057 = vunpack.c.h.b16 %v2496
    %v3058 = vunpack.c.l.b16 %v2497
    %v3059 = vunpack.c.h.b16 %v2497
    %v3060 = vunpack.c.l.b16 %v2498
    %v3061 = vunpack.c.h.b16 %v2498
    %v3062 = vunpack.c.l.b16 %v2499
    %v3063 = vunpack.c.h.b16 %v2499
    %v3064 = vunpack.c.l.b16 %v2500
    %v3065 = vunpack.c.h.b16 %v2500
    %v3066 = vunpack.c.l.b16 %v2501
    %v3067 = vunpack.c.h.b16 %v2501
    %v3068 = vunpack.c.l.b16 %v2502
    %v3069 = vunpack.c.h.b16 %v2502
    %v3070 = vunpack.c.l.b16 %v2503
    %v3071 = vunpack.c.h.b16 %v2503
    %v3072 = vunpack.c.l.b16 %v2504
    %v3073 = vunpack.c.h.b16 %v2504
    %v3074 = vunpack.c.l.b16 %v2505
    %v3075 = vunpack.c.h.b16 %v2505
    %v3076 = vunpack.c.l.b16 %v2506
    %v3077 = vunpack.c.h.b16 %v2506
    %v3078 = vunpack.c.l.b16 %v2507
    %v3079 = vunpack.c.h.b16 %v2507
    %v3080 = vunpack.c.l.b16 %v2508
    %v3081 = vunpack.c.h.b16 %v2508
    %v3082 = vunpack.c.l.b16 %v2509
    %v3083 = vunpack.c.h.b16 %v2509
    %v3084 = vunpack.c.l.b16 %v2510
    %v3085 = vunpack.c.h.b16 %v2510
    %v3086 = vunpack.c.l.b16 %v2511
    %v3087 = vunpack.c.h.b16 %v2511
    %v3088 = vunpack.c.l.b16 %v2512
    %v3089 = vunpack.c.h.b16 %v2512
    %v3090 = vunpack.c.l.b16 %v2513
    %v3091 = vunpack.c.h.b16 %v2513
    %v3092 = vunpack.c.l.b16 %v2514
    %v3093 = vunpack.c.h.b16 %v2514
    %v3094 = vunpack.c.l.b16 %v2515
    %v3095 = vunpack.c.h.b16 %v2515
    %v3096 = vunpack.c.l.b16 %v2516
    %v3097 = vunpack.c.h.b16 %v2516
    %v3098 = vunpack.c.l.b16 %v2517
    %v3099 = vunpack.c.h.b16 %v2517
    %v3100 = vunpack.c.l.b16 %v2518
    %v3101 = vunpack.c.h.b16 %v2518
    %v3102 = vunpack.c.l.b16 %v2519
    %v3103 = vunpack.c.h.b16 %v2519
    %v3104 = vunpack.c.l.b16 %v2520
    %v3105 = vunpack.c.h.b16 %v2520
    %v3106 = vunpack.c.l.b16 %v2521
    %v3107 = vunpack.c.h.b16 %v2521
    %v3108 = vunpack.c.l.b16 %v2522
    %v3109 = vunpack.c.h.b16 %v2522
    %v3110 = vunpack.c.l.b16 %v2523
    %v3111 = vunpack.c.h.b16 %v2523
    %v3112 = vunpack.c.l.b16 %v2524
    %v3113 = vunpack.c.h.b16 %v2524
    %v3114 = vunpack.c.l.b16 %v2525
    %v3115 = vunpack.c.h.b16 %v2525
    %v3116 = vunpack.c.l.b16 %v2526
    %v3117 = vunpack.c.h.b16 %v2526
    %v3118 = vunpack.c.l.b16 %v2527
    %v3119 = vunpack.c.h.b16 %v2527
    %v3120 = vunpack.c.l.b16 %v2528
    %v3121 = vunpack.c.h.b16 %v2528
    %v3122 = vunpack.c.l.b16 %v2529
    %v3123 = vunpack.c.h.b16 %v2529
    %v3124 = vunpack.c.l.b16 %v2530
    %v3125 = vunpack.c.h.b16 %v2530
    %v3126 = vunpack.c.l.b16 %v2531
    %v3127 = vunpack.c.h.b16 %v2531
    %v3128 = vunpack.c.l.b16 %v2532
    %v3129 = vunpack.c.h.b16 %v2532
    %v3130 = vunpack.c.l.b16 %v2533
    %v3131 = vunpack.c.h.b16 %v2533
    %v3132 = vunpack.c.l.b16 %v2534
    %v3133 = vunpack.c.h.b16 %v2534
    %v3134 = vunpack.c.l.b16 %v2535
    %v3135 = vunpack.c.h.b16 %v2535
    %v3136 = vunpack.c.l.b16 %v2536
    %v3137 = vunpack.c.h.b16 %v2536
    %v3138 = vunpack.c.l.b16 %v2537
    %v3139 = vunpack.c.h.b16 %v2537
    %v3140 = vunpack.c.l.b16 %v2538
    %v3141 = vunpack.c.h.b16 %v2538
    %v3142 = vunpack.c.l.b16 %v2539
    %v3143 = vunpack.c.h.b16 %v2539
    %v3144 = vunpack.c.l.b16 %v2540
    %v3145 = vunpack.c.h.b16 %v2540
    %v3146 = vunpack.c.l.b16 %v2541
    %v3147 = vunpack.c.h.b16 %v2541
    %v3148 = vunpack.c.l.b16 %v2542
    %v3149 = vunpack.c.h.b16 %v2542
    %v3150 = vunpack.c.l.b16 %v2543
    %v3151 = vunpack.c.h.b16 %v2543
    %v3152 = vpack.c.b16 %v2774, %v2768
    %v3153 = vpack.c.b16 %v2775, %v2769
    %v3154 = vpack.c.b16 %v2776, %v2770
    %v3155 = vpack.c.b16 %v2777, %v2771
    %v3156 = vpack.c.b16 %v2778, %v2772
    %v3157 = vpack.c.b16 %v2779, %v2773
    %v3158 = vpack.c.b16 %v2786, %v2780
    %v3159 = vpack.c.b16 %v2787, %v2781
    %v3160 = vpack.c.b16 %v2788, %v2782
    %v3161 = vpack.c.b16 %v2789, %v2783
    %v3162 = vpack.c.b16 %v2790, %v2784
    %v3163 = vpack.c.b16 %v2791, %v2785
    %v3164 = vpack.c.b16 %v2798, %v2792
    %v3165 = vpack.c.b16 %v2799, %v2793
    %v3166 = vpack.c.b16 %v2800, %v2794
    %v3167 = vpack.c.b16 %v2801, %v2795
    %v3168 = vpack.c.b16 %v2802, %v2796
    %v3169 = vpack.c.b16 %v2803, %v2797
    %v3170 = vpack.c.b16 %v2810, %v2804
    %v3171 = vpack.c.b16 %v2811, %v2805
    %v3172 = vpack.c.b16 %v2812, %v2806
    %v3173 = vpack.c.b16 %v2813, %v2807
    %v3174 = vpack.c.b16 %v2814, %v2808
    %v3175 = vpack.c.b16 %v2815, %v2809
    %v3176 = vpack.c.b16 %v2822, %v2816
    %v3177 = vpack.c.b16 %v2823, %v2817
    %v3178 = vpack.c.b16 %v2824, %v2818
    %v3179 = vpack.c.b16 %v2825, %v2819
    %v3180 = vpack.c.b16 %v2826, %v2820
    %v3181 = vpack.c.b16 %v2827, %v2821
    %v3182 = vpack.c.b16 %v2834, %v2828
    %v3183 = vpack.c.b16 %v2835, %v2829
    %v3184 = vpack.c.b16 %v2836, %v2830
    %v3185 = vpack.c.b16 %v2837, %v2831
    %v3186 = vpack.c.b16 %v2838, %v2832
    %v3187 = vpack.c.b16 %v2839, %v2833
    %v3188 = vpack.c.b16 %v2846, %v2840
    %v3189 = vpack.c.b16 %v2847, %v2841
    %v3190 = vpack.c.b16 %v2848, %v2842
    %v3191 = vpack.c.b16 %v2849, %v2843
    %v3192 = vpack.c.b16 %v2850, %v2844
    %v3193 = vpack.c.b16 %v2851, %v2845
    %v3194 = vpack.c.b16 %v2858, %v2852
    %v3195 = vpack.c.b16 %v2859, %v2853
    %v3196 = vpack.c.b16 %v2860, %v2854
    %v3197 = vpack.c.b16 %v2861, %v2855
    %v3198 = vpack.c.b16 %v2862, %v2856
    %v3199 = vpack.c.b16 %v2863, %v2857
    %v3200 = vpack.c.b16 %v2870, %v2864
    %v3201 = vpack.c.b16 %v2871, %v2865
    %v3202 = vpack.c.b16 %v2872, %v2866
    %v3203 = vpack.c.b16 %v2873, %v2867
    %v3204 = vpack.c.b16 %v2874, %v2868
    %v3205 = vpack.c.b16 %v2875, %v2869
    %v3206 = vpack.c.b16 %v2882, %v2876
    %v3207 = vpack.c.b16 %v2883, %v2877
    %v3208 = vpack.c.b16 %v2884, %v2878
    %v3209 = vpack.c.b16 %v2885, %v2879
    %v3210 = vpack.c.b16 %v2886, %v2880
    %v3211 = vpack.c.b16 %v2887, %v2881
    %v3212 = vpack.c.b16 %v2894, %v2888
    %v3213 = vpack.c.b16 %v2895, %v2889
    %v3214 = vpack.c.b16 %v2896, %v2890
    %v3215 = vpack.c.b16 %v2897, %v2891
    %v3216 = vpack.c.b16 %v2898, %v2892
    %v3217 = vpack.c.b16 %v2899, %v2893
    %v3218 = vpack.c.b16 %v2906, %v2900
    %v3219 = vpack.c.b16 %v2907, %v2901
    %v3220 = vpack.c.b16 %v2908, %v2902
    %v3221 = vpack.c.b16 %v2909, %v2903
    %v3222 = vpack.c.b16 %v2910, %v2904
    %v3223 = vpack.c.b16 %v2911, %v2905
    %v3224 = vpack.c.b16 %v2918, %v2912
    %v3225 = vpack.c.b16 %v2919, %v2913
    %v3226 = vpack.c.b16 %v2920, %v2914
    %v3227 = vpack.c.b16 %v2921, %v2915
    %v3228 = vpack.c.b16 %v2922, %v2916
    %v3229 = vpack.c.b16 %v2923, %v2917
    %v3230 = vpack.c.b16 %v2930, %v2924
    %v3231 = vpack.c.b16 %v2931, %v2925
    %v3232 = vpack.c.b16 %v2932, %v2926
    %v3233 = vpack.c.b16 %v2933, %v2927
    %v3234 = vpack.c.b16 %v2934, %v2928
    %v3235 = vpack.c.b16 %v2935, %v2929
    %v3236 = vpack.c.b16 %v2942, %v2936
    %v3237 = vpack.c.b16 %v2943, %v2937
    %v3238 = vpack.c.b16 %v2944, %v2938
    %v3239 = vpack.c.b16 %v2945, %v2939
    %v3240 = vpack.c.b16 %v2946, %v2940
    %v3241 = vpack.c.b16 %v2947, %v2941
    %v3242 = vpack.c.b16 %v2954, %v2948
    %v3243 = vpack.c.b16 %v2955, %v2949
    %v3244 = vpack.c.b16 %v2956, %v2950
    %v3245 = vpack.c.b16 %v2957, %v2951
    %v3246 = vpack.c.b16 %v2958, %v2952
    %v3247 = vpack.c.b16 %v2959, %v2953
    %v3248 = vpack.c.b16 %v2966, %v2960
    %v3249 = vpack.c.b16 %v2967, %v2961
    %v3250 = vpack.c.b16 %v2968, %v2962
    %v3251 = vpack.c.b16 %v2969, %v2963
    %v3252 = vpack.c.b16 %v2970, %v2964
    %v3253 = vpack.c.b16 %v2971, %v2965
    %v3254 = vpack.c.b16 %v2978, %v2972
    %v3255 = vpack.c.b16 %v2979, %v2973
    %v3256 = vpack.c.b16 %v2980, %v2974
    %v3257 = vpack.c.b16 %v2981, %v2975
    %v3258 = vpack.c.b16 %v2982, %v2976
    %v3259 = vpack.c.b16 %v2983, %v2977
    %v3260 = vpack.c.b16 %v2990, %v2984
    %v3261 = vpack.c.b16 %v2991, %v2985
    %v3262 = vpack.c.b16 %v2992, %v2986
    %v3263 = vpack.c.b16 %v2993, %v2987
    %v3264 = vpack.c.b16 %v2994, %v2988
    %v3265 = vpack.c.b16 %v2995, %v2989
    %v3266 = vpack.c.b16 %v3002, %v2996
    %v3267 = vpack.c.b16 %v3003, %v2997
    %v3268 = vpack.c.b16 %v3004, %v2998
    %v3269 = vpack.c.b16 %v3005, %v2999
    %v3270 = vpack.c.b16 %v3006, %v3000
    %v3271 = vpack.c.b16 %v3007, %v3001
    %v3272 = vpack.c.b16 %v3014, %v3008
    %v3273 = vpack.c.b16 %v3015, %v3009
    %v3274 = vpack.c.b16 %v3016, %v3010
    %v3275 = vpack.c.b16 %v3017, %v3011
    %v3276 = vpack.c.b16 %v3018, %v3012
    %v3277 = vpack.c.b16 %v3019, %v3013
    %v3278 = vpack.c.b16 %v3026, %v3020
    %v3279 = vpack.c.b16 %v3027, %v3021
    %v3280 = vpack.c.b16 %v3028, %v3022
    %v3281 = vpack.c.b16 %v3029, %v3023
    %v3282 = vpack.c.b16 %v3030, %v3024
    %v3283 = vpack.c.b16 %v3031, %v3025
    %v3284 = vpack.c.b16 %v3038, %v3032
    %v3285 = vpack.c.b16 %v3039, %v3033
    %v3286 = vpack.c.b16 %v3040, %v3034
    %v3287 = vpack.c.b16 %v3041, %v3035
    %v3288 = vpack.c.b16 %v3042, %v3036
    %v3289 = vpack.c.b16 %v3043, %v3037
    %v3290 = vpack.c.b16 %v3050, %v3044
    %v3291 = vpack.c.b16 %v3051, %v3045
    %v3292 = vpack.c.b16 %v3052, %v3046
    %v3293 = vpack.c.b16 %v3053, %v3047
    %v3294 = vpack.c.b16 %v3054, %v3048
    %v3295 = vpack.c.b16 %v3055, %v3049
    %v3296 = vpack.c.b16 %v3062, %v3056
    %v3297 = vpack.c.b16 %v3063, %v3057
    %v3298 = vpack.c.b16 %v3064, %v3058
    %v3299 = vpack.c.b16 %v3065, %v3059
    %v3300 = vpack.c.b16 %v3066, %v3060
    %v3301 = vpack.c.b16 %v3067, %v3061
    %v3302 = vpack.c.b16 %v3074, %v3068
    %v3303 = vpack.c.b16 %v3075, %v3069
    %v3304 = vpack.c.b16 %v3076, %v3070
    %v3305 = vpack.c.b16 %v3077, %v3071
    %v3306 = vpack.c.b16 %v3078, %v3072
    %v3307 = vpack.c.b16 %v3079, %v3073
    %v3308 = vpack.c.b16 %v3086, %v3080
    %v3309 = vpack.c.b16 %v3087, %v3081
    %v3310 = vpack.c.b16 %v3088, %v3082
    %v3311 = vpack.c.b16 %v3089, %v3083
    %v3312 = vpack.c.b16 %v3090, %v3084
    %v3313 = vpack.c.b16 %v3091, %v3085
    %v3314 = vpack.c.b16 %v3098, %v3092
    %v3315 = vpack.c.b16 %v3099, %v3093
    %v3316 = vpack.c.b16 %v3100, %v3094
    %v3317 = vpack.c.b16 %v3101, %v3095
    %v3318 = vpack.c.b16 %v3102, %v3096
    %v3319 = vpack.c.b16 %v3103, %v3097
    %v3320 = vpack.c.b16 %v3110, %v3104
    %v3321 = vpack.c.b16 %v3111, %v3105
    %v3322 = vpack.c.b16 %v3112, %v3106
    %v3323 = vpack.c.b16 %v3113, %v3107
    %v3324 = vpack.c.b16 %v3114, %v3108
    %v3325 = vpack.c.b16 %v3115, %v3109
    %v3326 = vpack.c.b16 %v3122, %v3116
    %v3327 = vpack.c.b16 %v3123, %v3117
    %v3328 = vpack.c.b16 %v3124, %v3118
    %v3329 = vpack.c.b16 %v3125, %v3119
    %v3330 = vpack.c.b16 %v3126, %v3120
    %v3331 = vpack.c.b16 %v3127, %v3121
    %v3332 = vpack.c.b16 %v3134, %v3128
    %v3333 = vpack.c.b16 %v3135, %v3129
    %v3334 = vpack.c.b16 %v3136, %v3130
    %v3335 = vpack.c.b16 %v3137, %v3131
    %v3336 = vpack.c.b16 %v3138, %v3132
    %v3337 = vpack.c.b16 %v3139, %v3133
    %v3338 = vpack.c.b16 %v3146, %v3140
    %v3339 = vpack.c.b16 %v3147, %v3141
    %v3340 = vpack.c.b16 %v3148, %v3142
    %v3341 = vpack.c.b16 %v3149, %v3143
    %v3342 = vpack.c.b16 %v3150, %v3144
    %v3343 = vpack.c.b16 %v3151, %v3145
    %3536 = vmatprep.subr.bf16.mxu0 %v3153
    %3537 = vmatpush1.bf16.msra.mxu0 %v3152
    %3538 = vmatprep.subr.bf16.mxu0 %v3159
    %3539 = vmatpush1.bf16.msra.mxu0 %v3158
    %3540 = vmatprep.subr.bf16.mxu0 %v3165
    %3541 = vmatpush1.bf16.msra.mxu0 %v3164
    %3542 = vmatprep.subr.bf16.mxu0 %v3171
    %3543 = vmatpush1.bf16.msra.mxu0 %v3170
    %3544 = vmatprep.subr.bf16.mxu0 %v3177
    %3545 = vmatpush1.bf16.msra.mxu0 %v3176
    %3546 = vmatprep.subr.bf16.mxu0 %v3183
    %3547 = vmatpush1.bf16.msra.mxu0 %v3182
    %3548 = vmatprep.subr.bf16.mxu0 %v3189
    %3549 = vmatpush1.bf16.msra.mxu0 %v3188
    %3550 = vmatprep.subr.bf16.mxu0 %v3195
    %3551 = vmatpush1.bf16.msra.mxu0 %v3194
    %3552 = vmatprep.subr.bf16.mxu0 %v3201
    %3553 = vmatpush1.bf16.msra.mxu0 %v3200
    %3554 = vmatprep.subr.bf16.mxu0 %v3207
    %3555 = vmatpush1.bf16.msra.mxu0 %v3206
    %3556 = vmatprep.subr.bf16.mxu0 %v3213
    %3557 = vmatpush1.bf16.msra.mxu0 %v3212
    %3558 = vmatprep.subr.bf16.mxu0 %v3219
    %3559 = vmatpush1.bf16.msra.mxu0 %v3218
    %3560 = vmatprep.subr.bf16.mxu0 %v3225
    %3561 = vmatpush1.bf16.msra.mxu0 %v3224
    %3562 = vmatprep.subr.bf16.mxu0 %v3231
    %3563 = vmatpush1.bf16.msra.mxu0 %v3230
    %3564 = vmatprep.subr.bf16.mxu0 %v3237
    %3565 = vmatpush1.bf16.msra.mxu0 %v3236
    %3566 = vmatprep.subr.bf16.mxu0 %v3243
    %3567 = vmatpush1.bf16.msra.mxu0 %v3242
    %3568 = vmatprep.mubr.bf16.mxu0 %v2349
    %3569 = vmatmul.mubr.bf16.gmra.mrb[0].mxu0 %v2348
    %v3570 = vpop.f32.mrb[0].mxu0
    %v3571 = vadd.f32 %v2549, %v3570
    %v3572 = vpop.f32.mrb[0].mxu0
    %v3573 = vadd.f32 %v2553, %v3572
    %v3574 = vpop.f32.mrb[0].mxu0
    %v3575 = vpop.f32.mrb[0].mxu0
    %3576 = vdwg.mxu0
    %3577 = vmatprep.subr.bf16.mxu0 %v3249
    %3578 = vmatpush1.bf16.msra.mxu0 %v3248
    %3579 = vmatprep.subr.bf16.mxu0 %v3255
    %3580 = vmatpush1.bf16.msra.mxu0 %v3254
    %3581 = vmatprep.subr.bf16.mxu0 %v3261
    %3582 = vmatpush1.bf16.msra.mxu0 %v3260
    %3583 = vmatprep.subr.bf16.mxu0 %v3267
    %3584 = vmatpush1.bf16.msra.mxu0 %v3266
    %3585 = vmatprep.subr.bf16.mxu0 %v3273
    %3586 = vmatpush1.bf16.msra.mxu0 %v3272
    %3587 = vmatprep.subr.bf16.mxu0 %v3279
    %3588 = vmatpush1.bf16.msra.mxu0 %v3278
    %3589 = vmatprep.subr.bf16.mxu0 %v3285
    %3590 = vmatpush1.bf16.msra.mxu0 %v3284
    %3591 = vmatprep.subr.bf16.mxu0 %v3291
    %3592 = vmatpush1.bf16.msra.mxu0 %v3290
    %3593 = vmatprep.subr.bf16.mxu0 %v3297
    %3594 = vmatpush1.bf16.msra.mxu0 %v3296
    %3595 = vmatprep.subr.bf16.mxu0 %v3303
    %3596 = vmatpush1.bf16.msra.mxu0 %v3302
    %3597 = vmatprep.subr.bf16.mxu0 %v3309
    %3598 = vmatpush1.bf16.msra.mxu0 %v3308
    %3599 = vmatprep.subr.bf16.mxu0 %v3315
    %3600 = vmatpush1.bf16.msra.mxu0 %v3314
    %3601 = vmatprep.subr.bf16.mxu0 %v3321
    %3602 = vmatpush1.bf16.msra.mxu0 %v3320
    %3603 = vmatprep.subr.bf16.mxu0 %v3327
    %3604 = vmatpush1.bf16.msra.mxu0 %v3326
    %3605 = vmatprep.subr.bf16.mxu0 %v3333
    %3606 = vmatpush1.bf16.msra.mxu0 %v3332
    %3607 = vmatprep.subr.bf16.mxu0 %v3339
    %3608 = vmatpush1.bf16.msra.mxu0 %v3338
    %3609 = vmatprep.mubr.bf16.mxu0 %v2351
    %3610 = vmatmul.mubr.bf16.gmra.mrb[0].mxu0 %v2350
    %v3611 = vpop.f32.mrb[0].mxu0
    %v3612 = vadd.f32 %v3571, %v3611
    %v3613 = vpop.f32.mrb[0].mxu0
    %v3614 = vadd.f32 %v3573, %v3613
    %v3615 = vpop.f32.mrb[0].mxu0
    %v3616 = vpop.f32.mrb[0].mxu0
    %3617 = vdwg.mxu0
    %3618 = vmatprep.subr.bf16.mxu0 %v3155
    %3619 = vmatpush1.bf16.msra.mxu0 %v3154
    %3620 = vmatprep.subr.bf16.mxu0 %v3161
    %3621 = vmatpush1.bf16.msra.mxu0 %v3160
    %3622 = vmatprep.subr.bf16.mxu0 %v3167
    %3623 = vmatpush1.bf16.msra.mxu0 %v3166
    %3624 = vmatprep.subr.bf16.mxu0 %v3173
    %3625 = vmatpush1.bf16.msra.mxu0 %v3172
    %3626 = vmatprep.subr.bf16.mxu0 %v3179
    %3627 = vmatpush1.bf16.msra.mxu0 %v3178
    %3628 = vmatprep.subr.bf16.mxu0 %v3185
    %3629 = vmatpush1.bf16.msra.mxu0 %v3184
    %3630 = vmatprep.subr.bf16.mxu0 %v3191
    %3631 = vmatpush1.bf16.msra.mxu0 %v3190
    %3632 = vmatprep.subr.bf16.mxu0 %v3197
    %3633 = vmatpush1.bf16.msra.mxu0 %v3196
    %3634 = vmatprep.subr.bf16.mxu0 %v3203
    %3635 = vmatpush1.bf16.msra.mxu0 %v3202
    %3636 = vmatprep.subr.bf16.mxu0 %v3209
    %3637 = vmatpush1.bf16.msra.mxu0 %v3208
    %3638 = vmatprep.subr.bf16.mxu0 %v3215
    %3639 = vmatpush1.bf16.msra.mxu0 %v3214
    %3640 = vmatprep.subr.bf16.mxu0 %v3221
    %3641 = vmatpush1.bf16.msra.mxu0 %v3220
    %3642 = vmatprep.subr.bf16.mxu0 %v3227
    %3643 = vmatpush1.bf16.msra.mxu0 %v3226
    %3644 = vmatprep.subr.bf16.mxu0 %v3233
    %3645 = vmatpush1.bf16.msra.mxu0 %v3232
    %3646 = vmatprep.subr.bf16.mxu0 %v3239
    %3647 = vmatpush1.bf16.msra.mxu0 %v3238
    %3648 = vmatprep.subr.bf16.mxu0 %v3245
    %3649 = vmatpush1.bf16.msra.mxu0 %v3244
    %3650 = vmatprep.mubr.bf16.mxu0 %v2349
    %3651 = vmatmul.mubr.bf16.gmra.mrb[0].mxu0 %v2348
    %v3652 = vpop.f32.mrb[0].mxu0
    %v3653 = vadd.f32 %v2557, %v3652
    %v3654 = vpop.f32.mrb[0].mxu0
    %v3655 = vadd.f32 %v2561, %v3654
    %v3656 = vpop.f32.mrb[0].mxu0
    %v3657 = vpop.f32.mrb[0].mxu0
    %3658 = vdwg.mxu0
    %3659 = vmatprep.subr.bf16.mxu0 %v3251
    %3660 = vmatpush1.bf16.msra.mxu0 %v3250
    %3661 = vmatprep.subr.bf16.mxu0 %v3257
    %3662 = vmatpush1.bf16.msra.mxu0 %v3256
    %3663 = vmatprep.subr.bf16.mxu0 %v3263
    %3664 = vmatpush1.bf16.msra.mxu0 %v3262
    %3665 = vmatprep.subr.bf16.mxu0 %v3269
    %3666 = vmatpush1.bf16.msra.mxu0 %v3268
    %3667 = vmatprep.subr.bf16.mxu0 %v3275
    %3668 = vmatpush1.bf16.msra.mxu0 %v3274
    %3669 = vmatprep.subr.bf16.mxu0 %v3281
    %3670 = vmatpush1.bf16.msra.mxu0 %v3280
    %3671 = vmatprep.subr.bf16.mxu0 %v3287
    %3672 = vmatpush1.bf16.msra.mxu0 %v3286
    %3673 = vmatprep.subr.bf16.mxu0 %v3293
    %3674 = vmatpush1.bf16.msra.mxu0 %v3292
    %3675 = vmatprep.subr.bf16.mxu0 %v3299
    %3676 = vmatpush1.bf16.msra.mxu0 %v3298
    %3677 = vmatprep.subr.bf16.mxu0 %v3305
    %3678 = vmatpush1.bf16.msra.mxu0 %v3304
    %3679 = vmatprep.subr.bf16.mxu0 %v3311
    %3680 = vmatpush1.bf16.msra.mxu0 %v3310
    %3681 = vmatprep.subr.bf16.mxu0 %v3317
    %3682 = vmatpush1.bf16.msra.mxu0 %v3316
    %3683 = vmatprep.subr.bf16.mxu0 %v3323
    %3684 = vmatpush1.bf16.msra.mxu0 %v3322
    %3685 = vmatprep.subr.bf16.mxu0 %v3329
    %3686 = vmatpush1.bf16.msra.mxu0 %v3328
    %3687 = vmatprep.subr.bf16.mxu0 %v3335
    %3688 = vmatpush1.bf16.msra.mxu0 %v3334
    %3689 = vmatprep.subr.bf16.mxu0 %v3341
    %3690 = vmatpush1.bf16.msra.mxu0 %v3340
    %3691 = vmatprep.mubr.bf16.mxu0 %v2351
    %3692 = vmatmul.mubr.bf16.gmra.mrb[0].mxu0 %v2350
    %v3693 = vpop.f32.mrb[0].mxu0
    %v3694 = vadd.f32 %v3653, %v3693
    %v3695 = vpop.f32.mrb[0].mxu0
    %v3696 = vadd.f32 %v3655, %v3695
    %v3697 = vpop.f32.mrb[0].mxu0
    %v3698 = vpop.f32.mrb[0].mxu0
    %3699 = vdwg.mxu0
    %3700 = vmatprep.subr.bf16.mxu0 %v3157
    %3701 = vmatpush1.bf16.msra.mxu0 %v3156
    %3702 = vmatprep.subr.bf16.mxu0 %v3163
    %3703 = vmatpush1.bf16.msra.mxu0 %v3162
    %3704 = vmatprep.subr.bf16.mxu0 %v3169
    %3705 = vmatpush1.bf16.msra.mxu0 %v3168
    %3706 = vmatprep.subr.bf16.mxu0 %v3175
    %3707 = vmatpush1.bf16.msra.mxu0 %v3174
    %3708 = vmatprep.subr.bf16.mxu0 %v3181
    %3709 = vmatpush1.bf16.msra.mxu0 %v3180
    %3710 = vmatprep.subr.bf16.mxu0 %v3187
    %3711 = vmatpush1.bf16.msra.mxu0 %v3186
    %3712 = vmatprep.subr.bf16.mxu0 %v3193
    %3713 = vmatpush1.bf16.msra.mxu0 %v3192
    %3714 = vmatprep.subr.bf16.mxu0 %v3199
    %3715 = vmatpush1.bf16.msra.mxu0 %v3198
    %3716 = vmatprep.subr.bf16.mxu0 %v3205
    %3717 = vmatpush1.bf16.msra.mxu0 %v3204
    %3718 = vmatprep.subr.bf16.mxu0 %v3211
    %3719 = vmatpush1.bf16.msra.mxu0 %v3210
    %3720 = vmatprep.subr.bf16.mxu0 %v3217
    %3721 = vmatpush1.bf16.msra.mxu0 %v3216
    %3722 = vmatprep.subr.bf16.mxu0 %v3223
    %3723 = vmatpush1.bf16.msra.mxu0 %v3222
    %3724 = vmatprep.subr.bf16.mxu0 %v3229
    %3725 = vmatpush1.bf16.msra.mxu0 %v3228
    %3726 = vmatprep.subr.bf16.mxu0 %v3235
    %3727 = vmatpush1.bf16.msra.mxu0 %v3234
    %3728 = vmatprep.subr.bf16.mxu0 %v3241
    %3729 = vmatpush1.bf16.msra.mxu0 %v3240
    %3730 = vmatprep.subr.bf16.mxu0 %v3247
    %3731 = vmatpush1.bf16.msra.mxu0 %v3246
    %3732 = vmatprep.mubr.bf16.mxu0 %v2349
    %3733 = vmatmul.mubr.bf16.gmra.mrb[0].mxu0 %v2348
    %v3734 = vpop.f32.mrb[0].mxu0
    %v3735 = vadd.f32 %v2565, %v3734
    %v3736 = vpop.f32.mrb[0].mxu0
    %v3737 = vadd.f32 %v2569, %v3736
    %v3738 = vpop.f32.mrb[0].mxu0
    %v3739 = vpop.f32.mrb[0].mxu0
    %3740 = vdwg.mxu0
    %3741 = vmatprep.subr.bf16.mxu0 %v3253
    %3742 = vmatpush1.bf16.msra.mxu0 %v3252
    %3743 = vmatprep.subr.bf16.mxu0 %v3259
    %3744 = vmatpush1.bf16.msra.mxu0 %v3258
    %3745 = vmatprep.subr.bf16.mxu0 %v3265
    %3746 = vmatpush1.bf16.msra.mxu0 %v3264
    %3747 = vmatprep.subr.bf16.mxu0 %v3271
    %3748 = vmatpush1.bf16.msra.mxu0 %v3270
    %3749 = vmatprep.subr.bf16.mxu0 %v3277
    %3750 = vmatpush1.bf16.msra.mxu0 %v3276
    %3751 = vmatprep.subr.bf16.mxu0 %v3283
    %3752 = vmatpush1.bf16.msra.mxu0 %v3282
    %3753 = vmatprep.subr.bf16.mxu0 %v3289
    %3754 = vmatpush1.bf16.msra.mxu0 %v3288
    %3755 = vmatprep.subr.bf16.mxu0 %v3295
    %3756 = vmatpush1.bf16.msra.mxu0 %v3294
    %3757 = vmatprep.subr.bf16.mxu0 %v3301
    %3758 = vmatpush1.bf16.msra.mxu0 %v3300
    %3759 = vmatprep.subr.bf16.mxu0 %v3307
    %3760 = vmatpush1.bf16.msra.mxu0 %v3306
    %3761 = vmatprep.subr.bf16.mxu0 %v3313
    %3762 = vmatpush1.bf16.msra.mxu0 %v3312
    %3763 = vmatprep.subr.bf16.mxu0 %v3319
    %3764 = vmatpush1.bf16.msra.mxu0 %v3318
    %3765 = vmatprep.subr.bf16.mxu0 %v3325
    %3766 = vmatpush1.bf16.msra.mxu0 %v3324
    %3767 = vmatprep.subr.bf16.mxu0 %v3331
    %3768 = vmatpush1.bf16.msra.mxu0 %v3330
    %3769 = vmatprep.subr.bf16.mxu0 %v3337
    %3770 = vmatpush1.bf16.msra.mxu0 %v3336
    %3771 = vmatprep.subr.bf16.mxu0 %v3343
    %3772 = vmatpush1.bf16.msra.mxu0 %v3342
    %3773 = vmatprep.mubr.bf16.mxu0 %v2351
    %3774 = vmatmul.mubr.bf16.gmra.mrb[0].mxu0 %v2350
    %v3775 = vpop.f32.mrb[0].mxu0
    %v3776 = vadd.f32 %v3735, %v3775
    %v3777 = vpop.f32.mrb[0].mxu0
    %v3778 = vadd.f32 %v3737, %v3777
    %v3779 = vpop.f32.mrb[0].mxu0
    %v3780 = vpop.f32.mrb[0].mxu0
    %3781 = vdwg.mxu0
    %v3782 = vmax.f32 %v3612, 0.0
    %v3783 = vmax.f32 %v3614, 0.0
    %v3784 = vmax.f32 %v3694, 0.0
    %v3785 = vmax.f32 %v3696, 0.0
    %v3786 = vmax.f32 %v3776, 0.0
    %v3787 = vmax.f32 %v3778, 0.0
    %v3788 = vpack.c.bf16 %v3782, %v3782
    %v3789 = vpack.c.bf16 %v3783, %v3783
    %v3790 = vpack.c.bf16 %v3784, %v3784
    %v3791 = vpack.c.bf16 %v3785, %v3785
    %v3792 = vpack.c.bf16 %v3786, %v3786
    %v3793 = vpack.c.bf16 %v3787, %v3787
    %v3794 = vld [vmem:[#allocation8] sm:$0xf]
    %v3795 = vld [vmem:[#allocation8 + $0x4] sm:$0xf]
    %v3796 = vld [vmem:[#allocation8 + $0x8] sm:$0xf]
    %v3797 = vld [vmem:[#allocation8 + $0xc] sm:$0xf]
    %v3798 = vld [vmem:[#allocation8 + $0x10] sm:$0xf]
    %v3799 = vld [vmem:[#allocation8 + $0x14] sm:$0xf]
    %v3800 = vld [vmem:[#allocation8 + $0x18] sm:$0xf]
    %v3801 = vld [vmem:[#allocation8 + $0x1c] sm:$0xf]
    %v3802 = vld [vmem:[#allocation8 + $0x20] sm:$0xf]
    %v3803 = vld [vmem:[#allocation8 + $0x24] sm:$0xf]
    %v3804 = vld [vmem:[#allocation8 + $0x28] sm:$0xf]
    %v3805 = vld [vmem:[#allocation8 + $0x2c] sm:$0xf]
    %v3806 = vld [vmem:[#allocation8 + $0x30] sm:$0xf]
    %v3807 = vld [vmem:[#allocation8 + $0x34] sm:$0xf]
    %v3808 = vld [vmem:[#allocation8 + $0x38] sm:$0xf]
    %v3809 = vld [vmem:[#allocation8 + $0x3c] sm:$0xf]
    %v3810 = vld [vmem:[#allocation8 + $0x40] sm:$0xf]
    %v3811 = vld [vmem:[#allocation8 + $0x44] sm:$0xf]
    %v3812 = vld [vmem:[#allocation8 + $0x48] sm:$0xf]
    %v3813 = vld [vmem:[#allocation8 + $0x4c] sm:$0xf]
    %v3814 = vld [vmem:[#allocation8 + $0x50] sm:$0xf]
    %v3815 = vld [vmem:[#allocation8 + $0x54] sm:$0xf]
    %v3816 = vld [vmem:[#allocation8 + $0x58] sm:$0xf]
    %v3817 = vld [vmem:[#allocation8 + $0x5c] sm:$0xf]
    %v3818 = vld [vmem:[#allocation8 + $0x60] sm:$0xf]
    %v3819 = vld [vmem:[#allocation8 + $0x64] sm:$0xf]
    %v3820 = vld [vmem:[#allocation8 + $0x68] sm:$0xf]
    %v3821 = vld [vmem:[#allocation8 + $0x6c] sm:$0xf]
    %v3822 = vld [vmem:[#allocation8 + $0x70] sm:$0xf]
    %v3823 = vld [vmem:[#allocation8 + $0x74] sm:$0xf]
    %v3824 = vld [vmem:[#allocation8 + $0x78] sm:$0xf]
    %v3825 = vld [vmem:[#allocation8 + $0x7c] sm:$0xf]
    %v3826 = vld [vmem:[#allocation8 + $0x80] sm:$0xf]
    %v3827 = vld [vmem:[#allocation8 + $0x84] sm:$0xf]
    %v3828 = vld [vmem:[#allocation8 + $0x88] sm:$0xf]
    %v3829 = vld [vmem:[#allocation8 + $0x8c] sm:$0xf]
    %v3830 = vld [vmem:[#allocation8 + $0x90] sm:$0xf]
    %v3831 = vld [vmem:[#allocation8 + $0x94] sm:$0xf]
    %v3832 = vld [vmem:[#allocation8 + $0x98] sm:$0xf]
    %v3833 = vld [vmem:[#allocation8 + $0x9c] sm:$0xf]
    %v3834 = vld [vmem:[#allocation8 + $0xa0] sm:$0xf]
    %v3835 = vld [vmem:[#allocation8 + $0xa4] sm:$0xf]
    %v3836 = vld [vmem:[#allocation8 + $0xa8] sm:$0xf]
    %v3837 = vld [vmem:[#allocation8 + $0xac] sm:$0xf]
    %v3838 = vld [vmem:[#allocation8 + $0xb0] sm:$0xf]
    %v3839 = vld [vmem:[#allocation8 + $0xb4] sm:$0xf]
    %v3840 = vld [vmem:[#allocation8 + $0xb8] sm:$0xf]
    %v3841 = vld [vmem:[#allocation8 + $0xbc] sm:$0xf]
    %v3842 = vld [vmem:[#allocation8 + $0xc0] sm:$0xf]
    %v3843 = vld [vmem:[#allocation8 + $0xc4] sm:$0xf]
    %v3844 = vld [vmem:[#allocation8 + $0xc8] sm:$0xf]
    %v3845 = vld [vmem:[#allocation8 + $0xcc] sm:$0xf]
    %v3846 = vld [vmem:[#allocation8 + $0xd0] sm:$0xf]
    %v3847 = vld [vmem:[#allocation8 + $0xd4] sm:$0xf]
    %v3848 = vld [vmem:[#allocation8 + $0xd8] sm:$0xf]
    %v3849 = vld [vmem:[#allocation8 + $0xdc] sm:$0xf]
    %v3850 = vld [vmem:[#allocation8 + $0xe0] sm:$0xf]
    %v3851 = vld [vmem:[#allocation8 + $0xe4] sm:$0xf]
    %v3852 = vld [vmem:[#allocation8 + $0xe8] sm:$0xf]
    %v3853 = vld [vmem:[#allocation8 + $0xec] sm:$0xf]
    %v3854 = vld [vmem:[#allocation8 + $0xf0] sm:$0xf]
    %v3855 = vld [vmem:[#allocation8 + $0xf4] sm:$0xf]
    %v3856 = vld [vmem:[#allocation8 + $0xf8] sm:$0xf]
    %v3857 = vld [vmem:[#allocation8 + $0xfc] sm:$0xf]
    %v3858 = vld [vmem:[#allocation8 + $0x100] sm:$0xf]
    %v3859 = vld [vmem:[#allocation8 + $0x104] sm:$0xf]
    %v3860 = vld [vmem:[#allocation8 + $0x108] sm:$0xf]
    %v3861 = vld [vmem:[#allocation8 + $0x10c] sm:$0xf]
    %v3862 = vld [vmem:[#allocation8 + $0x110] sm:$0xf]
    %v3863 = vld [vmem:[#allocation8 + $0x114] sm:$0xf]
    %v3864 = vld [vmem:[#allocation8 + $0x118] sm:$0xf]
    %v3865 = vld [vmem:[#allocation8 + $0x11c] sm:$0xf]
    %v3866 = vld [vmem:[#allocation8 + $0x120] sm:$0xf]
    %v3867 = vld [vmem:[#allocation8 + $0x124] sm:$0xf]
    %v3868 = vld [vmem:[#allocation8 + $0x128] sm:$0xf]
    %v3869 = vld [vmem:[#allocation8 + $0x12c] sm:$0xf]
    %v3870 = vld [vmem:[#allocation8 + $0x130] sm:$0xf]
    %v3871 = vld [vmem:[#allocation8 + $0x134] sm:$0xf]
    %v3872 = vld [vmem:[#allocation8 + $0x138] sm:$0xf]
    %v3873 = vld [vmem:[#allocation8 + $0x13c] sm:$0xf]
    %v3874 = vld [vmem:[#allocation8 + $0x140] sm:$0xf]
    %v3875 = vld [vmem:[#allocation8 + $0x144] sm:$0xf]
    %v3876 = vld [vmem:[#allocation8 + $0x148] sm:$0xf]
    %v3877 = vld [vmem:[#allocation8 + $0x14c] sm:$0xf]
    %v3878 = vld [vmem:[#allocation8 + $0x150] sm:$0xf]
    %v3879 = vld [vmem:[#allocation8 + $0x154] sm:$0xf]
    %v3880 = vld [vmem:[#allocation8 + $0x158] sm:$0xf]
    %v3881 = vld [vmem:[#allocation8 + $0x15c] sm:$0xf]
    %v3882 = vld [vmem:[#allocation8 + $0x160] sm:$0xf]
    %v3883 = vld [vmem:[#allocation8 + $0x164] sm:$0xf]
    %v3884 = vld [vmem:[#allocation8 + $0x168] sm:$0xf]
    %v3885 = vld [vmem:[#allocation8 + $0x16c] sm:$0xf]
    %v3886 = vld [vmem:[#allocation8 + $0x170] sm:$0xf]
    %v3887 = vld [vmem:[#allocation8 + $0x174] sm:$0xf]
    %v3888 = vld [vmem:[#allocation8 + $0x178] sm:$0xf]
    %v3889 = vld [vmem:[#allocation8 + $0x17c] sm:$0xf]
    %v3890 = vld [vmem:[%s6] sm:$0x1]
    %v3892 = vlaneseq
    %v3893 = vshrl.u32 %v3892, 7
    %v3894 = vsub.s32 0, %v3893
    %v3895 = vrot.slane %v3890, %v3894
    %v3993 = vunpack.c.l.b16 %v3794
    %v3994 = vunpack.c.l.b16 %v3795
    %v3995 = vunpack.c.l.b16 %v3796
    %v3996 = vunpack.c.l.b16 %v3797
    %v3997 = vunpack.c.l.b16 %v3798
    %v3998 = vunpack.c.l.b16 %v3799
    %v3999 = vunpack.c.l.b16 %v3800
    %v4000 = vunpack.c.l.b16 %v3801
    %v4001 = vunpack.c.l.b16 %v3802
    %v4002 = vunpack.c.l.b16 %v3803
    %v4003 = vunpack.c.l.b16 %v3804
    %v4004 = vunpack.c.l.b16 %v3805
    %v4005 = vunpack.c.l.b16 %v3806
    %v4006 = vunpack.c.l.b16 %v3807
    %v4007 = vunpack.c.l.b16 %v3808
    %v4008 = vunpack.c.l.b16 %v3809
    %v4009 = vunpack.c.l.b16 %v3810
    %v4010 = vunpack.c.l.b16 %v3811
    %v4011 = vunpack.c.l.b16 %v3812
    %v4012 = vunpack.c.l.b16 %v3813
    %v4013 = vunpack.c.l.b16 %v3814
    %v4014 = vunpack.c.l.b16 %v3815
    %v4015 = vunpack.c.l.b16 %v3816
    %v4016 = vunpack.c.l.b16 %v3817
    %v4017 = vunpack.c.l.b16 %v3818
    %v4018 = vunpack.c.l.b16 %v3819
    %v4019 = vunpack.c.l.b16 %v3820
    %v4020 = vunpack.c.l.b16 %v3821
    %v4021 = vunpack.c.l.b16 %v3822
    %v4022 = vunpack.c.l.b16 %v3823
    %v4023 = vunpack.c.l.b16 %v3824
    %v4024 = vunpack.c.l.b16 %v3825
    %v4025 = vunpack.c.l.b16 %v3826
    %v4026 = vunpack.c.l.b16 %v3827
    %v4027 = vunpack.c.l.b16 %v3828
    %v4028 = vunpack.c.l.b16 %v3829
    %v4029 = vunpack.c.l.b16 %v3830
    %v4030 = vunpack.c.l.b16 %v3831
    %v4031 = vunpack.c.l.b16 %v3832
    %v4032 = vunpack.c.l.b16 %v3833
    %v4033 = vunpack.c.l.b16 %v3834
    %v4034 = vunpack.c.l.b16 %v3835
    %v4035 = vunpack.c.l.b16 %v3836
    %v4036 = vunpack.c.l.b16 %v3837
    %v4037 = vunpack.c.l.b16 %v3838
    %v4038 = vunpack.c.l.b16 %v3839
    %v4039 = vunpack.c.l.b16 %v3840
    %v4040 = vunpack.c.l.b16 %v3841
    %v4041 = vunpack.c.l.b16 %v3842
    %v4042 = vunpack.c.l.b16 %v3843
    %v4043 = vunpack.c.l.b16 %v3844
    %v4044 = vunpack.c.l.b16 %v3845
    %v4045 = vunpack.c.l.b16 %v3846
    %v4046 = vunpack.c.l.b16 %v3847
    %v4047 = vunpack.c.l.b16 %v3848
    %v4048 = vunpack.c.l.b16 %v3849
    %v4049 = vunpack.c.l.b16 %v3850
    %v4050 = vunpack.c.l.b16 %v3851
    %v4051 = vunpack.c.l.b16 %v3852
    %v4052 = vunpack.c.l.b16 %v3853
    %v4053 = vunpack.c.l.b16 %v3854
    %v4054 = vunpack.c.l.b16 %v3855
    %v4055 = vunpack.c.l.b16 %v3856
    %v4056 = vunpack.c.l.b16 %v3857
    %v4057 = vunpack.c.l.b16 %v3858
    %v4058 = vunpack.c.l.b16 %v3859
    %v4059 = vunpack.c.l.b16 %v3860
    %v4060 = vunpack.c.l.b16 %v3861
    %v4061 = vunpack.c.l.b16 %v3862
    %v4062 = vunpack.c.l.b16 %v3863
    %v4063 = vunpack.c.l.b16 %v3864
    %v4064 = vunpack.c.l.b16 %v3865
    %v4065 = vunpack.c.l.b16 %v3866
    %v4066 = vunpack.c.l.b16 %v3867
    %v4067 = vunpack.c.l.b16 %v3868
    %v4068 = vunpack.c.l.b16 %v3869
    %v4069 = vunpack.c.l.b16 %v3870
    %v4070 = vunpack.c.l.b16 %v3871
    %v4071 = vunpack.c.l.b16 %v3872
    %v4072 = vunpack.c.l.b16 %v3873
    %v4073 = vunpack.c.l.b16 %v3874
    %v4074 = vunpack.c.l.b16 %v3875
    %v4075 = vunpack.c.l.b16 %v3876
    %v4076 = vunpack.c.l.b16 %v3877
    %v4077 = vunpack.c.l.b16 %v3878
    %v4078 = vunpack.c.l.b16 %v3879
    %v4079 = vunpack.c.l.b16 %v3880
    %v4080 = vunpack.c.l.b16 %v3881
    %v4081 = vunpack.c.l.b16 %v3882
    %v4082 = vunpack.c.l.b16 %v3883
    %v4083 = vunpack.c.l.b16 %v3884
    %v4084 = vunpack.c.l.b16 %v3885
    %v4085 = vunpack.c.l.b16 %v3886
    %v4086 = vunpack.c.l.b16 %v3887
    %v4087 = vunpack.c.l.b16 %v3888
    %v4088 = vunpack.c.l.b16 %v3889
    %v4089 = vpack.c.b16 %v3994, %v3993
    %v4090 = vpack.c.b16 %v3996, %v3995
    %v4091 = vpack.c.b16 %v3998, %v3997
    %v4092 = vpack.c.b16 %v4000, %v3999
    %v4093 = vpack.c.b16 %v4002, %v4001
    %v4094 = vpack.c.b16 %v4004, %v4003
    %v4095 = vpack.c.b16 %v4006, %v4005
    %v4096 = vpack.c.b16 %v4008, %v4007
    %v4097 = vpack.c.b16 %v4010, %v4009
    %v4098 = vpack.c.b16 %v4012, %v4011
    %v4099 = vpack.c.b16 %v4014, %v4013
    %v4100 = vpack.c.b16 %v4016, %v4015
    %v4101 = vpack.c.b16 %v4018, %v4017
    %v4102 = vpack.c.b16 %v4020, %v4019
    %v4103 = vpack.c.b16 %v4022, %v4021
    %v4104 = vpack.c.b16 %v4024, %v4023
    %v4105 = vpack.c.b16 %v4026, %v4025
    %v4106 = vpack.c.b16 %v4028, %v4027
    %v4107 = vpack.c.b16 %v4030, %v4029
    %v4108 = vpack.c.b16 %v4032, %v4031
    %v4109 = vpack.c.b16 %v4034, %v4033
    %v4110 = vpack.c.b16 %v4036, %v4035
    %v4111 = vpack.c.b16 %v4038, %v4037
    %v4112 = vpack.c.b16 %v4040, %v4039
    %v4113 = vpack.c.b16 %v4042, %v4041
    %v4114 = vpack.c.b16 %v4044, %v4043
    %v4115 = vpack.c.b16 %v4046, %v4045
    %v4116 = vpack.c.b16 %v4048, %v4047
    %v4117 = vpack.c.b16 %v4050, %v4049
    %v4118 = vpack.c.b16 %v4052, %v4051
    %v4119 = vpack.c.b16 %v4054, %v4053
    %v4120 = vpack.c.b16 %v4056, %v4055
    %v4121 = vpack.c.b16 %v4058, %v4057
    %v4122 = vpack.c.b16 %v4060, %v4059
    %v4123 = vpack.c.b16 %v4062, %v4061
    %v4124 = vpack.c.b16 %v4064, %v4063
    %v4125 = vpack.c.b16 %v4066, %v4065
    %v4126 = vpack.c.b16 %v4068, %v4067
    %v4127 = vpack.c.b16 %v4070, %v4069
    %v4128 = vpack.c.b16 %v4072, %v4071
    %v4129 = vpack.c.b16 %v4074, %v4073
    %v4130 = vpack.c.b16 %v4076, %v4075
    %v4131 = vpack.c.b16 %v4078, %v4077
    %v4132 = vpack.c.b16 %v4080, %v4079
    %v4133 = vpack.c.b16 %v4082, %v4081
    %v4134 = vpack.c.b16 %v4084, %v4083
    %v4135 = vpack.c.b16 %v4086, %v4085
    %v4136 = vpack.c.b16 %v4088, %v4087
    %4185 = vmatprep.subr.bf16.mxu0 0
    %4186 = vmatpush1.bf16.msra.mxu0 %v4089
    %4187 = vmatprep.subr.bf16.mxu0 0
    %4188 = vmatpush1.bf16.msra.mxu0 %v4090
    %4189 = vmatprep.subr.bf16.mxu0 0
    %4190 = vmatpush1.bf16.msra.mxu0 %v4091
    %4191 = vmatprep.subr.bf16.mxu0 0
    %4192 = vmatpush1.bf16.msra.mxu0 %v4092
    %4193 = vmatprep.subr.bf16.mxu0 0
    %4194 = vmatpush1.bf16.msra.mxu0 %v4093
    %4195 = vmatprep.subr.bf16.mxu0 0
    %4196 = vmatpush1.bf16.msra.mxu0 %v4094
    %4197 = vmatprep.subr.bf16.mxu0 0
    %4198 = vmatpush1.bf16.msra.mxu0 %v4095
    %4199 = vmatprep.subr.bf16.mxu0 0
    %4200 = vmatpush1.bf16.msra.mxu0 %v4096
    %4201 = vmatprep.subr.bf16.mxu0 0
    %4202 = vmatpush1.bf16.msra.mxu0 %v4097
    %4203 = vmatprep.subr.bf16.mxu0 0
    %4204 = vmatpush1.bf16.msra.mxu0 %v4098
    %4205 = vmatprep.subr.bf16.mxu0 0
    %4206 = vmatpush1.bf16.msra.mxu0 %v4099
    %4207 = vmatprep.subr.bf16.mxu0 0
    %4208 = vmatpush1.bf16.msra.mxu0 %v4100
    %4209 = vmatprep.subr.bf16.mxu0 0
    %4210 = vmatpush1.bf16.msra.mxu0 %v4101
    %4211 = vmatprep.subr.bf16.mxu0 0
    %4212 = vmatpush1.bf16.msra.mxu0 %v4102
    %4213 = vmatprep.subr.bf16.mxu0 0
    %4214 = vmatpush1.bf16.msra.mxu0 %v4103
    %4215 = vmatprep.subr.bf16.mxu0 0
    %4216 = vmatpush1.bf16.msra.mxu0 %v4104
    %4217 = vmatprep.mubr.bf16.mxu0 %v3789
    %4218 = vmatmul.mubr.bf16.gmra.mrb[0].mxu0 %v3788
    %v4219 = vpop.f32.mrb[0].mxu0
    %v4220 = vadd.f32 %v3895, %v4219
    %v4221 = vpop.f32.mrb[0].mxu0
    %v4222 = vpop.f32.mrb[0].mxu0
    %v4223 = vpop.f32.mrb[0].mxu0
    %4224 = vdwg.mxu0
    %4225 = vmatprep.subr.bf16.mxu0 0
    %4226 = vmatpush1.bf16.msra.mxu0 %v4105
    %4227 = vmatprep.subr.bf16.mxu0 0
    %4228 = vmatpush1.bf16.msra.mxu0 %v4106
    %4229 = vmatprep.subr.bf16.mxu0 0
    %4230 = vmatpush1.bf16.msra.mxu0 %v4107
    %4231 = vmatprep.subr.bf16.mxu0 0
    %4232 = vmatpush1.bf16.msra.mxu0 %v4108
    %4233 = vmatprep.subr.bf16.mxu0 0
    %4234 = vmatpush1.bf16.msra.mxu0 %v4109
    %4235 = vmatprep.subr.bf16.mxu0 0
    %4236 = vmatpush1.bf16.msra.mxu0 %v4110
    %4237 = vmatprep.subr.bf16.mxu0 0
    %4238 = vmatpush1.bf16.msra.mxu0 %v4111
    %4239 = vmatprep.subr.bf16.mxu0 0
    %4240 = vmatpush1.bf16.msra.mxu0 %v4112
    %4241 = vmatprep.subr.bf16.mxu0 0
    %4242 = vmatpush1.bf16.msra.mxu0 %v4113
    %4243 = vmatprep.subr.bf16.mxu0 0
    %4244 = vmatpush1.bf16.msra.mxu0 %v4114
    %4245 = vmatprep.subr.bf16.mxu0 0
    %4246 = vmatpush1.bf16.msra.mxu0 %v4115
    %4247 = vmatprep.subr.bf16.mxu0 0
    %4248 = vmatpush1.bf16.msra.mxu0 %v4116
    %4249 = vmatprep.subr.bf16.mxu0 0
    %4250 = vmatpush1.bf16.msra.mxu0 %v4117
    %4251 = vmatprep.subr.bf16.mxu0 0
    %4252 = vmatpush1.bf16.msra.mxu0 %v4118
    %4253 = vmatprep.subr.bf16.mxu0 0
    %4254 = vmatpush1.bf16.msra.mxu0 %v4119
    %4255 = vmatprep.subr.bf16.mxu0 0
    %4256 = vmatpush1.bf16.msra.mxu0 %v4120
    %4257 = vmatprep.mubr.bf16.mxu0 %v3791
    %4258 = vmatmul.mubr.bf16.gmra.mrb[0].mxu0 %v3790
    %v4259 = vpop.f32.mrb[0].mxu0
    %v4260 = vadd.f32 %v4220, %v4259
    %v4261 = vpop.f32.mrb[0].mxu0
    %v4262 = vpop.f32.mrb[0].mxu0
    %v4263 = vpop.f32.mrb[0].mxu0
    %4264 = vdwg.mxu0
    %4265 = vmatprep.subr.bf16.mxu0 0
    %4266 = vmatpush1.bf16.msra.mxu0 %v4121
    %4267 = vmatprep.subr.bf16.mxu0 0
    %4268 = vmatpush1.bf16.msra.mxu0 %v4122
    %4269 = vmatprep.subr.bf16.mxu0 0
    %4270 = vmatpush1.bf16.msra.mxu0 %v4123
    %4271 = vmatprep.subr.bf16.mxu0 0
    %4272 = vmatpush1.bf16.msra.mxu0 %v4124
    %4273 = vmatprep.subr.bf16.mxu0 0
    %4274 = vmatpush1.bf16.msra.mxu0 %v4125
    %4275 = vmatprep.subr.bf16.mxu0 0
    %4276 = vmatpush1.bf16.msra.mxu0 %v4126
    %4277 = vmatprep.subr.bf16.mxu0 0
    %4278 = vmatpush1.bf16.msra.mxu0 %v4127
    %4279 = vmatprep.subr.bf16.mxu0 0
    %4280 = vmatpush1.bf16.msra.mxu0 %v4128
    %4281 = vmatprep.subr.bf16.mxu0 0
    %4282 = vmatpush1.bf16.msra.mxu0 %v4129
    %4283 = vmatprep.subr.bf16.mxu0 0
    %4284 = vmatpush1.bf16.msra.mxu0 %v4130
    %4285 = vmatprep.subr.bf16.mxu0 0
    %4286 = vmatpush1.bf16.msra.mxu0 %v4131
    %4287 = vmatprep.subr.bf16.mxu0 0
    %4288 = vmatpush1.bf16.msra.mxu0 %v4132
    %4289 = vmatprep.subr.bf16.mxu0 0
    %4290 = vmatpush1.bf16.msra.mxu0 %v4133
    %4291 = vmatprep.subr.bf16.mxu0 0
    %4292 = vmatpush1.bf16.msra.mxu0 %v4134
    %4293 = vmatprep.subr.bf16.mxu0 0
    %4294 = vmatpush1.bf16.msra.mxu0 %v4135
    %4295 = vmatprep.subr.bf16.mxu0 0
    %4296 = vmatpush1.bf16.msra.mxu0 %v4136
    %4297 = vmatprep.mubr.bf16.mxu0 %v3793
    %4298 = vmatmul.mubr.bf16.gmra.mrb[0].mxu0 %v3792
    %v4299 = vpop.f32.mrb[0].mxu0
    %v4300 = vadd.f32 %v4260, %v4299
    %v4301 = vpop.f32.mrb[0].mxu0
    %v4302 = vpop.f32.mrb[0].mxu0
    %v4303 = vpop.f32.mrb[0].mxu0
    %4304 = vdwg.mxu0
    %4305 = vst [vmem:[#allocation10] sm:$0xff] %v4300
    // Predicated region
    $region46: #{tpu_custom_call.1} parent=1 // pred_check
      _
    $region47: #{tpu_custom_call.1} parent=1 // pred_check_branch
      %4307 = sbr.rel (0) target = $region49
    $region48: #{tpu_custom_call.1} parent=1 // pred_region
      %s4309 = ssub.s32 128, 128
      %4310 = vsyncadd [#allocation4], %s4309
      %s4312 = sshll.u32 [#allocation10], 4
      %s4313 = int_to_ptr.vmem [resolvable:$true] %s4312
      %4315 = dma.vmem_to_hbm [thread:$0]  %s4313, 128, %s7, [#allocation4]
    $region49: #{tpu_custom_call.1} parent=1 // pred_fallthru
      _
    // Predicated region
    $region50: #{tpu_custom_call.1} parent=1 // pred_check
      _
    $region51: #{tpu_custom_call.1} parent=1 // pred_check_branch
      %4317 = sbr.rel (0) target = $region53
    $region52: #{tpu_custom_call.1} parent=1 // pred_region
      %4318 = dma.done [#allocation4], 128
    $region53: #{tpu_custom_call.1} parent=1 // pred_fallthru
      _
    %4319 = vsyncpa [#allocation3], 1
    %4320 = vsyncpa [#allocation6], 1
    %4321 = vsyncpa [#allocation9], 1
    %4322 = vsyncpa [#allocation4], 1

</llo_original>
